<compile_context>
chip_gen: v7x
topology: tpu7x:2x2x1
jax: 0.10.0
libtpu: 0.0.40
codegen_flags: <defaults>
</compile_context>

<pallas_src>
import functools
import math

import jax
import jax.numpy as jnp
from jax.experimental import pallas as pl
from jax.experimental.pallas import tpu as pltpu

BN_EPS = 1e-5  # torch.nn.BatchNorm2d default eps (eval mode, default running stats)


# ---------------------------------------------------------------------------
# Fused Pallas kernel: fuzzify -> 3 convs x 2 MF branches -> BN/ReLU/pool
#                      -> defuzzify -> Linear
# ---------------------------------------------------------------------------
def _cnfn_fused_kernel(x_ref, fcen_ref, finv_ref,
                       w3_ref, b3_ref, w4_ref, b4_ref, w5_ref, b5_ref,
                       dcen_ref, fcw_ref, fcb_ref, out_ref, *, Ks, eps):
    """Whole CNFN forward (after embedding scaling) in one kernel.

    x_ref:    (B, L, D)        scaled embeddings, f32
    fcen_ref: (M, L, D)        fuzzifier centers per MF branch
    finv_ref: (M, L, D)        precomputed 1/sigma^2 (reference uses no eps here)
    wK_ref:   (M, K*D, Co)     fuzzified + BN-folded conv weights, bf16 (im2col layout)
    bK_ref:   (M, 1, Co)       BN-folded conv biases, f32
    dcen_ref: (M, 1, F)        defuzzifier centers (F = 3*Co)
    fcw_ref:  (F, C)           fc1 weight (transposed)
    fcb_ref:  (1, C)           fc1 bias
    out_ref:  (B, C)           logits
    """
    B, L, D = x_ref.shape
    n_mf = fcen_ref.shape[0]
    w_refs = (w3_ref, w4_ref, w5_ref)
    b_refs = (b3_ref, b4_ref, b5_ref)

    x = x_ref[...]                                        # (B, L, D)
    num = None
    den = None
    for mf in range(n_mf):                                # static unroll, M = 2
        c = fcen_ref[mf]                                  # (L, D)
        inv_s2 = finv_ref[mf]                             # (L, D)
        delta = x - c
        xf = jnp.exp(-(delta * delta) * inv_s2)           # Gaussian fuzzification (f32)

        feats = []
        for K, w_ref, b_ref in zip(Ks, w_refs, b_refs):   # static unroll, Ks = (3,4,5)
            lout = L - K + 1
            Co = w_ref.shape[2]
            # im2col: K static slices -> (B, lout, K*D), single MXU matmul per K.
            win = jnp.concatenate([xf[:, k:k + lout, :] for k in range(K)],
                                  axis=-1)
            acc = jnp.dot(win.reshape(B * lout, K * D).astype(w_ref.dtype),
                          w_ref[mf],
                          preferred_element_type=jnp.float32)      # (B*lout, Co)
            acc = acc.reshape(B, lout, Co) + b_ref[mf]    # conv bias + BN folded in
            acc = jnp.maximum(acc, 0.0)                   # ReLU
            feats.append(jnp.max(acc, axis=1))            # max_pool1d -> (B, Co)

        x_conv = jnp.concatenate(feats, axis=-1)          # (B, F); dropout = identity (eval)
        d = dcen_ref[mf]                                  # (1, F)
        num = x_conv * d if num is None else num + x_conv * d
        den = x_conv if den is None else den + x_conv

    # Defuzzification: num / (den + eps), reciprocal on the EUP slot.
    x_out = num * pl.reciprocal(den + eps, approx=True)   # (B, F)
    out_ref[...] = (jnp.dot(x_out, fcw_ref[...],
                            preferred_element_type=jnp.float32) + fcb_ref[...])


def _vmem_spec():
    return pl.BlockSpec(memory_space=pltpu.MemorySpace.VMEM)


def cnfn_fused_call(x, prep, Ks, eps):
    """Single grid-free pallas_call; everything fits trivially in VMEM."""
    B = x.shape[0]
    C = prep['fc_w_t'].shape[1]
    kern = functools.partial(_cnfn_fused_kernel, Ks=tuple(Ks), eps=float(eps))
    args = (x, prep['fuzz_center'], prep['fuzz_inv_s2'],
            prep['w3'], prep['b3'], prep['w4'], prep['b4'], prep['w5'], prep['b5'],
            prep['defuz_center'], prep['fc_w_t'], prep['fc_b'])
    return pl.pallas_call(
        kern,
        out_shape=jax.ShapeDtypeStruct((B, C), jnp.float32),
        in_specs=[_vmem_spec() for _ in range(len(args))],
        out_specs=_vmem_spec(),
    )(*args)
    # TODO(synk): if B grows to hundreds+, add a batch grid
    # (grid=(pl.cdiv(B, TB),), dimension_semantics=("parallel",)) to use both
    # v7x TensorCores and respect its 64 MiB VMEM; at B=2 grid-free is optimal.


# ---------------------------------------------------------------------------
# Deterministic parameter init (mirrors FuzzyConv / CNFN.__init__ shapes)
# ---------------------------------------------------------------------------
MF_PARAMS = {
    'lo': {'f_center_init_min': 0.249, 'f_center_init_max': 0.251,
           'f_center_min': 0.0, 'f_center_max': 0.5,
           'conv_center_init_min': 0.0, 'conv_center_init_max': 0.01,
           'conv_center_min': -0.75, 'conv_center_max': 0.25,
           'df_center_init_min': 0.249, 'df_center_init_max': 0.251,
           'fixed_cent': 0.0},
    'hi': {'f_center_init_min': 0.749, 'f_center_init_max': 0.751,
           'f_center_min': 0.5, 'f_center_max': 1.0,
           'conv_center_init_min': 0.99, 'conv_center_init_max': 1.0,
           'conv_center_min': 0.75, 'conv_center_max': 1.75,
           'df_center_init_min': 0.7499, 'df_center_init_max': 0.7501,
           'fixed_cent': 1.0},
}


def _make_branch_params(key, mp, mf_pars):
    L, D = mp['MAX_SENT_LEN'], mp['WORD_DIM']
    Co, Ks = mp['FILTER_NUM'][0], mp['FILTERS']
    sigma = mp['SIGMA']
    keys = jax.random.split(key, 3 + 2 * len(Ks))
    p = {
        'fuzz_center': jax.random.uniform(
            keys[0], (L, D), jnp.float32,
            mf_pars['f_center_init_min'], mf_pars['f_center_init_max']),
        'fuzz_sigma': jnp.full((L, D), sigma, jnp.float32),
        'cent': jnp.float32(mf_pars['fixed_cent']),
        'defuz_center': jax.random.uniform(
            keys[1], (len(Ks) * Co,), jnp.float32,
            mf_pars['df_center_init_min'], mf_pars['df_center_init_max']),
    }
    for i, K in enumerate(Ks):
        p[f'conv{K}_center'] = jax.random.uniform(
            keys[2 + 2 * i], (Co, 1, K, D), jnp.float32,
            mf_pars['conv_center_init_min'], mf_pars['conv_center_init_max'])
        p[f'conv{K}_sigma'] = jnp.full((Co, 1, K, D), sigma, jnp.float32)
        bound = 1.0 / math.sqrt(1 * K * D)  # PyTorch Conv2d default bias init range
        p[f'conv{K}_bias'] = jax.random.uniform(
            keys[3 + 2 * i], (Co,), jnp.float32, -bound, bound)
    return p


def init_cnfn_params(key, mp):
    Vocab, D = mp['VOCAB_SIZE'], mp['WORD_DIM']
    C, Co, Ks = mp['CLASS_SIZE'], mp['FILTER_NUM'][0], mp['FILTERS']
    F = len(Ks) * Co
    k_emb, k_lo, k_hi, k_fcw, k_fcb = jax.random.split(key, 5)

    embed_table = jax.random.normal(k_emb, (Vocab + 2, D), jnp.float32)
    embed_table = embed_table.at[Vocab + 1].set(0.0)  # padding_idx row
    # embed_min / embed_max computed from embed(arange(D)) as in CNFN.__init__
    sub = embed_table[:D]
    params = {
        'embed_table': embed_table,
        'embed_min': jnp.min(sub),
        'embed_max': jnp.max(sub),
        'lo': _make_branch_params(k_lo, mp, MF_PARAMS['lo']),
        'hi': _make_branch_params(k_hi, mp, MF_PARAMS['hi']),
    }
    fc_bound = 1.0 / math.sqrt(F)  # PyTorch Linear default init range
    fc_w = jax.random.uniform(k_fcw, (C, F), jnp.float32, -fc_bound, fc_bound)
    fc_b = jax.random.uniform(k_fcb, (C,), jnp.float32, -fc_bound, fc_bound)
    params['fc_w_t'] = jnp.transpose(fc_w)          # (F, C)
    params['fc_b'] = fc_b.reshape(1, C)
    return params


# ---------------------------------------------------------------------------
# One-time inference prep: fuzzified conv weights, BN folding, im2col layout
# ---------------------------------------------------------------------------
def prepare_inference_params(params, mp):
    eps = mp['EPS']
    Ks = mp['FILTERS']
    # BatchNorm2d eval with DEFAULT running stats (mean=0, var=1, gamma=1, beta=0).
    # TODO(synk): for a trained checkpoint, fold the real running stats/affine here.
    bn_scale = (1.0 / math.sqrt(1.0 + BN_EPS)) if mp['B_NORM'] else 1.0
    branches = ('lo', 'hi')

    prep = {
        'embed_table': params['embed_table'],
        'embed_min': params['embed_min'],
        'embed_max': params['embed_max'],
        # Reference fuzzification divides by sigma^2 (no eps) — keep exact.
        'fuzz_center': jnp.stack([params[n]['fuzz_center'] for n in branches]),
        'fuzz_inv_s2': jnp.stack(
            [1.0 / (params[n]['fuzz_sigma'] ** 2) for n in branches]),
        'defuz_center': jnp.stack(
            [params[n]['defuz_center'].reshape(1, -1) for n in branches]),
        'fc_w_t': params['fc_w_t'],
        'fc_b': params['fc_b'],
    }
    for K in Ks:
        ws, bs = [], []
        for n in branches:
            bp = params[n]
            c = bp[f'conv{K}_center']                              # (Co, 1, K, D)
            s = bp[f'conv{K}_sigma']
            # Fuzzified conv weight: exp(-(cent - center)^2 / (sigma^2 + eps))
            w = jnp.exp(-((bp['cent'] - c) ** 2) / (s ** 2 + eps))
            w = jnp.transpose(w[:, 0], (1, 2, 0))                  # (K, D, Co)
            Kd, D, Co = w.shape
            w = (w * bn_scale).reshape(Kd * D, Co)                 # im2col layout, BN folded
            ws.append(w.astype(jnp.bfloat16))                      # MXU-friendly operand
            bs.append((bp[f'conv{K}_bias'] * bn_scale).reshape(1, -1))
        prep[f'w{K}'] = jnp.stack(ws)                              # (2, K*D, Co) bf16
        prep[f'b{K}'] = jnp.stack(bs)                              # (2, 1, Co)   f32
    return prep


# ---------------------------------------------------------------------------
# Forward pass
# ---------------------------------------------------------------------------
def cnfn_forward(token_ids, prep, mp):
    # Embedding lookup (gather) — JAX glue.
    emb = jnp.take(prep['embed_table'], token_ids, axis=0)          # (B, L, D)
    # TODO(synk): util_fn.scale_embed source not given; assuming min-max scaling
    # of embeddings with the precomputed embed_min / embed_max.
    x = (emb - prep['embed_min']) / (prep['embed_max'] - prep['embed_min'])
    return cnfn_fused_call(x, prep, mp['FILTERS'], mp['EPS'])       # (B, C)


# ---------------------------------------------------------------------------
if __name__ == "__main__":
    model_pars = {
        'GPU_num': 0, 'EPS': 1e-6, 'MAX_SENT_LEN': 16, 'VOCAB_SIZE': 50,
        'WORD_DIM': 32, 'MF_NUM': 2, 'MF_FUNC': 'gauss',
        'tr_center_en': True, 'tr_sigma_en': True,
        'CLASS_SIZE': 4, 'FILTER_NUM': [8], 'FILTERS': [3, 4, 5],
        'SIGMA': 0.5, 'B_NORM': True, 'DR': 0.5, 'SEED': 0,
    }

    key = jax.random.PRNGKey(0)
    params = init_cnfn_params(key, model_pars)
    prep = prepare_inference_params(params, model_pars)   # one-time weight fuzzification

    # Input token ids: (B, MAX_SENT_LEN) int32
    token_ids = jax.random.randint(
        jax.random.PRNGKey(1), (2, model_pars['MAX_SENT_LEN']),
        0, model_pars['VOCAB_SIZE'], dtype=jnp.int32)

    logits = cnfn_forward(token_ids, prep, model_pars)
    jax.block_until_ready(logits)
    assert logits.shape == (2, model_pars['CLASS_SIZE'])
    print("KERNEL_OK")
</pallas_src>

<mosaic_0001>
module attributes {stable_mosaic.version = 11 : i64} {
  func.func @_cnfn_fused_kernel(%arg0: memref<2x16x32xf32, #tpu.memory_space<vmem>>, %arg1: memref<2x16x32xf32, #tpu.memory_space<vmem>>, %arg2: memref<2x16x32xf32, #tpu.memory_space<vmem>>, %arg3: memref<2x96x8xbf16, #tpu.memory_space<vmem>>, %arg4: memref<2x1x8xf32, #tpu.memory_space<vmem>>, %arg5: memref<2x128x8xbf16, #tpu.memory_space<vmem>>, %arg6: memref<2x1x8xf32, #tpu.memory_space<vmem>>, %arg7: memref<2x160x8xbf16, #tpu.memory_space<vmem>>, %arg8: memref<2x1x8xf32, #tpu.memory_space<vmem>>, %arg9: memref<2x1x24xf32, #tpu.memory_space<vmem>>, %arg10: memref<24x4xf32, #tpu.memory_space<vmem>>, %arg11: memref<1x4xf32, #tpu.memory_space<vmem>>, %arg12: memref<2x4xf32, #tpu.memory_space<vmem>>) attributes {dimension_semantics = [], scalar_prefetch = 0 : i64, scratch_operands = 0 : i64, tpu.core_type = #tpu.core_type<tc>} {
    %c0 = arith.constant 0 : index
    %c0_0 = arith.constant 0 : index
    %c0_1 = arith.constant 0 : index
    %0 = vector.load %arg0[%c0, %c0_0, %c0_1] : memref<2x16x32xf32, #tpu.memory_space<vmem>>, vector<2x16x32xf32>
    %c0_2 = arith.constant 0 : index
    %c0_3 = arith.constant 0 : index
    %c0_4 = arith.constant 0 : index
    %1 = vector.load %arg1[%c0_2, %c0_3, %c0_4] : memref<2x16x32xf32, #tpu.memory_space<vmem>>, vector<1x16x32xf32>
    %2 = vector.shape_cast %1 : vector<1x16x32xf32> to vector<16x32xf32>
    %c0_5 = arith.constant 0 : index
    %c0_6 = arith.constant 0 : index
    %c0_7 = arith.constant 0 : index
    %3 = vector.load %arg2[%c0_5, %c0_6, %c0_7] : memref<2x16x32xf32, #tpu.memory_space<vmem>>, vector<1x16x32xf32>
    %4 = vector.shape_cast %3 : vector<1x16x32xf32> to vector<16x32xf32>
    %5 = vector.shape_cast %2 : vector<16x32xf32> to vector<1x16x32xf32>
    %6 = vector.broadcast %5 : vector<1x16x32xf32> to vector<2x16x32xf32>
    %7 = arith.subf %0, %6 : vector<2x16x32xf32>
    %8 = arith.mulf %7, %7 : vector<2x16x32xf32>
    %cst = arith.constant 0.000000e+00 : f32
    %9 = vector.broadcast %cst : f32 to vector<2x16x32xf32>
    %10 = arith.subf %9, %8 : vector<2x16x32xf32>
    %11 = vector.shape_cast %4 : vector<16x32xf32> to vector<1x16x32xf32>
    %12 = vector.broadcast %11 : vector<1x16x32xf32> to vector<2x16x32xf32>
    %13 = arith.mulf %10, %12 : vector<2x16x32xf32>
    %14 = math.exp %13 : vector<2x16x32xf32>
    %15 = vector.extract_strided_slice %14 {offsets = [0, 0, 0], sizes = [2, 14, 32], strides = [1, 1, 1]} : vector<2x16x32xf32> to vector<2x14x32xf32>
    %16 = vector.extract_strided_slice %14 {offsets = [0, 1, 0], sizes = [2, 14, 32], strides = [1, 1, 1]} : vector<2x16x32xf32> to vector<2x14x32xf32>
    %17 = vector.extract_strided_slice %14 {offsets = [0, 2, 0], sizes = [2, 14, 32], strides = [1, 1, 1]} : vector<2x16x32xf32> to vector<2x14x32xf32>
    %18 = tpu.concatenate %15, %16, %17 in 2 : vector<2x14x32xf32>, vector<2x14x32xf32>, vector<2x14x32xf32> -> vector<2x14x96xf32>
    %19 = vector.shape_cast %18 : vector<2x14x96xf32> to vector<28x96xf32>
    %20 = arith.truncf %19 : vector<28x96xf32> to vector<28x96xbf16>
    %c0_8 = arith.constant 0 : index
    %c0_9 = arith.constant 0 : index
    %c0_10 = arith.constant 0 : index
    %21 = vector.load %arg3[%c0_8, %c0_9, %c0_10] : memref<2x96x8xbf16, #tpu.memory_space<vmem>>, vector<1x96x8xbf16>
    %22 = vector.shape_cast %21 : vector<1x96x8xbf16> to vector<96x8xbf16>
    %cst_11 = arith.constant dense<0.000000e+00> : vector<28x8xf32>
    %23 = tpu.matmul %20, %22, %cst_11 {dimension_numbers = #tpu.dot_dimension_numbers<[1], [0], [0], [1], [0, 0, 1, 1], [], []>} : vector<28x96xbf16>, vector<96x8xbf16>, vector<28x8xf32> -> vector<28x8xf32>
    %24 = vector.shape_cast %23 : vector<28x8xf32> to vector<2x14x8xf32>
    %c0_12 = arith.constant 0 : index
    %c0_13 = arith.constant 0 : index
    %c0_14 = arith.constant 0 : index
    %25 = vector.load %arg4[%c0_12, %c0_13, %c0_14] : memref<2x1x8xf32, #tpu.memory_space<vmem>>, vector<1x1x8xf32>
    %26 = vector.shape_cast %25 : vector<1x1x8xf32> to vector<1x8xf32>
    %27 = vector.shape_cast %26 : vector<1x8xf32> to vector<1x1x8xf32>
    %28 = vector.broadcast %27 : vector<1x1x8xf32> to vector<2x14x8xf32>
    %29 = arith.addf %24, %28 : vector<2x14x8xf32>
    %cst_15 = arith.constant 0.000000e+00 : f32
    %30 = vector.broadcast %cst_15 : f32 to vector<2x14x8xf32>
    %31 = arith.maximumf %29, %30 : vector<2x14x8xf32>
    %cst_16 = arith.constant dense<0xFF800000> : vector<2x8xf32>
    %32 = vector.multi_reduction <maximumf>, %31, %cst_16 [1] : vector<2x14x8xf32> to vector<2x8xf32>
    %33 = vector.extract_strided_slice %14 {offsets = [0, 0, 0], sizes = [2, 13, 32], strides = [1, 1, 1]} : vector<2x16x32xf32> to vector<2x13x32xf32>
    %34 = vector.extract_strided_slice %14 {offsets = [0, 1, 0], sizes = [2, 13, 32], strides = [1, 1, 1]} : vector<2x16x32xf32> to vector<2x13x32xf32>
    %35 = vector.extract_strided_slice %14 {offsets = [0, 2, 0], sizes = [2, 13, 32], strides = [1, 1, 1]} : vector<2x16x32xf32> to vector<2x13x32xf32>
    %36 = vector.extract_strided_slice %14 {offsets = [0, 3, 0], sizes = [2, 13, 32], strides = [1, 1, 1]} : vector<2x16x32xf32> to vector<2x13x32xf32>
    %37 = tpu.concatenate %33, %34, %35, %36 in 2 : vector<2x13x32xf32>, vector<2x13x32xf32>, vector<2x13x32xf32>, vector<2x13x32xf32> -> vector<2x13x128xf32>
    %38 = vector.shape_cast %37 : vector<2x13x128xf32> to vector<26x128xf32>
    %39 = arith.truncf %38 : vector<26x128xf32> to vector<26x128xbf16>
    %c0_17 = arith.constant 0 : index
    %c0_18 = arith.constant 0 : index
    %c0_19 = arith.constant 0 : index
    %40 = vector.load %arg5[%c0_17, %c0_18, %c0_19] : memref<2x128x8xbf16, #tpu.memory_space<vmem>>, vector<1x128x8xbf16>
    %41 = vector.shape_cast %40 : vector<1x128x8xbf16> to vector<128x8xbf16>
    %cst_20 = arith.constant dense<0.000000e+00> : vector<26x8xf32>
    %42 = tpu.matmul %39, %41, %cst_20 {dimension_numbers = #tpu.dot_dimension_numbers<[1], [0], [0], [1], [0, 0, 1, 1], [], []>} : vector<26x128xbf16>, vector<128x8xbf16>, vector<26x8xf32> -> vector<26x8xf32>
    %43 = vector.shape_cast %42 : vector<26x8xf32> to vector<2x13x8xf32>
    %c0_21 = arith.constant 0 : index
    %c0_22 = arith.constant 0 : index
    %c0_23 = arith.constant 0 : index
    %44 = vector.load %arg6[%c0_21, %c0_22, %c0_23] : memref<2x1x8xf32, #tpu.memory_space<vmem>>, vector<1x1x8xf32>
    %45 = vector.shape_cast %44 : vector<1x1x8xf32> to vector<1x8xf32>
    %46 = vector.shape_cast %45 : vector<1x8xf32> to vector<1x1x8xf32>
    %47 = vector.broadcast %46 : vector<1x1x8xf32> to vector<2x13x8xf32>
    %48 = arith.addf %43, %47 : vector<2x13x8xf32>
    %cst_24 = arith.constant 0.000000e+00 : f32
    %49 = vector.broadcast %cst_24 : f32 to vector<2x13x8xf32>
    %50 = arith.maximumf %48, %49 : vector<2x13x8xf32>
    %cst_25 = arith.constant dense<0xFF800000> : vector<2x8xf32>
    %51 = vector.multi_reduction <maximumf>, %50, %cst_25 [1] : vector<2x13x8xf32> to vector<2x8xf32>
    %52 = vector.extract_strided_slice %14 {offsets = [0, 0, 0], sizes = [2, 12, 32], strides = [1, 1, 1]} : vector<2x16x32xf32> to vector<2x12x32xf32>
    %53 = vector.extract_strided_slice %14 {offsets = [0, 1, 0], sizes = [2, 12, 32], strides = [1, 1, 1]} : vector<2x16x32xf32> to vector<2x12x32xf32>
    %54 = vector.extract_strided_slice %14 {offsets = [0, 2, 0], sizes = [2, 12, 32], strides = [1, 1, 1]} : vector<2x16x32xf32> to vector<2x12x32xf32>
    %55 = vector.extract_strided_slice %14 {offsets = [0, 3, 0], sizes = [2, 12, 32], strides = [1, 1, 1]} : vector<2x16x32xf32> to vector<2x12x32xf32>
    %56 = vector.extract_strided_slice %14 {offsets = [0, 4, 0], sizes = [2, 12, 32], strides = [1, 1, 1]} : vector<2x16x32xf32> to vector<2x12x32xf32>
    %57 = tpu.concatenate %52, %53, %54, %55, %56 in 2 : vector<2x12x32xf32>, vector<2x12x32xf32>, vector<2x12x32xf32>, vector<2x12x32xf32>, vector<2x12x32xf32> -> vector<2x12x160xf32>
    %58 = vector.shape_cast %57 : vector<2x12x160xf32> to vector<24x160xf32>
    %59 = arith.truncf %58 : vector<24x160xf32> to vector<24x160xbf16>
    %c0_26 = arith.constant 0 : index
    %c0_27 = arith.constant 0 : index
    %c0_28 = arith.constant 0 : index
    %60 = vector.load %arg7[%c0_26, %c0_27, %c0_28] : memref<2x160x8xbf16, #tpu.memory_space<vmem>>, vector<1x160x8xbf16>
    %61 = vector.shape_cast %60 : vector<1x160x8xbf16> to vector<160x8xbf16>
    %cst_29 = arith.constant dense<0.000000e+00> : vector<24x8xf32>
    %62 = tpu.matmul %59, %61, %cst_29 {dimension_numbers = #tpu.dot_dimension_numbers<[1], [0], [0], [1], [0, 0, 1, 1], [], []>} : vector<24x160xbf16>, vector<160x8xbf16>, vector<24x8xf32> -> vector<24x8xf32>
    %63 = vector.shape_cast %62 : vector<24x8xf32> to vector<2x12x8xf32>
    %c0_30 = arith.constant 0 : index
    %c0_31 = arith.constant 0 : index
    %c0_32 = arith.constant 0 : index
    %64 = vector.load %arg8[%c0_30, %c0_31, %c0_32] : memref<2x1x8xf32, #tpu.memory_space<vmem>>, vector<1x1x8xf32>
    %65 = vector.shape_cast %64 : vector<1x1x8xf32> to vector<1x8xf32>
    %66 = vector.shape_cast %65 : vector<1x8xf32> to vector<1x1x8xf32>
    %67 = vector.broadcast %66 : vector<1x1x8xf32> to vector<2x12x8xf32>
    %68 = arith.addf %63, %67 : vector<2x12x8xf32>
    %cst_33 = arith.constant 0.000000e+00 : f32
    %69 = vector.broadcast %cst_33 : f32 to vector<2x12x8xf32>
    %70 = arith.maximumf %68, %69 : vector<2x12x8xf32>
    %cst_34 = arith.constant dense<0xFF800000> : vector<2x8xf32>
    %71 = vector.multi_reduction <maximumf>, %70, %cst_34 [1] : vector<2x12x8xf32> to vector<2x8xf32>
    %72 = tpu.concatenate %32, %51, %71 in 1 : vector<2x8xf32>, vector<2x8xf32>, vector<2x8xf32> -> vector<2x24xf32>
    %c0_35 = arith.constant 0 : index
    %c0_36 = arith.constant 0 : index
    %c0_37 = arith.constant 0 : index
    %73 = vector.load %arg9[%c0_35, %c0_36, %c0_37] : memref<2x1x24xf32, #tpu.memory_space<vmem>>, vector<1x1x24xf32>
    %74 = vector.shape_cast %73 : vector<1x1x24xf32> to vector<1x24xf32>
    %75 = vector.broadcast %74 : vector<1x24xf32> to vector<2x24xf32>
    %76 = arith.mulf %72, %75 : vector<2x24xf32>
    %c1 = arith.constant 1 : index
    %c0_38 = arith.constant 0 : index
    %c0_39 = arith.constant 0 : index
    %77 = vector.load %arg1[%c1, %c0_38, %c0_39] : memref<2x16x32xf32, #tpu.memory_space<vmem>>, vector<1x16x32xf32>
    %78 = vector.shape_cast %77 : vector<1x16x32xf32> to vector<16x32xf32>
    %c1_40 = arith.constant 1 : index
    %c0_41 = arith.constant 0 : index
    %c0_42 = arith.constant 0 : index
    %79 = vector.load %arg2[%c1_40, %c0_41, %c0_42] : memref<2x16x32xf32, #tpu.memory_space<vmem>>, vector<1x16x32xf32>
    %80 = vector.shape_cast %79 : vector<1x16x32xf32> to vector<16x32xf32>
    %81 = vector.shape_cast %78 : vector<16x32xf32> to vector<1x16x32xf32>
    %82 = vector.broadcast %81 : vector<1x16x32xf32> to vector<2x16x32xf32>
    %83 = arith.subf %0, %82 : vector<2x16x32xf32>
    %84 = arith.mulf %83, %83 : vector<2x16x32xf32>
    %cst_43 = arith.constant 0.000000e+00 : f32
    %85 = vector.broadcast %cst_43 : f32 to vector<2x16x32xf32>
    %86 = arith.subf %85, %84 : vector<2x16x32xf32>
    %87 = vector.shape_cast %80 : vector<16x32xf32> to vector<1x16x32xf32>
    %88 = vector.broadcast %87 : vector<1x16x32xf32> to vector<2x16x32xf32>
    %89 = arith.mulf %86, %88 : vector<2x16x32xf32>
    %90 = math.exp %89 : vector<2x16x32xf32>
    %91 = vector.extract_strided_slice %90 {offsets = [0, 0, 0], sizes = [2, 14, 32], strides = [1, 1, 1]} : vector<2x16x32xf32> to vector<2x14x32xf32>
    %92 = vector.extract_strided_slice %90 {offsets = [0, 1, 0], sizes = [2, 14, 32], strides = [1, 1, 1]} : vector<2x16x32xf32> to vector<2x14x32xf32>
    %93 = vector.extract_strided_slice %90 {offsets = [0, 2, 0], sizes = [2, 14, 32], strides = [1, 1, 1]} : vector<2x16x32xf32> to vector<2x14x32xf32>
    %94 = tpu.concatenate %91, %92, %93 in 2 : vector<2x14x32xf32>, vector<2x14x32xf32>, vector<2x14x32xf32> -> vector<2x14x96xf32>
    %95 = vector.shape_cast %94 : vector<2x14x96xf32> to vector<28x96xf32>
    %96 = arith.truncf %95 : vector<28x96xf32> to vector<28x96xbf16>
    %c1_44 = arith.constant 1 : index
    %c0_45 = arith.constant 0 : index
    %c0_46 = arith.constant 0 : index
    %97 = vector.load %arg3[%c1_44, %c0_45, %c0_46] : memref<2x96x8xbf16, #tpu.memory_space<vmem>>, vector<1x96x8xbf16>
    %98 = vector.shape_cast %97 : vector<1x96x8xbf16> to vector<96x8xbf16>
    %cst_47 = arith.constant dense<0.000000e+00> : vector<28x8xf32>
    %99 = tpu.matmul %96, %98, %cst_47 {dimension_numbers = #tpu.dot_dimension_numbers<[1], [0], [0], [1], [0, 0, 1, 1], [], []>} : vector<28x96xbf16>, vector<96x8xbf16>, vector<28x8xf32> -> vector<28x8xf32>
    %100 = vector.shape_cast %99 : vector<28x8xf32> to vector<2x14x8xf32>
    %c1_48 = arith.constant 1 : index
    %c0_49 = arith.constant 0 : index
    %c0_50 = arith.constant 0 : index
    %101 = vector.load %arg4[%c1_48, %c0_49, %c0_50] : memref<2x1x8xf32, #tpu.memory_space<vmem>>, vector<1x1x8xf32>
    %102 = vector.shape_cast %101 : vector<1x1x8xf32> to vector<1x8xf32>
    %103 = vector.shape_cast %102 : vector<1x8xf32> to vector<1x1x8xf32>
    %104 = vector.broadcast %103 : vector<1x1x8xf32> to vector<2x14x8xf32>
    %105 = arith.addf %100, %104 : vector<2x14x8xf32>
    %cst_51 = arith.constant 0.000000e+00 : f32
    %106 = vector.broadcast %cst_51 : f32 to vector<2x14x8xf32>
    %107 = arith.maximumf %105, %106 : vector<2x14x8xf32>
    %cst_52 = arith.constant dense<0xFF800000> : vector<2x8xf32>
    %108 = vector.multi_reduction <maximumf>, %107, %cst_52 [1] : vector<2x14x8xf32> to vector<2x8xf32>
    %109 = vector.extract_strided_slice %90 {offsets = [0, 0, 0], sizes = [2, 13, 32], strides = [1, 1, 1]} : vector<2x16x32xf32> to vector<2x13x32xf32>
    %110 = vector.extract_strided_slice %90 {offsets = [0, 1, 0], sizes = [2, 13, 32], strides = [1, 1, 1]} : vector<2x16x32xf32> to vector<2x13x32xf32>
    %111 = vector.extract_strided_slice %90 {offsets = [0, 2, 0], sizes = [2, 13, 32], strides = [1, 1, 1]} : vector<2x16x32xf32> to vector<2x13x32xf32>
    %112 = vector.extract_strided_slice %90 {offsets = [0, 3, 0], sizes = [2, 13, 32], strides = [1, 1, 1]} : vector<2x16x32xf32> to vector<2x13x32xf32>
    %113 = tpu.concatenate %109, %110, %111, %112 in 2 : vector<2x13x32xf32>, vector<2x13x32xf32>, vector<2x13x32xf32>, vector<2x13x32xf32> -> vector<2x13x128xf32>
    %114 = vector.shape_cast %113 : vector<2x13x128xf32> to vector<26x128xf32>
    %115 = arith.truncf %114 : vector<26x128xf32> to vector<26x128xbf16>
    %c1_53 = arith.constant 1 : index
    %c0_54 = arith.constant 0 : index
    %c0_55 = arith.constant 0 : index
    %116 = vector.load %arg5[%c1_53, %c0_54, %c0_55] : memref<2x128x8xbf16, #tpu.memory_space<vmem>>, vector<1x128x8xbf16>
    %117 = vector.shape_cast %116 : vector<1x128x8xbf16> to vector<128x8xbf16>
    %cst_56 = arith.constant dense<0.000000e+00> : vector<26x8xf32>
    %118 = tpu.matmul %115, %117, %cst_56 {dimension_numbers = #tpu.dot_dimension_numbers<[1], [0], [0], [1], [0, 0, 1, 1], [], []>} : vector<26x128xbf16>, vector<128x8xbf16>, vector<26x8xf32> -> vector<26x8xf32>
    %119 = vector.shape_cast %118 : vector<26x8xf32> to vector<2x13x8xf32>
    %c1_57 = arith.constant 1 : index
    %c0_58 = arith.constant 0 : index
    %c0_59 = arith.constant 0 : index
    %120 = vector.load %arg6[%c1_57, %c0_58, %c0_59] : memref<2x1x8xf32, #tpu.memory_space<vmem>>, vector<1x1x8xf32>
    %121 = vector.shape_cast %120 : vector<1x1x8xf32> to vector<1x8xf32>
    %122 = vector.shape_cast %121 : vector<1x8xf32> to vector<1x1x8xf32>
    %123 = vector.broadcast %122 : vector<1x1x8xf32> to vector<2x13x8xf32>
    %124 = arith.addf %119, %123 : vector<2x13x8xf32>
    %cst_60 = arith.constant 0.000000e+00 : f32
    %125 = vector.broadcast %cst_60 : f32 to vector<2x13x8xf32>
    %126 = arith.maximumf %124, %125 : vector<2x13x8xf32>
    %cst_61 = arith.constant dense<0xFF800000> : vector<2x8xf32>
    %127 = vector.multi_reduction <maximumf>, %126, %cst_61 [1] : vector<2x13x8xf32> to vector<2x8xf32>
    %128 = vector.extract_strided_slice %90 {offsets = [0, 0, 0], sizes = [2, 12, 32], strides = [1, 1, 1]} : vector<2x16x32xf32> to vector<2x12x32xf32>
    %129 = vector.extract_strided_slice %90 {offsets = [0, 1, 0], sizes = [2, 12, 32], strides = [1, 1, 1]} : vector<2x16x32xf32> to vector<2x12x32xf32>
    %130 = vector.extract_strided_slice %90 {offsets = [0, 2, 0], sizes = [2, 12, 32], strides = [1, 1, 1]} : vector<2x16x32xf32> to vector<2x12x32xf32>
    %131 = vector.extract_strided_slice %90 {offsets = [0, 3, 0], sizes = [2, 12, 32], strides = [1, 1, 1]} : vector<2x16x32xf32> to vector<2x12x32xf32>
    %132 = vector.extract_strided_slice %90 {offsets = [0, 4, 0], sizes = [2, 12, 32], strides = [1, 1, 1]} : vector<2x16x32xf32> to vector<2x12x32xf32>
    %133 = tpu.concatenate %128, %129, %130, %131, %132 in 2 : vector<2x12x32xf32>, vector<2x12x32xf32>, vector<2x12x32xf32>, vector<2x12x32xf32>, vector<2x12x32xf32> -> vector<2x12x160xf32>
    %134 = vector.shape_cast %133 : vector<2x12x160xf32> to vector<24x160xf32>
    %135 = arith.truncf %134 : vector<24x160xf32> to vector<24x160xbf16>
    %c1_62 = arith.constant 1 : index
    %c0_63 = arith.constant 0 : index
    %c0_64 = arith.constant 0 : index
    %136 = vector.load %arg7[%c1_62, %c0_63, %c0_64] : memref<2x160x8xbf16, #tpu.memory_space<vmem>>, vector<1x160x8xbf16>
    %137 = vector.shape_cast %136 : vector<1x160x8xbf16> to vector<160x8xbf16>
    %cst_65 = arith.constant dense<0.000000e+00> : vector<24x8xf32>
    %138 = tpu.matmul %135, %137, %cst_65 {dimension_numbers = #tpu.dot_dimension_numbers<[1], [0], [0], [1], [0, 0, 1, 1], [], []>} : vector<24x160xbf16>, vector<160x8xbf16>, vector<24x8xf32> -> vector<24x8xf32>
    %139 = vector.shape_cast %138 : vector<24x8xf32> to vector<2x12x8xf32>
    %c1_66 = arith.constant 1 : index
    %c0_67 = arith.constant 0 : index
    %c0_68 = arith.constant 0 : index
    %140 = vector.load %arg8[%c1_66, %c0_67, %c0_68] : memref<2x1x8xf32, #tpu.memory_space<vmem>>, vector<1x1x8xf32>
    %141 = vector.shape_cast %140 : vector<1x1x8xf32> to vector<1x8xf32>
    %142 = vector.shape_cast %141 : vector<1x8xf32> to vector<1x1x8xf32>
    %143 = vector.broadcast %142 : vector<1x1x8xf32> to vector<2x12x8xf32>
    %144 = arith.addf %139, %143 : vector<2x12x8xf32>
    %cst_69 = arith.constant 0.000000e+00 : f32
    %145 = vector.broadcast %cst_69 : f32 to vector<2x12x8xf32>
    %146 = arith.maximumf %144, %145 : vector<2x12x8xf32>
    %cst_70 = arith.constant dense<0xFF800000> : vector<2x8xf32>
    %147 = vector.multi_reduction <maximumf>, %146, %cst_70 [1] : vector<2x12x8xf32> to vector<2x8xf32>
    %148 = tpu.concatenate %108, %127, %147 in 1 : vector<2x8xf32>, vector<2x8xf32>, vector<2x8xf32> -> vector<2x24xf32>
    %c1_71 = arith.constant 1 : index
    %c0_72 = arith.constant 0 : index
    %c0_73 = arith.constant 0 : index
    %149 = vector.load %arg9[%c1_71, %c0_72, %c0_73] : memref<2x1x24xf32, #tpu.memory_space<vmem>>, vector<1x1x24xf32>
    %150 = vector.shape_cast %149 : vector<1x1x24xf32> to vector<1x24xf32>
    %151 = vector.broadcast %150 : vector<1x24xf32> to vector<2x24xf32>
    %152 = arith.mulf %148, %151 : vector<2x24xf32>
    %153 = arith.addf %76, %152 : vector<2x24xf32>
    %154 = arith.addf %72, %148 : vector<2x24xf32>
    %cst_74 = arith.constant 9.99999997E-7 : f32
    %155 = vector.broadcast %cst_74 : f32 to vector<2x24xf32>
    %156 = arith.addf %154, %155 : vector<2x24xf32>
    %157 = tpu.reciprocal %156 {approx = true} : vector<2x24xf32> -> vector<2x24xf32>
    %158 = arith.mulf %153, %157 : vector<2x24xf32>
    %c0_75 = arith.constant 0 : index
    %c0_76 = arith.constant 0 : index
    %159 = vector.load %arg10[%c0_75, %c0_76] : memref<24x4xf32, #tpu.memory_space<vmem>>, vector<24x4xf32>
    %cst_77 = arith.constant dense<0.000000e+00> : vector<2x4xf32>
    %160 = tpu.matmul %158, %159, %cst_77 {dimension_numbers = #tpu.dot_dimension_numbers<[1], [0], [0], [1], [0, 0, 1, 1], [], []>} : vector<2x24xf32>, vector<24x4xf32>, vector<2x4xf32> -> vector<2x4xf32>
    %c0_78 = arith.constant 0 : index
    %c0_79 = arith.constant 0 : index
    %161 = vector.load %arg11[%c0_78, %c0_79] : memref<1x4xf32, #tpu.memory_space<vmem>>, vector<1x4xf32>
    %162 = vector.broadcast %161 : vector<1x4xf32> to vector<2x4xf32>
    %163 = arith.addf %160, %162 : vector<2x4xf32>
    %c0_80 = arith.constant 0 : index
    %c0_81 = arith.constant 0 : index
    %164 = vector.load %arg12[%c0_80, %c0_81] : memref<2x4xf32, #tpu.memory_space<vmem>>, vector<2x4xf32>
    tpu.vector_store %arg12[%c0_80, %c0_81], %163 {strides = array<i32>} : memref<2x4xf32, #tpu.memory_space<vmem>>, vector<2x4xf32>,
    return
  }
}

</mosaic_0001>

<llo_original>
// kernel: tpu_custom_call.1
$region0: #{tpu_custom_call.1}
  #allocation0 [shape = 'u32[]', space=smem, size = 0x4, offset = 0x4, fixed_abs, tag = 'smem constant byte address 0x4 - core index']
  #allocation1 [shape = 'u32[144,128]{1,0:T(1,128)}', space=vmem, size = 0x12000, scoped, tag = 'internal scratch']
  %s0 = inlined_call_operand.vmem [shape: f32[2,16,32], index: 0, kind: input, shape index: {}]
  %s1 = inlined_call_operand.vmem [shape: f32[2,16,32], index: 1, kind: input, shape index: {}]
  %s2 = inlined_call_operand.vmem [shape: f32[2,16,32], index: 2, kind: input, shape index: {}]
  %s3 = inlined_call_operand.vmem [shape: bf16[2,96,8], index: 3, kind: input, shape index: {}]
  %s4 = inlined_call_operand.vmem [shape: f32[2,1,8], index: 4, kind: input, shape index: {}]
  %s5 = inlined_call_operand.vmem [shape: bf16[2,128,8], index: 5, kind: input, shape index: {}]
  %s6 = inlined_call_operand.vmem [shape: f32[2,1,8], index: 6, kind: input, shape index: {}]
  %s7 = inlined_call_operand.vmem [shape: bf16[2,160,8], index: 7, kind: input, shape index: {}]
  %s8 = inlined_call_operand.vmem [shape: f32[2,1,8], index: 8, kind: input, shape index: {}]
  %s9 = inlined_call_operand.vmem [shape: f32[2,1,24], index: 9, kind: input, shape index: {}]
  %s10 = inlined_call_operand.vmem [shape: f32[24,4], index: 10, kind: input, shape index: {}]
  %s11 = inlined_call_operand.vmem [shape: f32[1,4], index: 11, kind: input, shape index: {}]
  %s12 = inlined_call_operand.hbm [shape: f32[2,4], index: 12, kind: output, shape index: {}]
  %s13 = sld [smem:[#allocation0]]
  $region58: #{tpu_custom_call.1} parent=0
    _
  %s15 = ssub.s32 1, %s13
  %s16 = scalar_select 0, %s15, %s13
  $region1: #{tpu_custom_call.1} parent=0
    #allocation2 [shape = 'u8[1024]{0}', space=vmem, size = 0x400, scoped, tag = 'output window, operand 0, single buffered']
    #allocation3 [shape = 's32[1]{0}', space=sflag, size = 0x4, scoped, tag = 'scoped memory for tpu_custom_call.1']
    %17 = vsyncpa [#allocation3], 0
    // Predicated region
    $region2: #{tpu_custom_call.1} parent=1 // pred_check
      _
    $region3: #{tpu_custom_call.1} parent=1 // pred_check_branch
      %19 = sbr.rel (0) target = $region5
    $region4: #{tpu_custom_call.1} parent=1 // pred_region
      _
    $region5: #{tpu_custom_call.1} parent=1 // pred_fallthru
      _
    // Predicated region
    $region6: #{tpu_custom_call.1} parent=1 // pred_check
      _
    $region7: #{tpu_custom_call.1} parent=1 // pred_check_branch
      %21 = sbr.rel (0) target = $region9
    $region8: #{tpu_custom_call.1} parent=1 // pred_region
      _
    $region9: #{tpu_custom_call.1} parent=1 // pred_fallthru
      _
    // Predicated region
    $region10: #{tpu_custom_call.1} parent=1 // pred_check
      _
    $region11: #{tpu_custom_call.1} parent=1 // pred_check_branch
      %23 = sbr.rel (0) target = $region13
    $region12: #{tpu_custom_call.1} parent=1 // pred_region
      _
    $region13: #{tpu_custom_call.1} parent=1 // pred_fallthru
      _
    // Predicated region
    $region14: #{tpu_custom_call.1} parent=1 // pred_check
      _
    $region15: #{tpu_custom_call.1} parent=1 // pred_check_branch
      %25 = sbr.rel (0) target = $region17
    $region16: #{tpu_custom_call.1} parent=1 // pred_region
      _
    $region17: #{tpu_custom_call.1} parent=1 // pred_fallthru
      _
    // Predicated region
    $region18: #{tpu_custom_call.1} parent=1 // pred_check
      _
    $region19: #{tpu_custom_call.1} parent=1 // pred_check_branch
      %27 = sbr.rel (0) target = $region21
    $region20: #{tpu_custom_call.1} parent=1 // pred_region
      _
    $region21: #{tpu_custom_call.1} parent=1 // pred_fallthru
      _
    // Predicated region
    $region22: #{tpu_custom_call.1} parent=1 // pred_check
      _
    $region23: #{tpu_custom_call.1} parent=1 // pred_check_branch
      %29 = sbr.rel (0) target = $region25
    $region24: #{tpu_custom_call.1} parent=1 // pred_region
      _
    $region25: #{tpu_custom_call.1} parent=1 // pred_fallthru
      _
    // Predicated region
    $region26: #{tpu_custom_call.1} parent=1 // pred_check
      _
    $region27: #{tpu_custom_call.1} parent=1 // pred_check_branch
      %31 = sbr.rel (0) target = $region29
    $region28: #{tpu_custom_call.1} parent=1 // pred_region
      _
    $region29: #{tpu_custom_call.1} parent=1 // pred_fallthru
      _
    // Predicated region
    $region30: #{tpu_custom_call.1} parent=1 // pred_check
      _
    $region31: #{tpu_custom_call.1} parent=1 // pred_check_branch
      %33 = sbr.rel (0) target = $region33
    $region32: #{tpu_custom_call.1} parent=1 // pred_region
      _
    $region33: #{tpu_custom_call.1} parent=1 // pred_fallthru
      _
    // Predicated region
    $region34: #{tpu_custom_call.1} parent=1 // pred_check
      _
    $region35: #{tpu_custom_call.1} parent=1 // pred_check_branch
      %35 = sbr.rel (0) target = $region37
    $region36: #{tpu_custom_call.1} parent=1 // pred_region
      _
    $region37: #{tpu_custom_call.1} parent=1 // pred_fallthru
      _
    // Predicated region
    $region38: #{tpu_custom_call.1} parent=1 // pred_check
      _
    $region39: #{tpu_custom_call.1} parent=1 // pred_check_branch
      %37 = sbr.rel (0) target = $region41
    $region40: #{tpu_custom_call.1} parent=1 // pred_region
      _
    $region41: #{tpu_custom_call.1} parent=1 // pred_fallthru
      _
    // Predicated region
    $region42: #{tpu_custom_call.1} parent=1 // pred_check
      _
    $region43: #{tpu_custom_call.1} parent=1 // pred_check_branch
      %39 = sbr.rel (0) target = $region45
    $region44: #{tpu_custom_call.1} parent=1 // pred_region
      _
    $region45: #{tpu_custom_call.1} parent=1 // pred_fallthru
      _
    // Predicated region
    $region46: #{tpu_custom_call.1} parent=1 // pred_check
      _
    $region47: #{tpu_custom_call.1} parent=1 // pred_check_branch
      %41 = sbr.rel (0) target = $region49
    $region48: #{tpu_custom_call.1} parent=1 // pred_region
      _
    $region49: #{tpu_custom_call.1} parent=1 // pred_fallthru
      _
    %v43 = vld [vmem:[%s0] sm:$0xff]
    %v44 = vld [vmem:[%s0 + $0x8] sm:$0xff]
    %v45 = vld [vmem:[%s0 + $0x10] sm:$0xff]
    %v46 = vld [vmem:[%s0 + $0x18] sm:$0xff]
    %v47 = vld [vmem:[%s1] sm:$0xff]
    %v48 = vld [vmem:[%s1 + $0x8] sm:$0xff]
    %v49 = vld [vmem:[%s2] sm:$0xff]
    %v50 = vld [vmem:[%s2 + $0x8] sm:$0xff]
    %v51 = vsub.f32 %v43, %v47
    %v52 = vsub.f32 %v44, %v48
    %v53 = vsub.f32 %v45, %v47
    %v54 = vsub.f32 %v46, %v48
    %v55 = vmul.f32 %v51, %v51
    %v56 = vmul.f32 %v52, %v52
    %v57 = vmul.f32 %v53, %v53
    %v58 = vmul.f32 %v54, %v54
    %v59 = vsub.f32 0.0, %v55
    %v60 = vsub.f32 0.0, %v56
    %v61 = vsub.f32 0.0, %v57
    %v62 = vsub.f32 0.0, %v58
    %v63 = vmul.f32 %v59, %v49
    %v64 = vmul.f32 %v60, %v50
    %v65 = vmul.f32 %v61, %v49
    %v66 = vmul.f32 %v62, %v50
    %v67 = vmul.f32 %v63, 1.442695
    %v68 = vpow.pop %v67
    %v69 = vmul.f32 %v64, 1.442695
    %v70 = vpow.pop %v69
    %v71 = vmul.f32 %v65, 1.442695
    %v72 = vpow.pop %v71
    %v73 = vmul.f32 %v66, 1.442695
    %v74 = vpow.pop %v73
    %vm79 = vcmask 1046528
    %v80 = vrot.slane %v68, 1
    %v81 = vrot.slane %v70, 1
    %v82 = vsel %vm79, %v80, %v81
    %v83 = vrot.slane %v72, 1
    %v84 = vrot.slane %v74, 1
    %v85 = vsel %vm79, %v83, %v84
    %86 = vrot.lane.b32.xlu0 %v82, 32
    %v87 = vpop.permute.xlu0 %86
    %88 = vrot.lane.b32.xlu0 %v81, 32
    %v89 = vpop.permute.xlu0 %88
    %90 = vrot.lane.b32.xlu0 %v85, 32
    %v91 = vpop.permute.xlu0 %90
    %92 = vrot.lane.b32.xlu0 %v84, 32
    %v93 = vpop.permute.xlu0 %92
    %vm98 = vcmask 1045504
    %v99 = vrot.slane %v68, 2
    %v100 = vrot.slane %v70, 2
    %v101 = vsel %vm98, %v99, %v100
    %v102 = vrot.slane %v72, 2
    %v103 = vrot.slane %v74, 2
    %v104 = vsel %vm98, %v102, %v103
    %105 = vrot.lane.b32.xlu0 %v101, 64
    %v106 = vpop.permute.xlu0 %105
    %107 = vrot.lane.b32.xlu0 %v100, 64
    %v108 = vpop.permute.xlu0 %107
    %109 = vrot.lane.b32.xlu0 %v104, 64
    %v110 = vpop.permute.xlu0 %109
    %111 = vrot.lane.b32.xlu0 %v103, 64
    %v112 = vpop.permute.xlu0 %111
    %vm117 = vcmask 261120
    %v118 = vsel %vm117, %v68, %v87
    %v119 = vsel %vm117, %v70, %v89
    %v120 = vsel %vm117, %v72, %v91
    %v121 = vsel %vm117, %v74, %v93
    %vm122 = vcmask 523264
    %v123 = vsel %vm122, %v118, %v106
    %v124 = vsel %vm122, %v119, %v108
    %v125 = vsel %vm122, %v120, %v110
    %v126 = vsel %vm122, %v121, %v112
    %v131 = vcombine.high %v123, %v123
    %v133 = vunpack.c.l.s4 1983009808
    %v134 = vunpack.c.0.s8 %v133
    %v135 = vlaneseq
    %v136 = vshrl.u32 %v135, 7
    %v137 = vsub.s32 %v134, %v136
    %v138 = vrot.slane %v123, %v137
    %v140 = vunpack.c.l.s4 1983009808
    %v141 = vunpack.c.0.s8 %v140
    %v142 = vlaneseq
    %v143 = vshrl.u32 %v142, 7
    %v144 = vsub.s32 %v141, %v143
    %v145 = vrot.slane %v131, %v144
    %v146 = vcombine.high %v138, %v138
    %v147 = vcombine.high %v145, %v145
    %v148 = vcombine.high %v124, %v124
    %v150 = vunpack.c.l.s4 1983009808
    %v151 = vunpack.c.0.s8 %v150
    %v152 = vlaneseq
    %v153 = vshrl.u32 %v152, 7
    %v154 = vsub.s32 %v151, %v153
    %v155 = vrot.slane %v124, %v154
    %v157 = vunpack.c.l.s4 1983009808
    %v158 = vunpack.c.0.s8 %v157
    %v159 = vlaneseq
    %v160 = vshrl.u32 %v159, 7
    %v161 = vsub.s32 %v158, %v160
    %v162 = vrot.slane %v148, %v161
    %v163 = vcombine.high %v155, %v155
    %v164 = vcombine.high %v125, %v125
    %v166 = vunpack.c.l.s4 1983009808
    %v167 = vunpack.c.0.s8 %v166
    %v168 = vlaneseq
    %v169 = vshrl.u32 %v168, 7
    %v170 = vsub.s32 %v167, %v169
    %v171 = vrot.slane %v125, %v170
    %v173 = vunpack.c.l.s4 1983009808
    %v174 = vunpack.c.0.s8 %v173
    %v175 = vlaneseq
    %v176 = vshrl.u32 %v175, 7
    %v177 = vsub.s32 %v174, %v176
    %v178 = vrot.slane %v164, %v177
    %v179 = vcombine.high %v171, %v171
    %v180 = vcombine.high %v178, %v178
    %v181 = vcombine.high %v126, %v126
    %v183 = vunpack.c.l.s4 1983009808
    %v184 = vunpack.c.0.s8 %v183
    %v185 = vlaneseq
    %v186 = vshrl.u32 %v185, 7
    %v187 = vsub.s32 %v184, %v186
    %v188 = vrot.slane %v126, %v187
    %v190 = vunpack.c.l.s4 1983009808
    %v191 = vunpack.c.0.s8 %v190
    %v192 = vlaneseq
    %v193 = vshrl.u32 %v192, 7
    %v194 = vsub.s32 %v191, %v193
    %v195 = vrot.slane %v181, %v194
    %v196 = vcombine.high %v188, %v188
    %v197 = vcombine.low %v138, %v146
    %v198 = vcombine.low %v145, %v147
    %v200 = vunpack.c.l.s4 1983009808
    %v201 = vunpack.c.0.s8 %v200
    %v202 = vlaneseq
    %v203 = vshrl.u32 %v202, 7
    %v204 = vsub.s32 %v201, %v203
    %v205 = vrot.slane %v197, %v204
    %v207 = vunpack.c.l.s4 1983009808
    %v208 = vunpack.c.0.s8 %v207
    %v209 = vlaneseq
    %v210 = vshrl.u32 %v209, 7
    %v211 = vsub.s32 %v208, %v210
    %v212 = vrot.slane %v198, %v211
    %v213 = vcombine.low %v205, %v212
    %v214 = vcombine.low %v155, %v163
    %v215 = vcombine.low %v162, %v171
    %v217 = vunpack.c.l.s4 1983009808
    %v218 = vunpack.c.0.s8 %v217
    %v219 = vlaneseq
    %v220 = vshrl.u32 %v219, 7
    %v221 = vsub.s32 %v218, %v220
    %v222 = vrot.slane %v214, %v221
    %v224 = vunpack.c.l.s4 1983009808
    %v225 = vunpack.c.0.s8 %v224
    %v226 = vlaneseq
    %v227 = vshrl.u32 %v226, 7
    %v228 = vsub.s32 %v225, %v227
    %v229 = vrot.slane %v215, %v228
    %v230 = vcombine.low %v222, %v229
    %v231 = vcombine.low %v179, %v178
    %v232 = vcombine.low %v180, %v188
    %v234 = vunpack.c.l.s4 1983009808
    %v235 = vunpack.c.0.s8 %v234
    %v236 = vlaneseq
    %v237 = vshrl.u32 %v236, 7
    %v238 = vsub.s32 %v235, %v237
    %v239 = vrot.slane %v231, %v238
    %v241 = vunpack.c.l.s4 1983009808
    %v242 = vunpack.c.0.s8 %v241
    %v243 = vlaneseq
    %v244 = vshrl.u32 %v243, 7
    %v245 = vsub.s32 %v242, %v244
    %v246 = vrot.slane %v232, %v245
    %v247 = vcombine.low %v239, %v246
    %v248 = vcombine.low %v196, %v195
    %v250 = vunpack.c.l.s4 1983009808
    %v251 = vunpack.c.0.s8 %v250
    %v252 = vlaneseq
    %v253 = vshrl.u32 %v252, 7
    %v254 = vsub.s32 %v251, %v253
    %v255 = vrot.slane %v248, %v254
    %v260 = vpack.c.bf16 %v230, %v213
    %v261 = vpack.c.bf16 %v255, %v247
    %v262 = vld [vmem:[%s3] sm:$0xf]
    %v263 = vld [vmem:[%s3 + $0x4] sm:$0xf]
    %v264 = vld [vmem:[%s3 + $0x8] sm:$0xf]
    %v265 = vld [vmem:[%s3 + $0xc] sm:$0xf]
    %v266 = vld [vmem:[%s3 + $0x10] sm:$0xf]
    %v267 = vld [vmem:[%s3 + $0x14] sm:$0xf]
    %v268 = vld [vmem:[%s3 + $0x18] sm:$0xf]
    %v269 = vld [vmem:[%s3 + $0x1c] sm:$0xf]
    %v270 = vld [vmem:[%s3 + $0x20] sm:$0xf]
    %v271 = vld [vmem:[%s3 + $0x24] sm:$0xf]
    %v272 = vld [vmem:[%s3 + $0x28] sm:$0xf]
    %v273 = vld [vmem:[%s3 + $0x2c] sm:$0xf]
    %v286 = vunpack.c.l.b16 %v262
    %v287 = vunpack.c.l.b16 %v263
    %v288 = vunpack.c.l.b16 %v264
    %v289 = vunpack.c.l.b16 %v265
    %v290 = vunpack.c.l.b16 %v266
    %v291 = vunpack.c.l.b16 %v267
    %v292 = vunpack.c.l.b16 %v268
    %v293 = vunpack.c.l.b16 %v269
    %v294 = vunpack.c.l.b16 %v270
    %v295 = vunpack.c.l.b16 %v271
    %v296 = vunpack.c.l.b16 %v272
    %v297 = vunpack.c.l.b16 %v273
    %v298 = vpack.c.b16 %v287, %v286
    %v299 = vpack.c.b16 %v289, %v288
    %v300 = vpack.c.b16 %v291, %v290
    %v301 = vpack.c.b16 %v293, %v292
    %v302 = vpack.c.b16 %v295, %v294
    %v303 = vpack.c.b16 %v297, %v296
    %vm310 = vcmask 785408
    %v312 = vsel %vm310, %v260, 0
    %v315 = vsel %vm310, %v261, 0
    %317 = vmatprep.subr.bf16.mxu0 0
    %318 = vmatpush1.bf16.msra.mxu0 %v298
    %319 = vmatprep.subr.bf16.mxu0 0
    %320 = vmatpush1.bf16.msra.mxu0 %v299
    %321 = vmatprep.subr.bf16.mxu0 0
    %322 = vmatpush1.bf16.msra.mxu0 %v300
    %323 = vmatprep.subr.bf16.mxu0 0
    %324 = vmatpush1.bf16.msra.mxu0 %v301
    %325 = vmatprep.subr.bf16.mxu0 0
    %326 = vmatpush1.bf16.msra.mxu0 %v302
    %327 = vmatprep.subr.bf16.mxu0 0
    %328 = vmatpush1.bf16.msra.mxu0 %v303
    %329 = vmatprep.subr.bf16.mxu0 0
    %330 = vmatpush1.bf16.msra.mxu0 0
    %331 = vmatprep.subr.bf16.mxu0 0
    %332 = vmatpush1.bf16.msra.mxu0 0
    %333 = vmatprep.subr.bf16.mxu0 0
    %334 = vmatpush1.bf16.msra.mxu0 0
    %335 = vmatprep.subr.bf16.mxu0 0
    %336 = vmatpush1.bf16.msra.mxu0 0
    %337 = vmatprep.subr.bf16.mxu0 0
    %338 = vmatpush1.bf16.msra.mxu0 0
    %339 = vmatprep.subr.bf16.mxu0 0
    %340 = vmatpush1.bf16.msra.mxu0 0
    %341 = vmatprep.subr.bf16.mxu0 0
    %342 = vmatpush1.bf16.msra.mxu0 0
    %343 = vmatprep.subr.bf16.mxu0 0
    %344 = vmatpush1.bf16.msra.mxu0 0
    %345 = vmatprep.subr.bf16.mxu0 0
    %346 = vmatpush1.bf16.msra.mxu0 0
    %347 = vmatprep.subr.bf16.mxu0 0
    %348 = vmatpush1.bf16.msra.mxu0 0
    %349 = vmatprep.mubr.bf16.mxu0 0
    %350 = vmatmul.mubr.bf16.gmra.mrb[0].mxu0 %v312
    %v351 = vpop.f32.mrb[0].mxu0
    %v352 = vadd.f32 0.0, %v351
    %v353 = vpop.f32.mrb[0].mxu0
    %v354 = vpop.f32.mrb[0].mxu0
    %v355 = vadd.f32 0.0, %v354
    %v356 = vpop.f32.mrb[0].mxu0
    %357 = vmatprep.mubr.bf16.mxu0 0
    %358 = vmatmul.mubr.bf16.gmra.mrb[0].mxu0 %v315
    %v359 = vpop.f32.mrb[0].mxu0
    %v360 = vadd.f32 0.0, %v359
    %v361 = vpop.f32.mrb[0].mxu0
    %v362 = vpop.f32.mrb[0].mxu0
    %v363 = vadd.f32 0.0, %v362
    %v364 = vpop.f32.mrb[0].mxu0
    %365 = vdwg.mxu0
    %v370 = vcombine.high %v352, %v352
    %v372 = vunpack.c.l.s4 1983009808
    %v373 = vunpack.c.0.s8 %v372
    %v374 = vlaneseq
    %v375 = vshrl.u32 %v374, 7
    %v376 = vsub.s32 %v373, %v375
    %v377 = vrot.slane %v352, %v376
    %v379 = vunpack.c.l.s4 1983009808
    %v380 = vunpack.c.0.s8 %v379
    %v381 = vlaneseq
    %v382 = vshrl.u32 %v381, 7
    %v383 = vsub.s32 %v380, %v382
    %v384 = vrot.slane %v370, %v383
    %v385 = vcombine.high %v377, %v377
    %v386 = vcombine.high %v384, %v384
    %v387 = vcombine.high %v355, %v355
    %v389 = vunpack.c.l.s4 1983009808
    %v390 = vunpack.c.0.s8 %v389
    %v391 = vlaneseq
    %v392 = vshrl.u32 %v391, 7
    %v393 = vsub.s32 %v390, %v392
    %v394 = vrot.slane %v355, %v393
    %v396 = vunpack.c.l.s4 1983009808
    %v397 = vunpack.c.0.s8 %v396
    %v398 = vlaneseq
    %v399 = vshrl.u32 %v398, 7
    %v400 = vsub.s32 %v397, %v399
    %v401 = vrot.slane %v387, %v400
    %v402 = vcombine.high %v394, %v394
    %v403 = vcombine.high %v401, %v401
    %v404 = vcombine.high %v360, %v360
    %v406 = vunpack.c.l.s4 1983009808
    %v407 = vunpack.c.0.s8 %v406
    %v408 = vlaneseq
    %v409 = vshrl.u32 %v408, 7
    %v410 = vsub.s32 %v407, %v409
    %v411 = vrot.slane %v360, %v410
    %v413 = vunpack.c.l.s4 1983009808
    %v414 = vunpack.c.0.s8 %v413
    %v415 = vlaneseq
    %v416 = vshrl.u32 %v415, 7
    %v417 = vsub.s32 %v414, %v416
    %v418 = vrot.slane %v404, %v417
    %v419 = vcombine.high %v411, %v411
    %v420 = vcombine.high %v418, %v418
    %v422 = vunpack.c.l.s4 1983009808
    %v423 = vunpack.c.0.s8 %v422
    %v424 = vlaneseq
    %v425 = vshrl.u32 %v424, 7
    %v426 = vsub.s32 %v423, %v425
    %v427 = vrot.slane %v363, %v426
    %v428 = vcombine.high %v427, %v427
    %v443 = vld [vmem:[%s4] sm:$0x1]
    %v445 = vlaneseq
    %v446 = vshrl.u32 %v445, 7
    %v447 = vsub.s32 0, %v446
    %v448 = vrot.slane %v443, %v447
    %v449 = vcombine.high %v448, %v448
    %v451 = vunpack.c.l.s4 1983009808
    %v452 = vunpack.c.0.s8 %v451
    %v453 = vlaneseq
    %v454 = vshrl.u32 %v453, 7
    %v455 = vsub.s32 %v452, %v454
    %v456 = vrot.slane %v448, %v455
    %v458 = vunpack.c.l.s4 1983009808
    %v459 = vunpack.c.0.s8 %v458
    %v460 = vlaneseq
    %v461 = vshrl.u32 %v460, 7
    %v462 = vsub.s32 %v459, %v461
    %v463 = vrot.slane %v449, %v462
    %v464 = vcombine.high %v456, %v456
    %v465 = vcombine.high %v463, %v463
    %v470 = vadd.f32 %v377, %v456
    %v471 = vadd.f32 %v385, %v464
    %v472 = vadd.f32 %v384, %v463
    %v473 = vadd.f32 %v386, %v465
    %v474 = vadd.f32 %v394, %v456
    %v475 = vadd.f32 %v402, %v464
    %v476 = vadd.f32 %v401, %v463
    %v477 = vadd.f32 %v403, %v456
    %v478 = vadd.f32 %v411, %v464
    %v479 = vadd.f32 %v419, %v463
    %v480 = vadd.f32 %v418, %v465
    %v481 = vadd.f32 %v420, %v456
    %v482 = vadd.f32 %v427, %v464
    %v483 = vadd.f32 %v428, %v463
    %v484 = vmax.f32 %v470, 0.0
    %v485 = vmax.f32 %v471, 0.0
    %v486 = vmax.f32 %v472, 0.0
    %v487 = vmax.f32 %v473, 0.0
    %v488 = vmax.f32 %v474, 0.0
    %v489 = vmax.f32 %v475, 0.0
    %v490 = vmax.f32 %v476, 0.0
    %v491 = vmax.f32 %v477, 0.0
    %v492 = vmax.f32 %v478, 0.0
    %v493 = vmax.f32 %v479, 0.0
    %v494 = vmax.f32 %v480, 0.0
    %v495 = vmax.f32 %v481, 0.0
    %v496 = vmax.f32 %v482, 0.0
    %v497 = vmax.f32 %v483, 0.0
    %v512 = vcombine.low %v484, %v485
    %v513 = vcombine.low %v486, %v487
    %v515 = vunpack.c.l.s4 1983009808
    %v516 = vunpack.c.0.s8 %v515
    %v517 = vlaneseq
    %v518 = vshrl.u32 %v517, 7
    %v519 = vsub.s32 %v516, %v518
    %v520 = vrot.slane %v512, %v519
    %v522 = vunpack.c.l.s4 1983009808
    %v523 = vunpack.c.0.s8 %v522
    %v524 = vlaneseq
    %v525 = vshrl.u32 %v524, 7
    %v526 = vsub.s32 %v523, %v525
    %v527 = vrot.slane %v513, %v526
    %v528 = vcombine.low %v520, %v527
    %v529 = vcombine.low %v488, %v489
    %v531 = vunpack.c.l.s4 1983009808
    %v532 = vunpack.c.0.s8 %v531
    %v533 = vlaneseq
    %v534 = vshrl.u32 %v533, 7
    %v535 = vsub.s32 %v532, %v534
    %v536 = vrot.slane %v529, %v535
    %v538 = vunpack.c.l.s4 1983009808
    %v539 = vunpack.c.0.s8 %v538
    %v540 = vlaneseq
    %v541 = vshrl.u32 %v540, 7
    %v542 = vsub.s32 %v539, %v541
    %v543 = vrot.slane %v490, %v542
    %v544 = vcombine.low %v536, %v543
    %v545 = vcombine.low %v491, %v492
    %v546 = vcombine.low %v493, %v494
    %v548 = vunpack.c.l.s4 1983009808
    %v549 = vunpack.c.0.s8 %v548
    %v550 = vlaneseq
    %v551 = vshrl.u32 %v550, 7
    %v552 = vsub.s32 %v549, %v551
    %v553 = vrot.slane %v545, %v552
    %v555 = vunpack.c.l.s4 1983009808
    %v556 = vunpack.c.0.s8 %v555
    %v557 = vlaneseq
    %v558 = vshrl.u32 %v557, 7
    %v559 = vsub.s32 %v556, %v558
    %v560 = vrot.slane %v546, %v559
    %v561 = vcombine.low %v553, %v560
    %v562 = vcombine.low %v495, %v496
    %v564 = vunpack.c.l.s4 1983009808
    %v565 = vunpack.c.0.s8 %v564
    %v566 = vlaneseq
    %v567 = vshrl.u32 %v566, 7
    %v568 = vsub.s32 %v565, %v567
    %v569 = vrot.slane %v562, %v568
    %v571 = vunpack.c.l.s4 1983009808
    %v572 = vunpack.c.0.s8 %v571
    %v573 = vlaneseq
    %v574 = vshrl.u32 %v573, 7
    %v575 = vsub.s32 %v572, %v574
    %v576 = vrot.slane %v497, %v575
    %v577 = vcombine.low %v569, %v576
    %vm582 = vcmask 64512
    %v583 = vsel %vm582, %v528, -inf
    %vm584 = vcmask 62464
    %v585 = vsel %vm584, %v544, -inf
    %v586 = vmax.f32 %v583, %v585
    %v587 = vrot.slane %v586, 4
    %v588 = vmax.f32 %v586, %v587
    %v589 = vrot.slane %v588, 2
    %v590 = vmax.f32 %v588, %v589
    %v591 = vrot.slane %v590, 1
    %v592 = vmax.f32 %v590, %v591
    %v593 = vsel %vm582, %v561, -inf
    %v594 = vsel %vm584, %v577, -inf
    %v595 = vmax.f32 %v593, %v594
    %v596 = vrot.slane %v595, 4
    %v597 = vmax.f32 %v595, %v596
    %v598 = vrot.slane %v597, 2
    %v599 = vmax.f32 %v597, %v598
    %v600 = vrot.slane %v599, 1
    %v601 = vmax.f32 %v599, %v600
    %vm602 = vcmask 1044480
    %v603 = vrot.slane %v68, 3
    %v604 = vrot.slane %v70, 3
    %v605 = vsel %vm602, %v603, %v604
    %v606 = vrot.slane %v72, 3
    %v607 = vrot.slane %v74, 3
    %v608 = vsel %vm602, %v606, %v607
    %609 = vrot.lane.b32.xlu0 %v605, 96
    %v610 = vpop.permute.xlu0 %609
    %611 = vrot.lane.b32.xlu0 %v604, 96
    %v612 = vpop.permute.xlu0 %611
    %613 = vrot.lane.b32.xlu0 %v608, 96
    %v614 = vpop.permute.xlu0 %613
    %615 = vrot.lane.b32.xlu0 %v607, 96
    %v616 = vpop.permute.xlu0 %615
    %v621 = vsel %vm310, %v123, %v610
    %v622 = vsel %vm310, %v124, %v612
    %v623 = vsel %vm310, %v125, %v614
    %v624 = vsel %vm310, %v126, %v616
    %v629 = vcombine.high %v621, %v621
    %v631 = vunpack.c.l.s4 1966171168
    %v632 = vunpack.c.0.s8 %v631
    %v633 = vlaneseq
    %v634 = vshrl.u32 %v633, 7
    %v635 = vsub.s32 %v632, %v634
    %v636 = vrot.slane %v621, %v635
    %v638 = vunpack.c.l.s4 1966171168
    %v639 = vunpack.c.0.s8 %v638
    %v640 = vlaneseq
    %v641 = vshrl.u32 %v640, 7
    %v642 = vsub.s32 %v639, %v641
    %v643 = vrot.slane %v629, %v642
    %v644 = vcombine.high %v636, %v636
    %v645 = vcombine.high %v643, %v643
    %v647 = vunpack.c.l.s4 1966171168
    %v648 = vunpack.c.0.s8 %v647
    %v649 = vlaneseq
    %v650 = vshrl.u32 %v649, 7
    %v651 = vsub.s32 %v648, %v650
    %v652 = vrot.slane %v636, %v651
    %v654 = vunpack.c.l.s4 1966171168
    %v655 = vunpack.c.0.s8 %v654
    %v656 = vlaneseq
    %v657 = vshrl.u32 %v656, 7
    %v658 = vsub.s32 %v655, %v657
    %v659 = vrot.slane %v643, %v658
    %v661 = vunpack.c.l.s4 1966171168
    %v662 = vunpack.c.0.s8 %v661
    %v663 = vlaneseq
    %v664 = vshrl.u32 %v663, 7
    %v665 = vsub.s32 %v662, %v664
    %v666 = vrot.slane %v644, %v665
    %v668 = vunpack.c.l.s4 1966171168
    %v669 = vunpack.c.0.s8 %v668
    %v670 = vlaneseq
    %v671 = vshrl.u32 %v670, 7
    %v672 = vsub.s32 %v669, %v671
    %v673 = vrot.slane %v645, %v672
    %v674 = vcombine.high %v652, %v652
    %v675 = vcombine.high %v659, %v659
    %v676 = vcombine.high %v666, %v666
    %v677 = vcombine.high %v673, %v673
    %v678 = vcombine.high %v622, %v622
    %v680 = vunpack.c.l.s4 1966171168
    %v681 = vunpack.c.0.s8 %v680
    %v682 = vlaneseq
    %v683 = vshrl.u32 %v682, 7
    %v684 = vsub.s32 %v681, %v683
    %v685 = vrot.slane %v622, %v684
    %v687 = vunpack.c.l.s4 1966171168
    %v688 = vunpack.c.0.s8 %v687
    %v689 = vlaneseq
    %v690 = vshrl.u32 %v689, 7
    %v691 = vsub.s32 %v688, %v690
    %v692 = vrot.slane %v678, %v691
    %v693 = vcombine.high %v685, %v685
    %v695 = vunpack.c.l.s4 1966171168
    %v696 = vunpack.c.0.s8 %v695
    %v697 = vlaneseq
    %v698 = vshrl.u32 %v697, 7
    %v699 = vsub.s32 %v696, %v698
    %v700 = vrot.slane %v685, %v699
    %v702 = vunpack.c.l.s4 1966171168
    %v703 = vunpack.c.0.s8 %v702
    %v704 = vlaneseq
    %v705 = vshrl.u32 %v704, 7
    %v706 = vsub.s32 %v703, %v705
    %v707 = vrot.slane %v692, %v706
    %v709 = vunpack.c.l.s4 1966171168
    %v710 = vunpack.c.0.s8 %v709
    %v711 = vlaneseq
    %v712 = vshrl.u32 %v711, 7
    %v713 = vsub.s32 %v710, %v712
    %v714 = vrot.slane %v693, %v713
    %v715 = vcombine.high %v700, %v700
    %v716 = vcombine.high %v714, %v714
    %v717 = vcombine.high %v623, %v623
    %v719 = vunpack.c.l.s4 1966171168
    %v720 = vunpack.c.0.s8 %v719
    %v721 = vlaneseq
    %v722 = vshrl.u32 %v721, 7
    %v723 = vsub.s32 %v720, %v722
    %v724 = vrot.slane %v623, %v723
    %v726 = vunpack.c.l.s4 1966171168
    %v727 = vunpack.c.0.s8 %v726
    %v728 = vlaneseq
    %v729 = vshrl.u32 %v728, 7
    %v730 = vsub.s32 %v727, %v729
    %v731 = vrot.slane %v717, %v730
    %v732 = vcombine.high %v724, %v724
    %v733 = vcombine.high %v731, %v731
    %v735 = vunpack.c.l.s4 1966171168
    %v736 = vunpack.c.0.s8 %v735
    %v737 = vlaneseq
    %v738 = vshrl.u32 %v737, 7
    %v739 = vsub.s32 %v736, %v738
    %v740 = vrot.slane %v724, %v739
    %v742 = vunpack.c.l.s4 1966171168
    %v743 = vunpack.c.0.s8 %v742
    %v744 = vlaneseq
    %v745 = vshrl.u32 %v744, 7
    %v746 = vsub.s32 %v743, %v745
    %v747 = vrot.slane %v731, %v746
    %v749 = vunpack.c.l.s4 1966171168
    %v750 = vunpack.c.0.s8 %v749
    %v751 = vlaneseq
    %v752 = vshrl.u32 %v751, 7
    %v753 = vsub.s32 %v750, %v752
    %v754 = vrot.slane %v732, %v753
    %v756 = vunpack.c.l.s4 1966171168
    %v757 = vunpack.c.0.s8 %v756
    %v758 = vlaneseq
    %v759 = vshrl.u32 %v758, 7
    %v760 = vsub.s32 %v757, %v759
    %v761 = vrot.slane %v733, %v760
    %v762 = vcombine.high %v740, %v740
    %v763 = vcombine.high %v747, %v747
    %v764 = vcombine.high %v754, %v754
    %v765 = vcombine.high %v761, %v761
    %v766 = vcombine.high %v624, %v624
    %v768 = vunpack.c.l.s4 1966171168
    %v769 = vunpack.c.0.s8 %v768
    %v770 = vlaneseq
    %v771 = vshrl.u32 %v770, 7
    %v772 = vsub.s32 %v769, %v771
    %v773 = vrot.slane %v624, %v772
    %v775 = vunpack.c.l.s4 1966171168
    %v776 = vunpack.c.0.s8 %v775
    %v777 = vlaneseq
    %v778 = vshrl.u32 %v777, 7
    %v779 = vsub.s32 %v776, %v778
    %v780 = vrot.slane %v766, %v779
    %v781 = vcombine.high %v773, %v773
    %v783 = vunpack.c.l.s4 1966171168
    %v784 = vunpack.c.0.s8 %v783
    %v785 = vlaneseq
    %v786 = vshrl.u32 %v785, 7
    %v787 = vsub.s32 %v784, %v786
    %v788 = vrot.slane %v773, %v787
    %v790 = vunpack.c.l.s4 1966171168
    %v791 = vunpack.c.0.s8 %v790
    %v792 = vlaneseq
    %v793 = vshrl.u32 %v792, 7
    %v794 = vsub.s32 %v791, %v793
    %v795 = vrot.slane %v780, %v794
    %v797 = vunpack.c.l.s4 1966171168
    %v798 = vunpack.c.0.s8 %v797
    %v799 = vlaneseq
    %v800 = vshrl.u32 %v799, 7
    %v801 = vsub.s32 %v798, %v800
    %v802 = vrot.slane %v781, %v801
    %v803 = vcombine.high %v788, %v788
    %v804 = vcombine.high %v802, %v802
    %v805 = vcombine.low %v652, %v666
    %v806 = vcombine.low %v674, %v676
    %v807 = vcombine.low %v659, %v673
    %v808 = vcombine.low %v675, %v677
    %v810 = vunpack.c.l.s4 1966171168
    %v811 = vunpack.c.0.s8 %v810
    %v812 = vlaneseq
    %v813 = vshrl.u32 %v812, 7
    %v814 = vsub.s32 %v811, %v813
    %v815 = vrot.slane %v805, %v814
    %v817 = vunpack.c.l.s4 1966171168
    %v818 = vunpack.c.0.s8 %v817
    %v819 = vlaneseq
    %v820 = vshrl.u32 %v819, 7
    %v821 = vsub.s32 %v818, %v820
    %v822 = vrot.slane %v806, %v821
    %v824 = vunpack.c.l.s4 1966171168
    %v825 = vunpack.c.0.s8 %v824
    %v826 = vlaneseq
    %v827 = vshrl.u32 %v826, 7
    %v828 = vsub.s32 %v825, %v827
    %v829 = vrot.slane %v807, %v828
    %v831 = vunpack.c.l.s4 1966171168
    %v832 = vunpack.c.0.s8 %v831
    %v833 = vlaneseq
    %v834 = vshrl.u32 %v833, 7
    %v835 = vsub.s32 %v832, %v834
    %v836 = vrot.slane %v808, %v835
    %v837 = vcombine.low %v815, %v822
    %v838 = vcombine.low %v829, %v836
    %v840 = vunpack.c.l.s4 1966171168
    %v841 = vunpack.c.0.s8 %v840
    %v842 = vlaneseq
    %v843 = vshrl.u32 %v842, 7
    %v844 = vsub.s32 %v841, %v843
    %v845 = vrot.slane %v837, %v844
    %v847 = vunpack.c.l.s4 1966171168
    %v848 = vunpack.c.0.s8 %v847
    %v849 = vlaneseq
    %v850 = vshrl.u32 %v849, 7
    %v851 = vsub.s32 %v848, %v850
    %v852 = vrot.slane %v838, %v851
    %v853 = vcombine.low %v845, %v852
    %v854 = vcombine.low %v700, %v714
    %v855 = vcombine.low %v715, %v716
    %v856 = vcombine.low %v707, %v740
    %v857 = vcombine.low %v754, %v762
    %v859 = vunpack.c.l.s4 1966171168
    %v860 = vunpack.c.0.s8 %v859
    %v861 = vlaneseq
    %v862 = vshrl.u32 %v861, 7
    %v863 = vsub.s32 %v860, %v862
    %v864 = vrot.slane %v854, %v863
    %v866 = vunpack.c.l.s4 1966171168
    %v867 = vunpack.c.0.s8 %v866
    %v868 = vlaneseq
    %v869 = vshrl.u32 %v868, 7
    %v870 = vsub.s32 %v867, %v869
    %v871 = vrot.slane %v855, %v870
    %v873 = vunpack.c.l.s4 1966171168
    %v874 = vunpack.c.0.s8 %v873
    %v875 = vlaneseq
    %v876 = vshrl.u32 %v875, 7
    %v877 = vsub.s32 %v874, %v876
    %v878 = vrot.slane %v856, %v877
    %v880 = vunpack.c.l.s4 1966171168
    %v881 = vunpack.c.0.s8 %v880
    %v882 = vlaneseq
    %v883 = vshrl.u32 %v882, 7
    %v884 = vsub.s32 %v881, %v883
    %v885 = vrot.slane %v857, %v884
    %v886 = vcombine.low %v864, %v871
    %v887 = vcombine.low %v878, %v885
    %v889 = vunpack.c.l.s4 1966171168
    %v890 = vunpack.c.0.s8 %v889
    %v891 = vlaneseq
    %v892 = vshrl.u32 %v891, 7
    %v893 = vsub.s32 %v890, %v892
    %v894 = vrot.slane %v886, %v893
    %v896 = vunpack.c.l.s4 1966171168
    %v897 = vunpack.c.0.s8 %v896
    %v898 = vlaneseq
    %v899 = vshrl.u32 %v898, 7
    %v900 = vsub.s32 %v897, %v899
    %v901 = vrot.slane %v887, %v900
    %v902 = vcombine.low %v894, %v901
    %v903 = vcombine.low %v764, %v747
    %v904 = vcombine.low %v761, %v763
    %v905 = vcombine.low %v765, %v788
    %v906 = vcombine.low %v802, %v803
    %v908 = vunpack.c.l.s4 1966171168
    %v909 = vunpack.c.0.s8 %v908
    %v910 = vlaneseq
    %v911 = vshrl.u32 %v910, 7
    %v912 = vsub.s32 %v909, %v911
    %v913 = vrot.slane %v903, %v912
    %v915 = vunpack.c.l.s4 1966171168
    %v916 = vunpack.c.0.s8 %v915
    %v917 = vlaneseq
    %v918 = vshrl.u32 %v917, 7
    %v919 = vsub.s32 %v916, %v918
    %v920 = vrot.slane %v904, %v919
    %v922 = vunpack.c.l.s4 1966171168
    %v923 = vunpack.c.0.s8 %v922
    %v924 = vlaneseq
    %v925 = vshrl.u32 %v924, 7
    %v926 = vsub.s32 %v923, %v925
    %v927 = vrot.slane %v905, %v926
    %v929 = vunpack.c.l.s4 1966171168
    %v930 = vunpack.c.0.s8 %v929
    %v931 = vlaneseq
    %v932 = vshrl.u32 %v931, 7
    %v933 = vsub.s32 %v930, %v932
    %v934 = vrot.slane %v906, %v933
    %v935 = vcombine.low %v913, %v920
    %v936 = vcombine.low %v927, %v934
    %v938 = vunpack.c.l.s4 1966171168
    %v939 = vunpack.c.0.s8 %v938
    %v940 = vlaneseq
    %v941 = vshrl.u32 %v940, 7
    %v942 = vsub.s32 %v939, %v941
    %v943 = vrot.slane %v935, %v942
    %v945 = vunpack.c.l.s4 1966171168
    %v946 = vunpack.c.0.s8 %v945
    %v947 = vlaneseq
    %v948 = vshrl.u32 %v947, 7
    %v949 = vsub.s32 %v946, %v948
    %v950 = vrot.slane %v936, %v949
    %v951 = vcombine.low %v943, %v950
    %v952 = vcombine.low %v804, %v795
    %v954 = vunpack.c.l.s4 1966171168
    %v955 = vunpack.c.0.s8 %v954
    %v956 = vlaneseq
    %v957 = vshrl.u32 %v956, 7
    %v958 = vsub.s32 %v955, %v957
    %v959 = vrot.slane %v952, %v958
    %v961 = vunpack.c.l.s4 1966171168
    %v962 = vunpack.c.0.s8 %v961
    %v963 = vlaneseq
    %v964 = vshrl.u32 %v963, 7
    %v965 = vsub.s32 %v962, %v964
    %v966 = vrot.slane %v959, %v965
    %v971 = vpack.c.bf16 %v902, %v853
    %v972 = vpack.c.bf16 %v966, %v951
    %v973 = vld [vmem:[%s5] sm:$0xf]
    %v974 = vld [vmem:[%s5 + $0x4] sm:$0xf]
    %v975 = vld [vmem:[%s5 + $0x8] sm:$0xf]
    %v976 = vld [vmem:[%s5 + $0xc] sm:$0xf]
    %v977 = vld [vmem:[%s5 + $0x10] sm:$0xf]
    %v978 = vld [vmem:[%s5 + $0x14] sm:$0xf]
    %v979 = vld [vmem:[%s5 + $0x18] sm:$0xf]
    %v980 = vld [vmem:[%s5 + $0x1c] sm:$0xf]
    %v981 = vld [vmem:[%s5 + $0x20] sm:$0xf]
    %v982 = vld [vmem:[%s5 + $0x24] sm:$0xf]
    %v983 = vld [vmem:[%s5 + $0x28] sm:$0xf]
    %v984 = vld [vmem:[%s5 + $0x2c] sm:$0xf]
    %v985 = vld [vmem:[%s5 + $0x30] sm:$0xf]
    %v986 = vld [vmem:[%s5 + $0x34] sm:$0xf]
    %v987 = vld [vmem:[%s5 + $0x38] sm:$0xf]
    %v988 = vld [vmem:[%s5 + $0x3c] sm:$0xf]
    %v1005 = vunpack.c.l.b16 %v973
    %v1006 = vunpack.c.l.b16 %v974
    %v1007 = vunpack.c.l.b16 %v975
    %v1008 = vunpack.c.l.b16 %v976
    %v1009 = vunpack.c.l.b16 %v977
    %v1010 = vunpack.c.l.b16 %v978
    %v1011 = vunpack.c.l.b16 %v979
    %v1012 = vunpack.c.l.b16 %v980
    %v1013 = vunpack.c.l.b16 %v981
    %v1014 = vunpack.c.l.b16 %v982
    %v1015 = vunpack.c.l.b16 %v983
    %v1016 = vunpack.c.l.b16 %v984
    %v1017 = vunpack.c.l.b16 %v985
    %v1018 = vunpack.c.l.b16 %v986
    %v1019 = vunpack.c.l.b16 %v987
    %v1020 = vunpack.c.l.b16 %v988
    %v1021 = vpack.c.b16 %v1006, %v1005
    %v1022 = vpack.c.b16 %v1008, %v1007
    %v1023 = vpack.c.b16 %v1010, %v1009
    %v1024 = vpack.c.b16 %v1012, %v1011
    %v1025 = vpack.c.b16 %v1014, %v1013
    %v1026 = vpack.c.b16 %v1016, %v1015
    %v1027 = vpack.c.b16 %v1018, %v1017
    %v1028 = vpack.c.b16 %v1020, %v1019
    %1037 = vmatprep.subr.bf16.mxu0 0
    %1038 = vmatpush1.bf16.msra.mxu0 %v1021
    %1039 = vmatprep.subr.bf16.mxu0 0
    %1040 = vmatpush1.bf16.msra.mxu0 %v1022
    %1041 = vmatprep.subr.bf16.mxu0 0
    %1042 = vmatpush1.bf16.msra.mxu0 %v1023
    %1043 = vmatprep.subr.bf16.mxu0 0
    %1044 = vmatpush1.bf16.msra.mxu0 %v1024
    %1045 = vmatprep.subr.bf16.mxu0 0
    %1046 = vmatpush1.bf16.msra.mxu0 %v1025
    %1047 = vmatprep.subr.bf16.mxu0 0
    %1048 = vmatpush1.bf16.msra.mxu0 %v1026
    %1049 = vmatprep.subr.bf16.mxu0 0
    %1050 = vmatpush1.bf16.msra.mxu0 %v1027
    %1051 = vmatprep.subr.bf16.mxu0 0
    %1052 = vmatpush1.bf16.msra.mxu0 %v1028
    %1053 = vmatprep.subr.bf16.mxu0 0
    %1054 = vmatpush1.bf16.msra.mxu0 0
    %1055 = vmatprep.subr.bf16.mxu0 0
    %1056 = vmatpush1.bf16.msra.mxu0 0
    %1057 = vmatprep.subr.bf16.mxu0 0
    %1058 = vmatpush1.bf16.msra.mxu0 0
    %1059 = vmatprep.subr.bf16.mxu0 0
    %1060 = vmatpush1.bf16.msra.mxu0 0
    %1061 = vmatprep.subr.bf16.mxu0 0
    %1062 = vmatpush1.bf16.msra.mxu0 0
    %1063 = vmatprep.subr.bf16.mxu0 0
    %1064 = vmatpush1.bf16.msra.mxu0 0
    %1065 = vmatprep.subr.bf16.mxu0 0
    %1066 = vmatpush1.bf16.msra.mxu0 0
    %1067 = vmatprep.subr.bf16.mxu0 0
    %1068 = vmatpush1.bf16.msra.mxu0 0
    %1069 = vmatprep.mubr.bf16.mxu0 0
    %1070 = vmatmul.mubr.bf16.gmra.mrb[0].mxu0 %v971
    %v1071 = vpop.f32.mrb[0].mxu0
    %v1072 = vadd.f32 0.0, %v1071
    %v1073 = vpop.f32.mrb[0].mxu0
    %v1074 = vpop.f32.mrb[0].mxu0
    %v1075 = vadd.f32 0.0, %v1074
    %v1076 = vpop.f32.mrb[0].mxu0
    %1077 = vmatprep.mubr.bf16.mxu0 0
    %1078 = vmatmul.mubr.bf16.gmra.mrb[0].mxu0 %v972
    %v1079 = vpop.f32.mrb[0].mxu0
    %v1080 = vadd.f32 0.0, %v1079
    %v1081 = vpop.f32.mrb[0].mxu0
    %v1082 = vpop.f32.mrb[0].mxu0
    %v1083 = vadd.f32 0.0, %v1082
    %v1084 = vpop.f32.mrb[0].mxu0
    %1085 = vdwg.mxu0
    %v1090 = vcombine.high %v1072, %v1072
    %v1092 = vunpack.c.l.s4 1966171168
    %v1093 = vunpack.c.0.s8 %v1092
    %v1094 = vlaneseq
    %v1095 = vshrl.u32 %v1094, 7
    %v1096 = vsub.s32 %v1093, %v1095
    %v1097 = vrot.slane %v1072, %v1096
    %v1099 = vunpack.c.l.s4 1966171168
    %v1100 = vunpack.c.0.s8 %v1099
    %v1101 = vlaneseq
    %v1102 = vshrl.u32 %v1101, 7
    %v1103 = vsub.s32 %v1100, %v1102
    %v1104 = vrot.slane %v1090, %v1103
    %v1105 = vcombine.high %v1097, %v1097
    %v1106 = vcombine.high %v1104, %v1104
    %v1108 = vunpack.c.l.s4 1966171168
    %v1109 = vunpack.c.0.s8 %v1108
    %v1110 = vlaneseq
    %v1111 = vshrl.u32 %v1110, 7
    %v1112 = vsub.s32 %v1109, %v1111
    %v1113 = vrot.slane %v1097, %v1112
    %v1115 = vunpack.c.l.s4 1966171168
    %v1116 = vunpack.c.0.s8 %v1115
    %v1117 = vlaneseq
    %v1118 = vshrl.u32 %v1117, 7
    %v1119 = vsub.s32 %v1116, %v1118
    %v1120 = vrot.slane %v1104, %v1119
    %v1122 = vunpack.c.l.s4 1966171168
    %v1123 = vunpack.c.0.s8 %v1122
    %v1124 = vlaneseq
    %v1125 = vshrl.u32 %v1124, 7
    %v1126 = vsub.s32 %v1123, %v1125
    %v1127 = vrot.slane %v1105, %v1126
    %v1129 = vunpack.c.l.s4 1966171168
    %v1130 = vunpack.c.0.s8 %v1129
    %v1131 = vlaneseq
    %v1132 = vshrl.u32 %v1131, 7
    %v1133 = vsub.s32 %v1130, %v1132
    %v1134 = vrot.slane %v1106, %v1133
    %v1135 = vcombine.high %v1113, %v1113
    %v1136 = vcombine.high %v1120, %v1120
    %v1137 = vcombine.high %v1127, %v1127
    %v1138 = vcombine.high %v1134, %v1134
    %v1139 = vcombine.high %v1075, %v1075
    %v1141 = vunpack.c.l.s4 1966171168
    %v1142 = vunpack.c.0.s8 %v1141
    %v1143 = vlaneseq
    %v1144 = vshrl.u32 %v1143, 7
    %v1145 = vsub.s32 %v1142, %v1144
    %v1146 = vrot.slane %v1075, %v1145
    %v1148 = vunpack.c.l.s4 1966171168
    %v1149 = vunpack.c.0.s8 %v1148
    %v1150 = vlaneseq
    %v1151 = vshrl.u32 %v1150, 7
    %v1152 = vsub.s32 %v1149, %v1151
    %v1153 = vrot.slane %v1139, %v1152
    %v1154 = vcombine.high %v1146, %v1146
    %v1155 = vcombine.high %v1153, %v1153
    %v1157 = vunpack.c.l.s4 1966171168
    %v1158 = vunpack.c.0.s8 %v1157
    %v1159 = vlaneseq
    %v1160 = vshrl.u32 %v1159, 7
    %v1161 = vsub.s32 %v1158, %v1160
    %v1162 = vrot.slane %v1146, %v1161
    %v1164 = vunpack.c.l.s4 1966171168
    %v1165 = vunpack.c.0.s8 %v1164
    %v1166 = vlaneseq
    %v1167 = vshrl.u32 %v1166, 7
    %v1168 = vsub.s32 %v1165, %v1167
    %v1169 = vrot.slane %v1153, %v1168
    %v1171 = vunpack.c.l.s4 1966171168
    %v1172 = vunpack.c.0.s8 %v1171
    %v1173 = vlaneseq
    %v1174 = vshrl.u32 %v1173, 7
    %v1175 = vsub.s32 %v1172, %v1174
    %v1176 = vrot.slane %v1154, %v1175
    %v1178 = vunpack.c.l.s4 1966171168
    %v1179 = vunpack.c.0.s8 %v1178
    %v1180 = vlaneseq
    %v1181 = vshrl.u32 %v1180, 7
    %v1182 = vsub.s32 %v1179, %v1181
    %v1183 = vrot.slane %v1155, %v1182
    %v1184 = vcombine.high %v1162, %v1162
    %v1185 = vcombine.high %v1169, %v1169
    %v1186 = vcombine.high %v1176, %v1176
    %v1187 = vcombine.high %v1183, %v1183
    %v1188 = vcombine.high %v1080, %v1080
    %v1190 = vunpack.c.l.s4 1966171168
    %v1191 = vunpack.c.0.s8 %v1190
    %v1192 = vlaneseq
    %v1193 = vshrl.u32 %v1192, 7
    %v1194 = vsub.s32 %v1191, %v1193
    %v1195 = vrot.slane %v1080, %v1194
    %v1197 = vunpack.c.l.s4 1966171168
    %v1198 = vunpack.c.0.s8 %v1197
    %v1199 = vlaneseq
    %v1200 = vshrl.u32 %v1199, 7
    %v1201 = vsub.s32 %v1198, %v1200
    %v1202 = vrot.slane %v1188, %v1201
    %v1203 = vcombine.high %v1195, %v1195
    %v1204 = vcombine.high %v1202, %v1202
    %v1206 = vunpack.c.l.s4 1966171168
    %v1207 = vunpack.c.0.s8 %v1206
    %v1208 = vlaneseq
    %v1209 = vshrl.u32 %v1208, 7
    %v1210 = vsub.s32 %v1207, %v1209
    %v1211 = vrot.slane %v1195, %v1210
    %v1213 = vunpack.c.l.s4 1966171168
    %v1214 = vunpack.c.0.s8 %v1213
    %v1215 = vlaneseq
    %v1216 = vshrl.u32 %v1215, 7
    %v1217 = vsub.s32 %v1214, %v1216
    %v1218 = vrot.slane %v1202, %v1217
    %v1220 = vunpack.c.l.s4 1966171168
    %v1221 = vunpack.c.0.s8 %v1220
    %v1222 = vlaneseq
    %v1223 = vshrl.u32 %v1222, 7
    %v1224 = vsub.s32 %v1221, %v1223
    %v1225 = vrot.slane %v1203, %v1224
    %v1227 = vunpack.c.l.s4 1966171168
    %v1228 = vunpack.c.0.s8 %v1227
    %v1229 = vlaneseq
    %v1230 = vshrl.u32 %v1229, 7
    %v1231 = vsub.s32 %v1228, %v1230
    %v1232 = vrot.slane %v1204, %v1231
    %v1233 = vcombine.high %v1211, %v1211
    %v1234 = vcombine.high %v1218, %v1218
    %v1235 = vcombine.high %v1225, %v1225
    %v1236 = vcombine.high %v1232, %v1232
    %v1238 = vunpack.c.l.s4 1966171168
    %v1239 = vunpack.c.0.s8 %v1238
    %v1240 = vlaneseq
    %v1241 = vshrl.u32 %v1240, 7
    %v1242 = vsub.s32 %v1239, %v1241
    %v1243 = vrot.slane %v1083, %v1242
    %v1244 = vcombine.high %v1243, %v1243
    %v1246 = vunpack.c.l.s4 1966171168
    %v1247 = vunpack.c.0.s8 %v1246
    %v1248 = vlaneseq
    %v1249 = vshrl.u32 %v1248, 7
    %v1250 = vsub.s32 %v1247, %v1249
    %v1251 = vrot.slane %v1243, %v1250
    %v1253 = vunpack.c.l.s4 1966171168
    %v1254 = vunpack.c.0.s8 %v1253
    %v1255 = vlaneseq
    %v1256 = vshrl.u32 %v1255, 7
    %v1257 = vsub.s32 %v1254, %v1256
    %v1258 = vrot.slane %v1244, %v1257
    %v1285 = vld [vmem:[%s6] sm:$0x1]
    %v1287 = vlaneseq
    %v1288 = vshrl.u32 %v1287, 7
    %v1289 = vsub.s32 0, %v1288
    %v1290 = vrot.slane %v1285, %v1289
    %v1291 = vcombine.high %v1290, %v1290
    %v1293 = vunpack.c.l.s4 1966171168
    %v1294 = vunpack.c.0.s8 %v1293
    %v1295 = vlaneseq
    %v1296 = vshrl.u32 %v1295, 7
    %v1297 = vsub.s32 %v1294, %v1296
    %v1298 = vrot.slane %v1290, %v1297
    %v1300 = vunpack.c.l.s4 1966171168
    %v1301 = vunpack.c.0.s8 %v1300
    %v1302 = vlaneseq
    %v1303 = vshrl.u32 %v1302, 7
    %v1304 = vsub.s32 %v1301, %v1303
    %v1305 = vrot.slane %v1291, %v1304
    %v1306 = vcombine.high %v1298, %v1298
    %v1307 = vcombine.high %v1305, %v1305
    %v1309 = vunpack.c.l.s4 1966171168
    %v1310 = vunpack.c.0.s8 %v1309
    %v1311 = vlaneseq
    %v1312 = vshrl.u32 %v1311, 7
    %v1313 = vsub.s32 %v1310, %v1312
    %v1314 = vrot.slane %v1298, %v1313
    %v1316 = vunpack.c.l.s4 1966171168
    %v1317 = vunpack.c.0.s8 %v1316
    %v1318 = vlaneseq
    %v1319 = vshrl.u32 %v1318, 7
    %v1320 = vsub.s32 %v1317, %v1319
    %v1321 = vrot.slane %v1305, %v1320
    %v1323 = vunpack.c.l.s4 1966171168
    %v1324 = vunpack.c.0.s8 %v1323
    %v1325 = vlaneseq
    %v1326 = vshrl.u32 %v1325, 7
    %v1327 = vsub.s32 %v1324, %v1326
    %v1328 = vrot.slane %v1306, %v1327
    %v1330 = vunpack.c.l.s4 1966171168
    %v1331 = vunpack.c.0.s8 %v1330
    %v1332 = vlaneseq
    %v1333 = vshrl.u32 %v1332, 7
    %v1334 = vsub.s32 %v1331, %v1333
    %v1335 = vrot.slane %v1307, %v1334
    %v1336 = vcombine.high %v1314, %v1314
    %v1337 = vcombine.high %v1321, %v1321
    %v1338 = vcombine.high %v1328, %v1328
    %v1339 = vcombine.high %v1335, %v1335
    %v1348 = vadd.f32 %v1113, %v1314
    %v1349 = vadd.f32 %v1127, %v1328
    %v1350 = vadd.f32 %v1135, %v1336
    %v1351 = vadd.f32 %v1137, %v1338
    %v1352 = vadd.f32 %v1120, %v1321
    %v1353 = vadd.f32 %v1134, %v1335
    %v1354 = vadd.f32 %v1136, %v1337
    %v1355 = vadd.f32 %v1138, %v1339
    %v1356 = vadd.f32 %v1162, %v1314
    %v1357 = vadd.f32 %v1176, %v1328
    %v1358 = vadd.f32 %v1184, %v1336
    %v1359 = vadd.f32 %v1186, %v1338
    %v1360 = vadd.f32 %v1169, %v1321
    %v1361 = vadd.f32 %v1183, %v1314
    %v1362 = vadd.f32 %v1185, %v1328
    %v1363 = vadd.f32 %v1187, %v1336
    %v1364 = vadd.f32 %v1211, %v1338
    %v1365 = vadd.f32 %v1225, %v1321
    %v1366 = vadd.f32 %v1233, %v1335
    %v1367 = vadd.f32 %v1235, %v1337
    %v1368 = vadd.f32 %v1218, %v1339
    %v1369 = vadd.f32 %v1232, %v1314
    %v1370 = vadd.f32 %v1234, %v1328
    %v1371 = vadd.f32 %v1236, %v1336
    %v1372 = vadd.f32 %v1251, %v1338
    %v1373 = vadd.f32 %v1258, %v1321
    %v1374 = vmax.f32 %v1348, 0.0
    %v1375 = vmax.f32 %v1349, 0.0
    %v1376 = vmax.f32 %v1350, 0.0
    %v1377 = vmax.f32 %v1351, 0.0
    %v1378 = vmax.f32 %v1352, 0.0
    %v1379 = vmax.f32 %v1353, 0.0
    %v1380 = vmax.f32 %v1354, 0.0
    %v1381 = vmax.f32 %v1355, 0.0
    %v1382 = vmax.f32 %v1356, 0.0
    %v1383 = vmax.f32 %v1357, 0.0
    %v1384 = vmax.f32 %v1358, 0.0
    %v1385 = vmax.f32 %v1359, 0.0
    %v1386 = vmax.f32 %v1360, 0.0
    %v1387 = vmax.f32 %v1361, 0.0
    %v1388 = vmax.f32 %v1362, 0.0
    %v1389 = vmax.f32 %v1363, 0.0
    %v1390 = vmax.f32 %v1364, 0.0
    %v1391 = vmax.f32 %v1365, 0.0
    %v1392 = vmax.f32 %v1366, 0.0
    %v1393 = vmax.f32 %v1367, 0.0
    %v1394 = vmax.f32 %v1368, 0.0
    %v1395 = vmax.f32 %v1369, 0.0
    %v1396 = vmax.f32 %v1370, 0.0
    %v1397 = vmax.f32 %v1371, 0.0
    %v1398 = vmax.f32 %v1372, 0.0
    %v1399 = vmax.f32 %v1373, 0.0
    %v1426 = vcombine.low %v1374, %v1375
    %v1427 = vcombine.low %v1376, %v1377
    %v1428 = vcombine.low %v1378, %v1379
    %v1429 = vcombine.low %v1380, %v1381
    %v1431 = vunpack.c.l.s4 1966171168
    %v1432 = vunpack.c.0.s8 %v1431
    %v1433 = vlaneseq
    %v1434 = vshrl.u32 %v1433, 7
    %v1435 = vsub.s32 %v1432, %v1434
    %v1436 = vrot.slane %v1426, %v1435
    %v1438 = vunpack.c.l.s4 1966171168
    %v1439 = vunpack.c.0.s8 %v1438
    %v1440 = vlaneseq
    %v1441 = vshrl.u32 %v1440, 7
    %v1442 = vsub.s32 %v1439, %v1441
    %v1443 = vrot.slane %v1427, %v1442
    %v1445 = vunpack.c.l.s4 1966171168
    %v1446 = vunpack.c.0.s8 %v1445
    %v1447 = vlaneseq
    %v1448 = vshrl.u32 %v1447, 7
    %v1449 = vsub.s32 %v1446, %v1448
    %v1450 = vrot.slane %v1428, %v1449
    %v1452 = vunpack.c.l.s4 1966171168
    %v1453 = vunpack.c.0.s8 %v1452
    %v1454 = vlaneseq
    %v1455 = vshrl.u32 %v1454, 7
    %v1456 = vsub.s32 %v1453, %v1455
    %v1457 = vrot.slane %v1429, %v1456
    %v1458 = vcombine.low %v1436, %v1443
    %v1459 = vcombine.low %v1450, %v1457
    %v1461 = vunpack.c.l.s4 1966171168
    %v1462 = vunpack.c.0.s8 %v1461
    %v1463 = vlaneseq
    %v1464 = vshrl.u32 %v1463, 7
    %v1465 = vsub.s32 %v1462, %v1464
    %v1466 = vrot.slane %v1458, %v1465
    %v1468 = vunpack.c.l.s4 1966171168
    %v1469 = vunpack.c.0.s8 %v1468
    %v1470 = vlaneseq
    %v1471 = vshrl.u32 %v1470, 7
    %v1472 = vsub.s32 %v1469, %v1471
    %v1473 = vrot.slane %v1459, %v1472
    %v1474 = vcombine.low %v1466, %v1473
    %v1475 = vcombine.low %v1382, %v1383
    %v1476 = vcombine.low %v1384, %v1385
    %v1478 = vunpack.c.l.s4 1966171168
    %v1479 = vunpack.c.0.s8 %v1478
    %v1480 = vlaneseq
    %v1481 = vshrl.u32 %v1480, 7
    %v1482 = vsub.s32 %v1479, %v1481
    %v1483 = vrot.slane %v1475, %v1482
    %v1485 = vunpack.c.l.s4 1966171168
    %v1486 = vunpack.c.0.s8 %v1485
    %v1487 = vlaneseq
    %v1488 = vshrl.u32 %v1487, 7
    %v1489 = vsub.s32 %v1486, %v1488
    %v1490 = vrot.slane %v1476, %v1489
    %v1492 = vunpack.c.l.s4 1966171168
    %v1493 = vunpack.c.0.s8 %v1492
    %v1494 = vlaneseq
    %v1495 = vshrl.u32 %v1494, 7
    %v1496 = vsub.s32 %v1493, %v1495
    %v1497 = vrot.slane %v1386, %v1496
    %v1498 = vcombine.low %v1483, %v1490
    %v1500 = vunpack.c.l.s4 1966171168
    %v1501 = vunpack.c.0.s8 %v1500
    %v1502 = vlaneseq
    %v1503 = vshrl.u32 %v1502, 7
    %v1504 = vsub.s32 %v1501, %v1503
    %v1505 = vrot.slane %v1498, %v1504
    %v1507 = vunpack.c.l.s4 1966171168
    %v1508 = vunpack.c.0.s8 %v1507
    %v1509 = vlaneseq
    %v1510 = vshrl.u32 %v1509, 7
    %v1511 = vsub.s32 %v1508, %v1510
    %v1512 = vrot.slane %v1497, %v1511
    %v1513 = vcombine.low %v1505, %v1512
    %v1514 = vcombine.low %v1387, %v1388
    %v1515 = vcombine.low %v1389, %v1390
    %v1516 = vcombine.low %v1391, %v1392
    %v1517 = vcombine.low %v1393, %v1394
    %v1519 = vunpack.c.l.s4 1966171168
    %v1520 = vunpack.c.0.s8 %v1519
    %v1521 = vlaneseq
    %v1522 = vshrl.u32 %v1521, 7
    %v1523 = vsub.s32 %v1520, %v1522
    %v1524 = vrot.slane %v1514, %v1523
    %v1526 = vunpack.c.l.s4 1966171168
    %v1527 = vunpack.c.0.s8 %v1526
    %v1528 = vlaneseq
    %v1529 = vshrl.u32 %v1528, 7
    %v1530 = vsub.s32 %v1527, %v1529
    %v1531 = vrot.slane %v1515, %v1530
    %v1533 = vunpack.c.l.s4 1966171168
    %v1534 = vunpack.c.0.s8 %v1533
    %v1535 = vlaneseq
    %v1536 = vshrl.u32 %v1535, 7
    %v1537 = vsub.s32 %v1534, %v1536
    %v1538 = vrot.slane %v1516, %v1537
    %v1540 = vunpack.c.l.s4 1966171168
    %v1541 = vunpack.c.0.s8 %v1540
    %v1542 = vlaneseq
    %v1543 = vshrl.u32 %v1542, 7
    %v1544 = vsub.s32 %v1541, %v1543
    %v1545 = vrot.slane %v1517, %v1544
    %v1546 = vcombine.low %v1524, %v1531
    %v1547 = vcombine.low %v1538, %v1545
    %v1549 = vunpack.c.l.s4 1966171168
    %v1550 = vunpack.c.0.s8 %v1549
    %v1551 = vlaneseq
    %v1552 = vshrl.u32 %v1551, 7
    %v1553 = vsub.s32 %v1550, %v1552
    %v1554 = vrot.slane %v1546, %v1553
    %v1556 = vunpack.c.l.s4 1966171168
    %v1557 = vunpack.c.0.s8 %v1556
    %v1558 = vlaneseq
    %v1559 = vshrl.u32 %v1558, 7
    %v1560 = vsub.s32 %v1557, %v1559
    %v1561 = vrot.slane %v1547, %v1560
    %v1562 = vcombine.low %v1554, %v1561
    %v1563 = vcombine.low %v1395, %v1396
    %v1564 = vcombine.low %v1397, %v1398
    %v1566 = vunpack.c.l.s4 1966171168
    %v1567 = vunpack.c.0.s8 %v1566
    %v1568 = vlaneseq
    %v1569 = vshrl.u32 %v1568, 7
    %v1570 = vsub.s32 %v1567, %v1569
    %v1571 = vrot.slane %v1563, %v1570
    %v1573 = vunpack.c.l.s4 1966171168
    %v1574 = vunpack.c.0.s8 %v1573
    %v1575 = vlaneseq
    %v1576 = vshrl.u32 %v1575, 7
    %v1577 = vsub.s32 %v1574, %v1576
    %v1578 = vrot.slane %v1564, %v1577
    %v1580 = vunpack.c.l.s4 1966171168
    %v1581 = vunpack.c.0.s8 %v1580
    %v1582 = vlaneseq
    %v1583 = vshrl.u32 %v1582, 7
    %v1584 = vsub.s32 %v1581, %v1583
    %v1585 = vrot.slane %v1399, %v1584
    %v1586 = vcombine.low %v1571, %v1578
    %v1588 = vunpack.c.l.s4 1966171168
    %v1589 = vunpack.c.0.s8 %v1588
    %v1590 = vlaneseq
    %v1591 = vshrl.u32 %v1590, 7
    %v1592 = vsub.s32 %v1589, %v1591
    %v1593 = vrot.slane %v1586, %v1592
    %v1595 = vunpack.c.l.s4 1966171168
    %v1596 = vunpack.c.0.s8 %v1595
    %v1597 = vlaneseq
    %v1598 = vshrl.u32 %v1597, 7
    %v1599 = vsub.s32 %v1596, %v1598
    %v1600 = vrot.slane %v1585, %v1599
    %v1601 = vcombine.low %v1593, %v1600
    %v1606 = vsel %vm582, %v1474, -inf
    %vm1607 = vcmask 61440
    %v1608 = vsel %vm1607, %v1513, -inf
    %v1609 = vmax.f32 %v1606, %v1608
    %v1610 = vrot.slane %v1609, 4
    %v1611 = vmax.f32 %v1609, %v1610
    %v1612 = vrot.slane %v1611, 2
    %v1613 = vmax.f32 %v1611, %v1612
    %v1614 = vrot.slane %v1613, 1
    %v1615 = vmax.f32 %v1613, %v1614
    %v1616 = vsel %vm582, %v1562, -inf
    %v1617 = vsel %vm1607, %v1601, -inf
    %v1618 = vmax.f32 %v1616, %v1617
    %v1619 = vrot.slane %v1618, 4
    %v1620 = vmax.f32 %v1618, %v1619
    %v1621 = vrot.slane %v1620, 2
    %v1622 = vmax.f32 %v1620, %v1621
    %v1623 = vrot.slane %v1622, 1
    %v1624 = vmax.f32 %v1622, %v1623
    %vm1625 = vcmask 1043456
    %v1626 = vrot.slane %v68, 4
    %v1627 = vrot.slane %v70, 4
    %v1628 = vsel %vm1625, %v1626, %v1627
    %v1629 = vrot.slane %v72, 4
    %v1630 = vrot.slane %v74, 4
    %v1631 = vsel %vm1625, %v1629, %v1630
    %v1632 = vcombine.low %v621, %v1628
    %v1633 = vcombine.high %v621, %v1628
    %v1634 = vcombine.low %v622, %v1627
    %v1635 = vcombine.low %v623, %v1631
    %v1636 = vcombine.high %v623, %v1631
    %v1637 = vcombine.low %v624, %v1630
    %v1638 = vcombine.low %v1632, %v1633
    %v1639 = vcombine.high %v1632, %v1633
    %v1640 = vcombine.low %v1634, %v1635
    %v1641 = vcombine.high %v1634, %v1635
    %v1642 = vcombine.low %v1636, %v1637
    %v1643 = vcombine.high %v1636, %v1637
    %v1650 = vpack.c.bf16 %v1640, %v1638
    %v1651 = vpack.c.bf16 %v1641, %v1639
    %v1652 = vpack.c.bf16 %v1642, %v1642
    %v1653 = vpack.c.bf16 %v1643, %v1643
    %v1654 = vld [vmem:[%s7] sm:$0xf]
    %v1655 = vld [vmem:[%s7 + $0x4] sm:$0xf]
    %v1656 = vld [vmem:[%s7 + $0x8] sm:$0xf]
    %v1657 = vld [vmem:[%s7 + $0xc] sm:$0xf]
    %v1658 = vld [vmem:[%s7 + $0x10] sm:$0xf]
    %v1659 = vld [vmem:[%s7 + $0x14] sm:$0xf]
    %v1660 = vld [vmem:[%s7 + $0x18] sm:$0xf]
    %v1661 = vld [vmem:[%s7 + $0x1c] sm:$0xf]
    %v1662 = vld [vmem:[%s7 + $0x20] sm:$0xf]
    %v1663 = vld [vmem:[%s7 + $0x24] sm:$0xf]
    %v1664 = vld [vmem:[%s7 + $0x28] sm:$0xf]
    %v1665 = vld [vmem:[%s7 + $0x2c] sm:$0xf]
    %v1666 = vld [vmem:[%s7 + $0x30] sm:$0xf]
    %v1667 = vld [vmem:[%s7 + $0x34] sm:$0xf]
    %v1668 = vld [vmem:[%s7 + $0x38] sm:$0xf]
    %v1669 = vld [vmem:[%s7 + $0x3c] sm:$0xf]
    %v1670 = vld [vmem:[%s7 + $0x40] sm:$0xf]
    %v1671 = vld [vmem:[%s7 + $0x44] sm:$0xf]
    %v1672 = vld [vmem:[%s7 + $0x48] sm:$0xf]
    %v1673 = vld [vmem:[%s7 + $0x4c] sm:$0xf]
    %v1694 = vunpack.c.l.b16 %v1654
    %v1695 = vunpack.c.l.b16 %v1655
    %v1696 = vunpack.c.l.b16 %v1656
    %v1697 = vunpack.c.l.b16 %v1657
    %v1698 = vunpack.c.l.b16 %v1658
    %v1699 = vunpack.c.l.b16 %v1659
    %v1700 = vunpack.c.l.b16 %v1660
    %v1701 = vunpack.c.l.b16 %v1661
    %v1702 = vunpack.c.l.b16 %v1662
    %v1703 = vunpack.c.l.b16 %v1663
    %v1704 = vunpack.c.l.b16 %v1664
    %v1705 = vunpack.c.l.b16 %v1665
    %v1706 = vunpack.c.l.b16 %v1666
    %v1707 = vunpack.c.l.b16 %v1667
    %v1708 = vunpack.c.l.b16 %v1668
    %v1709 = vunpack.c.l.b16 %v1669
    %v1710 = vunpack.c.l.b16 %v1670
    %v1711 = vunpack.c.l.b16 %v1671
    %v1712 = vunpack.c.l.b16 %v1672
    %v1713 = vunpack.c.l.b16 %v1673
    %v1714 = vpack.c.b16 %v1695, %v1694
    %v1715 = vpack.c.b16 %v1697, %v1696
    %v1716 = vpack.c.b16 %v1699, %v1698
    %v1717 = vpack.c.b16 %v1701, %v1700
    %v1718 = vpack.c.b16 %v1703, %v1702
    %v1719 = vpack.c.b16 %v1705, %v1704
    %v1720 = vpack.c.b16 %v1707, %v1706
    %v1721 = vpack.c.b16 %v1709, %v1708
    %v1722 = vpack.c.b16 %v1711, %v1710
    %v1723 = vpack.c.b16 %v1713, %v1712
    %v1735 = vsel %vm117, %v1651, 0
    %v1738 = vsel %vm117, %v1653, 0
    %1740 = vmatprep.subr.bf16.mxu0 0
    %1741 = vmatpush1.bf16.msra.mxu0 %v1714
    %1742 = vmatprep.subr.bf16.mxu0 0
    %1743 = vmatpush1.bf16.msra.mxu0 %v1715
    %1744 = vmatprep.subr.bf16.mxu0 0
    %1745 = vmatpush1.bf16.msra.mxu0 %v1716
    %1746 = vmatprep.subr.bf16.mxu0 0
    %1747 = vmatpush1.bf16.msra.mxu0 %v1717
    %1748 = vmatprep.subr.bf16.mxu0 0
    %1749 = vmatpush1.bf16.msra.mxu0 %v1718
    %1750 = vmatprep.subr.bf16.mxu0 0
    %1751 = vmatpush1.bf16.msra.mxu0 %v1719
    %1752 = vmatprep.subr.bf16.mxu0 0
    %1753 = vmatpush1.bf16.msra.mxu0 %v1720
    %1754 = vmatprep.subr.bf16.mxu0 0
    %1755 = vmatpush1.bf16.msra.mxu0 %v1721
    %1756 = vmatprep.subr.bf16.mxu0 0
    %1757 = vmatpush1.bf16.msra.mxu0 %v1722
    %1758 = vmatprep.subr.bf16.mxu0 0
    %1759 = vmatpush1.bf16.msra.mxu0 %v1723
    %1760 = vmatprep.subr.bf16.mxu0 0
    %1761 = vmatpush1.bf16.msra.mxu0 0
    %1762 = vmatprep.subr.bf16.mxu0 0
    %1763 = vmatpush1.bf16.msra.mxu0 0
    %1764 = vmatprep.subr.bf16.mxu0 0
    %1765 = vmatpush1.bf16.msra.mxu0 0
    %1766 = vmatprep.subr.bf16.mxu0 0
    %1767 = vmatpush1.bf16.msra.mxu0 0
    %1768 = vmatprep.subr.bf16.mxu0 0
    %1769 = vmatpush1.bf16.msra.mxu0 0
    %1770 = vmatprep.subr.bf16.mxu0 0
    %1771 = vmatpush1.bf16.msra.mxu0 0
    %1772 = vmatprep.mubr.bf16.mxu0 %v1735
    %1773 = vmatmul.mubr.bf16.gmra.mrb[0].mxu0 %v1650
    %v1774 = vpop.f32.mrb[0].mxu0
    %v1775 = vadd.f32 0.0, %v1774
    %v1776 = vpop.f32.mrb[0].mxu0
    %v1777 = vpop.f32.mrb[0].mxu0
    %v1778 = vadd.f32 0.0, %v1777
    %v1779 = vpop.f32.mrb[0].mxu0
    %1780 = vmatprep.mubr.bf16.mxu0 %v1738
    %1781 = vmatmul.mubr.bf16.gmra.mrb[0].mxu0 %v1652
    %v1782 = vpop.f32.mrb[0].mxu0
    %v1783 = vadd.f32 0.0, %v1782
    %v1784 = vpop.f32.mrb[0].mxu0
    %v1785 = vpop.f32.mrb[0].mxu0
    %v1786 = vpop.f32.mrb[0].mxu0
    %1787 = vdwg.mxu0
    %v1791 = vcombine.high %v1775, %v1775
    %v1792 = vcombine.high %v1778, %v1778
    %v1793 = vcombine.high %v1783, %v1783
    %v1797 = vld [vmem:[%s8] sm:$0x1]
    %v1799 = vlaneseq
    %v1800 = vshrl.u32 %v1799, 7
    %v1801 = vsub.s32 0, %v1800
    %v1802 = vrot.slane %v1797, %v1801
    %v1804 = vcombine.high %v1802, %v1802
    %v1806 = vadd.f32 %v1775, %v1802
    %v1807 = vadd.f32 %v1791, %v1804
    %v1808 = vadd.f32 %v1778, %v1802
    %v1809 = vadd.f32 %v1792, %v1802
    %v1810 = vadd.f32 %v1783, %v1804
    %v1811 = vadd.f32 %v1793, %v1802
    %v1812 = vmax.f32 %v1806, 0.0
    %v1813 = vmax.f32 %v1807, 0.0
    %v1814 = vmax.f32 %v1808, 0.0
    %v1815 = vmax.f32 %v1809, 0.0
    %v1816 = vmax.f32 %v1810, 0.0
    %v1817 = vmax.f32 %v1811, 0.0
    %v1822 = vcombine.low %v1812, %v1813
    %v1823 = vcombine.low %v1815, %v1816
    %v1826 = vsel %vm582, %v1822, -inf
    %vm1827 = vcmask 60416
    %v1828 = vsel %vm1827, %v1814, -inf
    %v1829 = vmax.f32 %v1826, %v1828
    %v1830 = vrot.slane %v1829, 4
    %v1831 = vmax.f32 %v1829, %v1830
    %v1832 = vrot.slane %v1831, 2
    %v1833 = vmax.f32 %v1831, %v1832
    %v1834 = vrot.slane %v1833, 1
    %v1835 = vmax.f32 %v1833, %v1834
    %v1836 = vsel %vm582, %v1823, -inf
    %v1837 = vsel %vm1827, %v1817, -inf
    %v1838 = vmax.f32 %v1836, %v1837
    %v1839 = vrot.slane %v1838, 4
    %v1840 = vmax.f32 %v1838, %v1839
    %v1841 = vrot.slane %v1840, 2
    %v1842 = vmax.f32 %v1840, %v1841
    %v1843 = vrot.slane %v1842, 1
    %v1844 = vmax.f32 %v1842, %v1843
    %vm1847 = vcmask 1041409
    %v1848 = vsel %vm1847, %v601, %v592
    %v1852 = vsel %vm1847, %v1624, %v1615
    %1853 = vrot.lane.b32.xlu0 %v1852, 8
    %v1854 = vpop.permute.xlu0 %1853
    %v1858 = vsel %vm1847, %v1844, %v1835
    %1859 = vrot.lane.b32.xlu0 %v1858, 16
    %v1860 = vpop.permute.xlu0 %1859
    %v1862 = vsel %vm582, %v1848, %v1854
    %vm1863 = vcmask 130048
    %v1864 = vsel %vm1863, %v1862, %v1860
    %v1865 = vld [vmem:[%s9] sm:$0x1]
    %v1867 = vlaneseq
    %v1868 = vshrl.u32 %v1867, 7
    %v1869 = vsub.s32 0, %v1868
    %v1870 = vrot.slane %v1865, %v1869
    %v1872 = vmul.f32 %v1864, %v1870
    %s1873 = scalar_lea.vmem %s1, 16
    %v1874 = vld [vmem:[%s1873] sm:$0xff]
    %v1875 = vld [vmem:[%s1873 + $0x8] sm:$0xff]
    %s1876 = scalar_lea.vmem %s2, 16
    %v1877 = vld [vmem:[%s1876] sm:$0xff]
    %v1878 = vld [vmem:[%s1876 + $0x8] sm:$0xff]
    %v1879 = vsub.f32 %v43, %v1874
    %v1880 = vsub.f32 %v44, %v1875
    %v1881 = vsub.f32 %v45, %v1874
    %v1882 = vsub.f32 %v46, %v1875
    %v1883 = vmul.f32 %v1879, %v1879
    %v1884 = vmul.f32 %v1880, %v1880
    %v1885 = vmul.f32 %v1881, %v1881
    %v1886 = vmul.f32 %v1882, %v1882
    %v1887 = vsub.f32 0.0, %v1883
    %v1888 = vsub.f32 0.0, %v1884
    %v1889 = vsub.f32 0.0, %v1885
    %v1890 = vsub.f32 0.0, %v1886
    %v1891 = vmul.f32 %v1887, %v1877
    %v1892 = vmul.f32 %v1888, %v1878
    %v1893 = vmul.f32 %v1889, %v1877
    %v1894 = vmul.f32 %v1890, %v1878
    %v1895 = vmul.f32 %v1891, 1.442695
    %v1896 = vpow.pop %v1895
    %v1897 = vmul.f32 %v1892, 1.442695
    %v1898 = vpow.pop %v1897
    %v1899 = vmul.f32 %v1893, 1.442695
    %v1900 = vpow.pop %v1899
    %v1901 = vmul.f32 %v1894, 1.442695
    %v1902 = vpow.pop %v1901
    %v1907 = vrot.slane %v1896, 1
    %v1908 = vrot.slane %v1898, 1
    %v1909 = vsel %vm79, %v1907, %v1908
    %v1910 = vrot.slane %v1900, 1
    %v1911 = vrot.slane %v1902, 1
    %v1912 = vsel %vm79, %v1910, %v1911
    %1913 = vrot.lane.b32.xlu0 %v1909, 32
    %v1914 = vpop.permute.xlu0 %1913
    %1915 = vrot.lane.b32.xlu0 %v1908, 32
    %v1916 = vpop.permute.xlu0 %1915
    %1917 = vrot.lane.b32.xlu0 %v1912, 32
    %v1918 = vpop.permute.xlu0 %1917
    %1919 = vrot.lane.b32.xlu0 %v1911, 32
    %v1920 = vpop.permute.xlu0 %1919
    %v1925 = vrot.slane %v1896, 2
    %v1926 = vrot.slane %v1898, 2
    %v1927 = vsel %vm98, %v1925, %v1926
    %v1928 = vrot.slane %v1900, 2
    %v1929 = vrot.slane %v1902, 2
    %v1930 = vsel %vm98, %v1928, %v1929
    %1931 = vrot.lane.b32.xlu0 %v1927, 64
    %v1932 = vpop.permute.xlu0 %1931
    %1933 = vrot.lane.b32.xlu0 %v1926, 64
    %v1934 = vpop.permute.xlu0 %1933
    %1935 = vrot.lane.b32.xlu0 %v1930, 64
    %v1936 = vpop.permute.xlu0 %1935
    %1937 = vrot.lane.b32.xlu0 %v1929, 64
    %v1938 = vpop.permute.xlu0 %1937
    %v1943 = vsel %vm117, %v1896, %v1914
    %v1944 = vsel %vm117, %v1898, %v1916
    %v1945 = vsel %vm117, %v1900, %v1918
    %v1946 = vsel %vm117, %v1902, %v1920
    %v1947 = vsel %vm122, %v1943, %v1932
    %v1948 = vsel %vm122, %v1944, %v1934
    %v1949 = vsel %vm122, %v1945, %v1936
    %v1950 = vsel %vm122, %v1946, %v1938
    %v1955 = vcombine.high %v1947, %v1947
    %v1957 = vunpack.c.l.s4 1983009808
    %v1958 = vunpack.c.0.s8 %v1957
    %v1959 = vlaneseq
    %v1960 = vshrl.u32 %v1959, 7
    %v1961 = vsub.s32 %v1958, %v1960
    %v1962 = vrot.slane %v1947, %v1961
    %v1964 = vunpack.c.l.s4 1983009808
    %v1965 = vunpack.c.0.s8 %v1964
    %v1966 = vlaneseq
    %v1967 = vshrl.u32 %v1966, 7
    %v1968 = vsub.s32 %v1965, %v1967
    %v1969 = vrot.slane %v1955, %v1968
    %v1970 = vcombine.high %v1962, %v1962
    %v1971 = vcombine.high %v1969, %v1969
    %v1972 = vcombine.high %v1948, %v1948
    %v1974 = vunpack.c.l.s4 1983009808
    %v1975 = vunpack.c.0.s8 %v1974
    %v1976 = vlaneseq
    %v1977 = vshrl.u32 %v1976, 7
    %v1978 = vsub.s32 %v1975, %v1977
    %v1979 = vrot.slane %v1948, %v1978
    %v1981 = vunpack.c.l.s4 1983009808
    %v1982 = vunpack.c.0.s8 %v1981
    %v1983 = vlaneseq
    %v1984 = vshrl.u32 %v1983, 7
    %v1985 = vsub.s32 %v1982, %v1984
    %v1986 = vrot.slane %v1972, %v1985
    %v1987 = vcombine.high %v1979, %v1979
    %v1988 = vcombine.high %v1949, %v1949
    %v1990 = vunpack.c.l.s4 1983009808
    %v1991 = vunpack.c.0.s8 %v1990
    %v1992 = vlaneseq
    %v1993 = vshrl.u32 %v1992, 7
    %v1994 = vsub.s32 %v1991, %v1993
    %v1995 = vrot.slane %v1949, %v1994
    %v1997 = vunpack.c.l.s4 1983009808
    %v1998 = vunpack.c.0.s8 %v1997
    %v1999 = vlaneseq
    %v2000 = vshrl.u32 %v1999, 7
    %v2001 = vsub.s32 %v1998, %v2000
    %v2002 = vrot.slane %v1988, %v2001
    %v2003 = vcombine.high %v1995, %v1995
    %v2004 = vcombine.high %v2002, %v2002
    %v2005 = vcombine.high %v1950, %v1950
    %v2007 = vunpack.c.l.s4 1983009808
    %v2008 = vunpack.c.0.s8 %v2007
    %v2009 = vlaneseq
    %v2010 = vshrl.u32 %v2009, 7
    %v2011 = vsub.s32 %v2008, %v2010
    %v2012 = vrot.slane %v1950, %v2011
    %v2014 = vunpack.c.l.s4 1983009808
    %v2015 = vunpack.c.0.s8 %v2014
    %v2016 = vlaneseq
    %v2017 = vshrl.u32 %v2016, 7
    %v2018 = vsub.s32 %v2015, %v2017
    %v2019 = vrot.slane %v2005, %v2018
    %v2020 = vcombine.high %v2012, %v2012
    %v2021 = vcombine.low %v1962, %v1970
    %v2022 = vcombine.low %v1969, %v1971
    %v2024 = vunpack.c.l.s4 1983009808
    %v2025 = vunpack.c.0.s8 %v2024
    %v2026 = vlaneseq
    %v2027 = vshrl.u32 %v2026, 7
    %v2028 = vsub.s32 %v2025, %v2027
    %v2029 = vrot.slane %v2021, %v2028
    %v2031 = vunpack.c.l.s4 1983009808
    %v2032 = vunpack.c.0.s8 %v2031
    %v2033 = vlaneseq
    %v2034 = vshrl.u32 %v2033, 7
    %v2035 = vsub.s32 %v2032, %v2034
    %v2036 = vrot.slane %v2022, %v2035
    %v2037 = vcombine.low %v2029, %v2036
    %v2038 = vcombine.low %v1979, %v1987
    %v2039 = vcombine.low %v1986, %v1995
    %v2041 = vunpack.c.l.s4 1983009808
    %v2042 = vunpack.c.0.s8 %v2041
    %v2043 = vlaneseq
    %v2044 = vshrl.u32 %v2043, 7
    %v2045 = vsub.s32 %v2042, %v2044
    %v2046 = vrot.slane %v2038, %v2045
    %v2048 = vunpack.c.l.s4 1983009808
    %v2049 = vunpack.c.0.s8 %v2048
    %v2050 = vlaneseq
    %v2051 = vshrl.u32 %v2050, 7
    %v2052 = vsub.s32 %v2049, %v2051
    %v2053 = vrot.slane %v2039, %v2052
    %v2054 = vcombine.low %v2046, %v2053
    %v2055 = vcombine.low %v2003, %v2002
    %v2056 = vcombine.low %v2004, %v2012
    %v2058 = vunpack.c.l.s4 1983009808
    %v2059 = vunpack.c.0.s8 %v2058
    %v2060 = vlaneseq
    %v2061 = vshrl.u32 %v2060, 7
    %v2062 = vsub.s32 %v2059, %v2061
    %v2063 = vrot.slane %v2055, %v2062
    %v2065 = vunpack.c.l.s4 1983009808
    %v2066 = vunpack.c.0.s8 %v2065
    %v2067 = vlaneseq
    %v2068 = vshrl.u32 %v2067, 7
    %v2069 = vsub.s32 %v2066, %v2068
    %v2070 = vrot.slane %v2056, %v2069
    %v2071 = vcombine.low %v2063, %v2070
    %v2072 = vcombine.low %v2020, %v2019
    %v2074 = vunpack.c.l.s4 1983009808
    %v2075 = vunpack.c.0.s8 %v2074
    %v2076 = vlaneseq
    %v2077 = vshrl.u32 %v2076, 7
    %v2078 = vsub.s32 %v2075, %v2077
    %v2079 = vrot.slane %v2072, %v2078
    %v2084 = vpack.c.bf16 %v2054, %v2037
    %v2085 = vpack.c.bf16 %v2079, %v2071
    %s2086 = scalar_lea.vmem %s3, 48
    %v2087 = vld [vmem:[%s2086] sm:$0xf]
    %v2088 = vld [vmem:[%s2086 + $0x4] sm:$0xf]
    %v2089 = vld [vmem:[%s2086 + $0x8] sm:$0xf]
    %v2090 = vld [vmem:[%s2086 + $0xc] sm:$0xf]
    %v2091 = vld [vmem:[%s2086 + $0x10] sm:$0xf]
    %v2092 = vld [vmem:[%s2086 + $0x14] sm:$0xf]
    %v2093 = vld [vmem:[%s2086 + $0x18] sm:$0xf]
    %v2094 = vld [vmem:[%s2086 + $0x1c] sm:$0xf]
    %v2095 = vld [vmem:[%s2086 + $0x20] sm:$0xf]
    %v2096 = vld [vmem:[%s2086 + $0x24] sm:$0xf]
    %v2097 = vld [vmem:[%s2086 + $0x28] sm:$0xf]
    %v2098 = vld [vmem:[%s2086 + $0x2c] sm:$0xf]
    %v2111 = vunpack.c.l.b16 %v2087
    %v2112 = vunpack.c.l.b16 %v2088
    %v2113 = vunpack.c.l.b16 %v2089
    %v2114 = vunpack.c.l.b16 %v2090
    %v2115 = vunpack.c.l.b16 %v2091
    %v2116 = vunpack.c.l.b16 %v2092
    %v2117 = vunpack.c.l.b16 %v2093
    %v2118 = vunpack.c.l.b16 %v2094
    %v2119 = vunpack.c.l.b16 %v2095
    %v2120 = vunpack.c.l.b16 %v2096
    %v2121 = vunpack.c.l.b16 %v2097
    %v2122 = vunpack.c.l.b16 %v2098
    %v2123 = vpack.c.b16 %v2112, %v2111
    %v2124 = vpack.c.b16 %v2114, %v2113
    %v2125 = vpack.c.b16 %v2116, %v2115
    %v2126 = vpack.c.b16 %v2118, %v2117
    %v2127 = vpack.c.b16 %v2120, %v2119
    %v2128 = vpack.c.b16 %v2122, %v2121
    %v2136 = vsel %vm310, %v2084, 0
    %v2139 = vsel %vm310, %v2085, 0
    %2141 = vmatprep.subr.bf16.mxu0 0
    %2142 = vmatpush1.bf16.msra.mxu0 %v2123
    %2143 = vmatprep.subr.bf16.mxu0 0
    %2144 = vmatpush1.bf16.msra.mxu0 %v2124
    %2145 = vmatprep.subr.bf16.mxu0 0
    %2146 = vmatpush1.bf16.msra.mxu0 %v2125
    %2147 = vmatprep.subr.bf16.mxu0 0
    %2148 = vmatpush1.bf16.msra.mxu0 %v2126
    %2149 = vmatprep.subr.bf16.mxu0 0
    %2150 = vmatpush1.bf16.msra.mxu0 %v2127
    %2151 = vmatprep.subr.bf16.mxu0 0
    %2152 = vmatpush1.bf16.msra.mxu0 %v2128
    %2153 = vmatprep.subr.bf16.mxu0 0
    %2154 = vmatpush1.bf16.msra.mxu0 0
    %2155 = vmatprep.subr.bf16.mxu0 0
    %2156 = vmatpush1.bf16.msra.mxu0 0
    %2157 = vmatprep.subr.bf16.mxu0 0
    %2158 = vmatpush1.bf16.msra.mxu0 0
    %2159 = vmatprep.subr.bf16.mxu0 0
    %2160 = vmatpush1.bf16.msra.mxu0 0
    %2161 = vmatprep.subr.bf16.mxu0 0
    %2162 = vmatpush1.bf16.msra.mxu0 0
    %2163 = vmatprep.subr.bf16.mxu0 0
    %2164 = vmatpush1.bf16.msra.mxu0 0
    %2165 = vmatprep.subr.bf16.mxu0 0
    %2166 = vmatpush1.bf16.msra.mxu0 0
    %2167 = vmatprep.subr.bf16.mxu0 0
    %2168 = vmatpush1.bf16.msra.mxu0 0
    %2169 = vmatprep.subr.bf16.mxu0 0
    %2170 = vmatpush1.bf16.msra.mxu0 0
    %2171 = vmatprep.subr.bf16.mxu0 0
    %2172 = vmatpush1.bf16.msra.mxu0 0
    %2173 = vmatprep.mubr.bf16.mxu0 0
    %2174 = vmatmul.mubr.bf16.gmra.mrb[0].mxu0 %v2136
    %v2175 = vpop.f32.mrb[0].mxu0
    %v2176 = vadd.f32 0.0, %v2175
    %v2177 = vpop.f32.mrb[0].mxu0
    %v2178 = vpop.f32.mrb[0].mxu0
    %v2179 = vadd.f32 0.0, %v2178
    %v2180 = vpop.f32.mrb[0].mxu0
    %2181 = vmatprep.mubr.bf16.mxu0 0
    %2182 = vmatmul.mubr.bf16.gmra.mrb[0].mxu0 %v2139
    %v2183 = vpop.f32.mrb[0].mxu0
    %v2184 = vadd.f32 0.0, %v2183
    %v2185 = vpop.f32.mrb[0].mxu0
    %v2186 = vpop.f32.mrb[0].mxu0
    %v2187 = vadd.f32 0.0, %v2186
    %v2188 = vpop.f32.mrb[0].mxu0
    %2189 = vdwg.mxu0
    %v2194 = vcombine.high %v2176, %v2176
    %v2196 = vunpack.c.l.s4 1983009808
    %v2197 = vunpack.c.0.s8 %v2196
    %v2198 = vlaneseq
    %v2199 = vshrl.u32 %v2198, 7
    %v2200 = vsub.s32 %v2197, %v2199
    %v2201 = vrot.slane %v2176, %v2200
    %v2203 = vunpack.c.l.s4 1983009808
    %v2204 = vunpack.c.0.s8 %v2203
    %v2205 = vlaneseq
    %v2206 = vshrl.u32 %v2205, 7
    %v2207 = vsub.s32 %v2204, %v2206
    %v2208 = vrot.slane %v2194, %v2207
    %v2209 = vcombine.high %v2201, %v2201
    %v2210 = vcombine.high %v2208, %v2208
    %v2211 = vcombine.high %v2179, %v2179
    %v2213 = vunpack.c.l.s4 1983009808
    %v2214 = vunpack.c.0.s8 %v2213
    %v2215 = vlaneseq
    %v2216 = vshrl.u32 %v2215, 7
    %v2217 = vsub.s32 %v2214, %v2216
    %v2218 = vrot.slane %v2179, %v2217
    %v2220 = vunpack.c.l.s4 1983009808
    %v2221 = vunpack.c.0.s8 %v2220
    %v2222 = vlaneseq
    %v2223 = vshrl.u32 %v2222, 7
    %v2224 = vsub.s32 %v2221, %v2223
    %v2225 = vrot.slane %v2211, %v2224
    %v2226 = vcombine.high %v2218, %v2218
    %v2227 = vcombine.high %v2225, %v2225
    %v2228 = vcombine.high %v2184, %v2184
    %v2230 = vunpack.c.l.s4 1983009808
    %v2231 = vunpack.c.0.s8 %v2230
    %v2232 = vlaneseq
    %v2233 = vshrl.u32 %v2232, 7
    %v2234 = vsub.s32 %v2231, %v2233
    %v2235 = vrot.slane %v2184, %v2234
    %v2237 = vunpack.c.l.s4 1983009808
    %v2238 = vunpack.c.0.s8 %v2237
    %v2239 = vlaneseq
    %v2240 = vshrl.u32 %v2239, 7
    %v2241 = vsub.s32 %v2238, %v2240
    %v2242 = vrot.slane %v2228, %v2241
    %v2243 = vcombine.high %v2235, %v2235
    %v2244 = vcombine.high %v2242, %v2242
    %v2246 = vunpack.c.l.s4 1983009808
    %v2247 = vunpack.c.0.s8 %v2246
    %v2248 = vlaneseq
    %v2249 = vshrl.u32 %v2248, 7
    %v2250 = vsub.s32 %v2247, %v2249
    %v2251 = vrot.slane %v2187, %v2250
    %v2252 = vcombine.high %v2251, %v2251
    %s2267 = scalar_lea.vmem %s4, 1
    %v2268 = vld [vmem:[%s2267] sm:$0x1]
    %v2270 = vlaneseq
    %v2271 = vshrl.u32 %v2270, 7
    %v2272 = vsub.s32 0, %v2271
    %v2273 = vrot.slane %v2268, %v2272
    %v2274 = vcombine.high %v2273, %v2273
    %v2276 = vunpack.c.l.s4 1983009808
    %v2277 = vunpack.c.0.s8 %v2276
    %v2278 = vlaneseq
    %v2279 = vshrl.u32 %v2278, 7
    %v2280 = vsub.s32 %v2277, %v2279
    %v2281 = vrot.slane %v2273, %v2280
    %v2283 = vunpack.c.l.s4 1983009808
    %v2284 = vunpack.c.0.s8 %v2283
    %v2285 = vlaneseq
    %v2286 = vshrl.u32 %v2285, 7
    %v2287 = vsub.s32 %v2284, %v2286
    %v2288 = vrot.slane %v2274, %v2287
    %v2289 = vcombine.high %v2281, %v2281
    %v2290 = vcombine.high %v2288, %v2288
    %v2295 = vadd.f32 %v2201, %v2281
    %v2296 = vadd.f32 %v2209, %v2289
    %v2297 = vadd.f32 %v2208, %v2288
    %v2298 = vadd.f32 %v2210, %v2290
    %v2299 = vadd.f32 %v2218, %v2281
    %v2300 = vadd.f32 %v2226, %v2289
    %v2301 = vadd.f32 %v2225, %v2288
    %v2302 = vadd.f32 %v2227, %v2281
    %v2303 = vadd.f32 %v2235, %v2289
    %v2304 = vadd.f32 %v2243, %v2288
    %v2305 = vadd.f32 %v2242, %v2290
    %v2306 = vadd.f32 %v2244, %v2281
    %v2307 = vadd.f32 %v2251, %v2289
    %v2308 = vadd.f32 %v2252, %v2288
    %v2309 = vmax.f32 %v2295, 0.0
    %v2310 = vmax.f32 %v2296, 0.0
    %v2311 = vmax.f32 %v2297, 0.0
    %v2312 = vmax.f32 %v2298, 0.0
    %v2313 = vmax.f32 %v2299, 0.0
    %v2314 = vmax.f32 %v2300, 0.0
    %v2315 = vmax.f32 %v2301, 0.0
    %v2316 = vmax.f32 %v2302, 0.0
    %v2317 = vmax.f32 %v2303, 0.0
    %v2318 = vmax.f32 %v2304, 0.0
    %v2319 = vmax.f32 %v2305, 0.0
    %v2320 = vmax.f32 %v2306, 0.0
    %v2321 = vmax.f32 %v2307, 0.0
    %v2322 = vmax.f32 %v2308, 0.0
    %v2337 = vcombine.low %v2309, %v2310
    %v2338 = vcombine.low %v2311, %v2312
    %v2340 = vunpack.c.l.s4 1983009808
    %v2341 = vunpack.c.0.s8 %v2340
    %v2342 = vlaneseq
    %v2343 = vshrl.u32 %v2342, 7
    %v2344 = vsub.s32 %v2341, %v2343
    %v2345 = vrot.slane %v2337, %v2344
    %v2347 = vunpack.c.l.s4 1983009808
    %v2348 = vunpack.c.0.s8 %v2347
    %v2349 = vlaneseq
    %v2350 = vshrl.u32 %v2349, 7
    %v2351 = vsub.s32 %v2348, %v2350
    %v2352 = vrot.slane %v2338, %v2351
    %v2353 = vcombine.low %v2345, %v2352
    %v2354 = vcombine.low %v2313, %v2314
    %v2356 = vunpack.c.l.s4 1983009808
    %v2357 = vunpack.c.0.s8 %v2356
    %v2358 = vlaneseq
    %v2359 = vshrl.u32 %v2358, 7
    %v2360 = vsub.s32 %v2357, %v2359
    %v2361 = vrot.slane %v2354, %v2360
    %v2363 = vunpack.c.l.s4 1983009808
    %v2364 = vunpack.c.0.s8 %v2363
    %v2365 = vlaneseq
    %v2366 = vshrl.u32 %v2365, 7
    %v2367 = vsub.s32 %v2364, %v2366
    %v2368 = vrot.slane %v2315, %v2367
    %v2369 = vcombine.low %v2361, %v2368
    %v2370 = vcombine.low %v2316, %v2317
    %v2371 = vcombine.low %v2318, %v2319
    %v2373 = vunpack.c.l.s4 1983009808
    %v2374 = vunpack.c.0.s8 %v2373
    %v2375 = vlaneseq
    %v2376 = vshrl.u32 %v2375, 7
    %v2377 = vsub.s32 %v2374, %v2376
    %v2378 = vrot.slane %v2370, %v2377
    %v2380 = vunpack.c.l.s4 1983009808
    %v2381 = vunpack.c.0.s8 %v2380
    %v2382 = vlaneseq
    %v2383 = vshrl.u32 %v2382, 7
    %v2384 = vsub.s32 %v2381, %v2383
    %v2385 = vrot.slane %v2371, %v2384
    %v2386 = vcombine.low %v2378, %v2385
    %v2387 = vcombine.low %v2320, %v2321
    %v2389 = vunpack.c.l.s4 1983009808
    %v2390 = vunpack.c.0.s8 %v2389
    %v2391 = vlaneseq
    %v2392 = vshrl.u32 %v2391, 7
    %v2393 = vsub.s32 %v2390, %v2392
    %v2394 = vrot.slane %v2387, %v2393
    %v2396 = vunpack.c.l.s4 1983009808
    %v2397 = vunpack.c.0.s8 %v2396
    %v2398 = vlaneseq
    %v2399 = vshrl.u32 %v2398, 7
    %v2400 = vsub.s32 %v2397, %v2399
    %v2401 = vrot.slane %v2322, %v2400
    %v2402 = vcombine.low %v2394, %v2401
    %v2407 = vsel %vm582, %v2353, -inf
    %v2408 = vsel %vm584, %v2369, -inf
    %v2409 = vmax.f32 %v2407, %v2408
    %v2410 = vrot.slane %v2409, 4
    %v2411 = vmax.f32 %v2409, %v2410
    %v2412 = vrot.slane %v2411, 2
    %v2413 = vmax.f32 %v2411, %v2412
    %v2414 = vrot.slane %v2413, 1
    %v2415 = vmax.f32 %v2413, %v2414
    %v2416 = vsel %vm582, %v2386, -inf
    %v2417 = vsel %vm584, %v2402, -inf
    %v2418 = vmax.f32 %v2416, %v2417
    %v2419 = vrot.slane %v2418, 4
    %v2420 = vmax.f32 %v2418, %v2419
    %v2421 = vrot.slane %v2420, 2
    %v2422 = vmax.f32 %v2420, %v2421
    %v2423 = vrot.slane %v2422, 1
    %v2424 = vmax.f32 %v2422, %v2423
    %v2425 = vrot.slane %v1896, 3
    %v2426 = vrot.slane %v1898, 3
    %v2427 = vsel %vm602, %v2425, %v2426
    %v2428 = vrot.slane %v1900, 3
    %v2429 = vrot.slane %v1902, 3
    %v2430 = vsel %vm602, %v2428, %v2429
    %2431 = vrot.lane.b32.xlu0 %v2427, 96
    %v2432 = vpop.permute.xlu0 %2431
    %2433 = vrot.lane.b32.xlu0 %v2426, 96
    %v2434 = vpop.permute.xlu0 %2433
    %2435 = vrot.lane.b32.xlu0 %v2430, 96
    %v2436 = vpop.permute.xlu0 %2435
    %2437 = vrot.lane.b32.xlu0 %v2429, 96
    %v2438 = vpop.permute.xlu0 %2437
    %v2443 = vsel %vm310, %v1947, %v2432
    %v2444 = vsel %vm310, %v1948, %v2434
    %v2445 = vsel %vm310, %v1949, %v2436
    %v2446 = vsel %vm310, %v1950, %v2438
    %v2451 = vcombine.high %v2443, %v2443
    %v2453 = vunpack.c.l.s4 1966171168
    %v2454 = vunpack.c.0.s8 %v2453
    %v2455 = vlaneseq
    %v2456 = vshrl.u32 %v2455, 7
    %v2457 = vsub.s32 %v2454, %v2456
    %v2458 = vrot.slane %v2443, %v2457
    %v2460 = vunpack.c.l.s4 1966171168
    %v2461 = vunpack.c.0.s8 %v2460
    %v2462 = vlaneseq
    %v2463 = vshrl.u32 %v2462, 7
    %v2464 = vsub.s32 %v2461, %v2463
    %v2465 = vrot.slane %v2451, %v2464
    %v2466 = vcombine.high %v2458, %v2458
    %v2467 = vcombine.high %v2465, %v2465
    %v2469 = vunpack.c.l.s4 1966171168
    %v2470 = vunpack.c.0.s8 %v2469
    %v2471 = vlaneseq
    %v2472 = vshrl.u32 %v2471, 7
    %v2473 = vsub.s32 %v2470, %v2472
    %v2474 = vrot.slane %v2458, %v2473
    %v2476 = vunpack.c.l.s4 1966171168
    %v2477 = vunpack.c.0.s8 %v2476
    %v2478 = vlaneseq
    %v2479 = vshrl.u32 %v2478, 7
    %v2480 = vsub.s32 %v2477, %v2479
    %v2481 = vrot.slane %v2465, %v2480
    %v2483 = vunpack.c.l.s4 1966171168
    %v2484 = vunpack.c.0.s8 %v2483
    %v2485 = vlaneseq
    %v2486 = vshrl.u32 %v2485, 7
    %v2487 = vsub.s32 %v2484, %v2486
    %v2488 = vrot.slane %v2466, %v2487
    %v2490 = vunpack.c.l.s4 1966171168
    %v2491 = vunpack.c.0.s8 %v2490
    %v2492 = vlaneseq
    %v2493 = vshrl.u32 %v2492, 7
    %v2494 = vsub.s32 %v2491, %v2493
    %v2495 = vrot.slane %v2467, %v2494
    %v2496 = vcombine.high %v2474, %v2474
    %v2497 = vcombine.high %v2481, %v2481
    %v2498 = vcombine.high %v2488, %v2488
    %v2499 = vcombine.high %v2495, %v2495
    %v2500 = vcombine.high %v2444, %v2444
    %v2502 = vunpack.c.l.s4 1966171168
    %v2503 = vunpack.c.0.s8 %v2502
    %v2504 = vlaneseq
    %v2505 = vshrl.u32 %v2504, 7
    %v2506 = vsub.s32 %v2503, %v2505
    %v2507 = vrot.slane %v2444, %v2506
    %v2509 = vunpack.c.l.s4 1966171168
    %v2510 = vunpack.c.0.s8 %v2509
    %v2511 = vlaneseq
    %v2512 = vshrl.u32 %v2511, 7
    %v2513 = vsub.s32 %v2510, %v2512
    %v2514 = vrot.slane %v2500, %v2513
    %v2515 = vcombine.high %v2507, %v2507
    %v2517 = vunpack.c.l.s4 1966171168
    %v2518 = vunpack.c.0.s8 %v2517
    %v2519 = vlaneseq
    %v2520 = vshrl.u32 %v2519, 7
    %v2521 = vsub.s32 %v2518, %v2520
    %v2522 = vrot.slane %v2507, %v2521
    %v2524 = vunpack.c.l.s4 1966171168
    %v2525 = vunpack.c.0.s8 %v2524
    %v2526 = vlaneseq
    %v2527 = vshrl.u32 %v2526, 7
    %v2528 = vsub.s32 %v2525, %v2527
    %v2529 = vrot.slane %v2514, %v2528
    %v2531 = vunpack.c.l.s4 1966171168
    %v2532 = vunpack.c.0.s8 %v2531
    %v2533 = vlaneseq
    %v2534 = vshrl.u32 %v2533, 7
    %v2535 = vsub.s32 %v2532, %v2534
    %v2536 = vrot.slane %v2515, %v2535
    %v2537 = vcombine.high %v2522, %v2522
    %v2538 = vcombine.high %v2536, %v2536
    %v2539 = vcombine.high %v2445, %v2445
    %v2541 = vunpack.c.l.s4 1966171168
    %v2542 = vunpack.c.0.s8 %v2541
    %v2543 = vlaneseq
    %v2544 = vshrl.u32 %v2543, 7
    %v2545 = vsub.s32 %v2542, %v2544
    %v2546 = vrot.slane %v2445, %v2545
    %v2548 = vunpack.c.l.s4 1966171168
    %v2549 = vunpack.c.0.s8 %v2548
    %v2550 = vlaneseq
    %v2551 = vshrl.u32 %v2550, 7
    %v2552 = vsub.s32 %v2549, %v2551
    %v2553 = vrot.slane %v2539, %v2552
    %v2554 = vcombine.high %v2546, %v2546
    %v2555 = vcombine.high %v2553, %v2553
    %v2557 = vunpack.c.l.s4 1966171168
    %v2558 = vunpack.c.0.s8 %v2557
    %v2559 = vlaneseq
    %v2560 = vshrl.u32 %v2559, 7
    %v2561 = vsub.s32 %v2558, %v2560
    %v2562 = vrot.slane %v2546, %v2561
    %v2564 = vunpack.c.l.s4 1966171168
    %v2565 = vunpack.c.0.s8 %v2564
    %v2566 = vlaneseq
    %v2567 = vshrl.u32 %v2566, 7
    %v2568 = vsub.s32 %v2565, %v2567
    %v2569 = vrot.slane %v2553, %v2568
    %v2571 = vunpack.c.l.s4 1966171168
    %v2572 = vunpack.c.0.s8 %v2571
    %v2573 = vlaneseq
    %v2574 = vshrl.u32 %v2573, 7
    %v2575 = vsub.s32 %v2572, %v2574
    %v2576 = vrot.slane %v2554, %v2575
    %v2578 = vunpack.c.l.s4 1966171168
    %v2579 = vunpack.c.0.s8 %v2578
    %v2580 = vlaneseq
    %v2581 = vshrl.u32 %v2580, 7
    %v2582 = vsub.s32 %v2579, %v2581
    %v2583 = vrot.slane %v2555, %v2582
    %v2584 = vcombine.high %v2562, %v2562
    %v2585 = vcombine.high %v2569, %v2569
    %v2586 = vcombine.high %v2576, %v2576
    %v2587 = vcombine.high %v2583, %v2583
    %v2588 = vcombine.high %v2446, %v2446
    %v2590 = vunpack.c.l.s4 1966171168
    %v2591 = vunpack.c.0.s8 %v2590
    %v2592 = vlaneseq
    %v2593 = vshrl.u32 %v2592, 7
    %v2594 = vsub.s32 %v2591, %v2593
    %v2595 = vrot.slane %v2446, %v2594
    %v2597 = vunpack.c.l.s4 1966171168
    %v2598 = vunpack.c.0.s8 %v2597
    %v2599 = vlaneseq
    %v2600 = vshrl.u32 %v2599, 7
    %v2601 = vsub.s32 %v2598, %v2600
    %v2602 = vrot.slane %v2588, %v2601
    %v2603 = vcombine.high %v2595, %v2595
    %v2605 = vunpack.c.l.s4 1966171168
    %v2606 = vunpack.c.0.s8 %v2605
    %v2607 = vlaneseq
    %v2608 = vshrl.u32 %v2607, 7
    %v2609 = vsub.s32 %v2606, %v2608
    %v2610 = vrot.slane %v2595, %v2609
    %v2612 = vunpack.c.l.s4 1966171168
    %v2613 = vunpack.c.0.s8 %v2612
    %v2614 = vlaneseq
    %v2615 = vshrl.u32 %v2614, 7
    %v2616 = vsub.s32 %v2613, %v2615
    %v2617 = vrot.slane %v2602, %v2616
    %v2619 = vunpack.c.l.s4 1966171168
    %v2620 = vunpack.c.0.s8 %v2619
    %v2621 = vlaneseq
    %v2622 = vshrl.u32 %v2621, 7
    %v2623 = vsub.s32 %v2620, %v2622
    %v2624 = vrot.slane %v2603, %v2623
    %v2625 = vcombine.high %v2610, %v2610
    %v2626 = vcombine.high %v2624, %v2624
    %v2627 = vcombine.low %v2474, %v2488
    %v2628 = vcombine.low %v2496, %v2498
    %v2629 = vcombine.low %v2481, %v2495
    %v2630 = vcombine.low %v2497, %v2499
    %v2632 = vunpack.c.l.s4 1966171168
    %v2633 = vunpack.c.0.s8 %v2632
    %v2634 = vlaneseq
    %v2635 = vshrl.u32 %v2634, 7
    %v2636 = vsub.s32 %v2633, %v2635
    %v2637 = vrot.slane %v2627, %v2636
    %v2639 = vunpack.c.l.s4 1966171168
    %v2640 = vunpack.c.0.s8 %v2639
    %v2641 = vlaneseq
    %v2642 = vshrl.u32 %v2641, 7
    %v2643 = vsub.s32 %v2640, %v2642
    %v2644 = vrot.slane %v2628, %v2643
    %v2646 = vunpack.c.l.s4 1966171168
    %v2647 = vunpack.c.0.s8 %v2646
    %v2648 = vlaneseq
    %v2649 = vshrl.u32 %v2648, 7
    %v2650 = vsub.s32 %v2647, %v2649
    %v2651 = vrot.slane %v2629, %v2650
    %v2653 = vunpack.c.l.s4 1966171168
    %v2654 = vunpack.c.0.s8 %v2653
    %v2655 = vlaneseq
    %v2656 = vshrl.u32 %v2655, 7
    %v2657 = vsub.s32 %v2654, %v2656
    %v2658 = vrot.slane %v2630, %v2657
    %v2659 = vcombine.low %v2637, %v2644
    %v2660 = vcombine.low %v2651, %v2658
    %v2662 = vunpack.c.l.s4 1966171168
    %v2663 = vunpack.c.0.s8 %v2662
    %v2664 = vlaneseq
    %v2665 = vshrl.u32 %v2664, 7
    %v2666 = vsub.s32 %v2663, %v2665
    %v2667 = vrot.slane %v2659, %v2666
    %v2669 = vunpack.c.l.s4 1966171168
    %v2670 = vunpack.c.0.s8 %v2669
    %v2671 = vlaneseq
    %v2672 = vshrl.u32 %v2671, 7
    %v2673 = vsub.s32 %v2670, %v2672
    %v2674 = vrot.slane %v2660, %v2673
    %v2675 = vcombine.low %v2667, %v2674
    %v2676 = vcombine.low %v2522, %v2536
    %v2677 = vcombine.low %v2537, %v2538
    %v2678 = vcombine.low %v2529, %v2562
    %v2679 = vcombine.low %v2576, %v2584
    %v2681 = vunpack.c.l.s4 1966171168
    %v2682 = vunpack.c.0.s8 %v2681
    %v2683 = vlaneseq
    %v2684 = vshrl.u32 %v2683, 7
    %v2685 = vsub.s32 %v2682, %v2684
    %v2686 = vrot.slane %v2676, %v2685
    %v2688 = vunpack.c.l.s4 1966171168
    %v2689 = vunpack.c.0.s8 %v2688
    %v2690 = vlaneseq
    %v2691 = vshrl.u32 %v2690, 7
    %v2692 = vsub.s32 %v2689, %v2691
    %v2693 = vrot.slane %v2677, %v2692
    %v2695 = vunpack.c.l.s4 1966171168
    %v2696 = vunpack.c.0.s8 %v2695
    %v2697 = vlaneseq
    %v2698 = vshrl.u32 %v2697, 7
    %v2699 = vsub.s32 %v2696, %v2698
    %v2700 = vrot.slane %v2678, %v2699
    %v2702 = vunpack.c.l.s4 1966171168
    %v2703 = vunpack.c.0.s8 %v2702
    %v2704 = vlaneseq
    %v2705 = vshrl.u32 %v2704, 7
    %v2706 = vsub.s32 %v2703, %v2705
    %v2707 = vrot.slane %v2679, %v2706
    %v2708 = vcombine.low %v2686, %v2693
    %v2709 = vcombine.low %v2700, %v2707
    %v2711 = vunpack.c.l.s4 1966171168
    %v2712 = vunpack.c.0.s8 %v2711
    %v2713 = vlaneseq
    %v2714 = vshrl.u32 %v2713, 7
    %v2715 = vsub.s32 %v2712, %v2714
    %v2716 = vrot.slane %v2708, %v2715
    %v2718 = vunpack.c.l.s4 1966171168
    %v2719 = vunpack.c.0.s8 %v2718
    %v2720 = vlaneseq
    %v2721 = vshrl.u32 %v2720, 7
    %v2722 = vsub.s32 %v2719, %v2721
    %v2723 = vrot.slane %v2709, %v2722
    %v2724 = vcombine.low %v2716, %v2723
    %v2725 = vcombine.low %v2586, %v2569
    %v2726 = vcombine.low %v2583, %v2585
    %v2727 = vcombine.low %v2587, %v2610
    %v2728 = vcombine.low %v2624, %v2625
    %v2730 = vunpack.c.l.s4 1966171168
    %v2731 = vunpack.c.0.s8 %v2730
    %v2732 = vlaneseq
    %v2733 = vshrl.u32 %v2732, 7
    %v2734 = vsub.s32 %v2731, %v2733
    %v2735 = vrot.slane %v2725, %v2734
    %v2737 = vunpack.c.l.s4 1966171168
    %v2738 = vunpack.c.0.s8 %v2737
    %v2739 = vlaneseq
    %v2740 = vshrl.u32 %v2739, 7
    %v2741 = vsub.s32 %v2738, %v2740
    %v2742 = vrot.slane %v2726, %v2741
    %v2744 = vunpack.c.l.s4 1966171168
    %v2745 = vunpack.c.0.s8 %v2744
    %v2746 = vlaneseq
    %v2747 = vshrl.u32 %v2746, 7
    %v2748 = vsub.s32 %v2745, %v2747
    %v2749 = vrot.slane %v2727, %v2748
    %v2751 = vunpack.c.l.s4 1966171168
    %v2752 = vunpack.c.0.s8 %v2751
    %v2753 = vlaneseq
    %v2754 = vshrl.u32 %v2753, 7
    %v2755 = vsub.s32 %v2752, %v2754
    %v2756 = vrot.slane %v2728, %v2755
    %v2757 = vcombine.low %v2735, %v2742
    %v2758 = vcombine.low %v2749, %v2756
    %v2760 = vunpack.c.l.s4 1966171168
    %v2761 = vunpack.c.0.s8 %v2760
    %v2762 = vlaneseq
    %v2763 = vshrl.u32 %v2762, 7
    %v2764 = vsub.s32 %v2761, %v2763
    %v2765 = vrot.slane %v2757, %v2764
    %v2767 = vunpack.c.l.s4 1966171168
    %v2768 = vunpack.c.0.s8 %v2767
    %v2769 = vlaneseq
    %v2770 = vshrl.u32 %v2769, 7
    %v2771 = vsub.s32 %v2768, %v2770
    %v2772 = vrot.slane %v2758, %v2771
    %v2773 = vcombine.low %v2765, %v2772
    %v2774 = vcombine.low %v2626, %v2617
    %v2776 = vunpack.c.l.s4 1966171168
    %v2777 = vunpack.c.0.s8 %v2776
    %v2778 = vlaneseq
    %v2779 = vshrl.u32 %v2778, 7
    %v2780 = vsub.s32 %v2777, %v2779
    %v2781 = vrot.slane %v2774, %v2780
    %v2783 = vunpack.c.l.s4 1966171168
    %v2784 = vunpack.c.0.s8 %v2783
    %v2785 = vlaneseq
    %v2786 = vshrl.u32 %v2785, 7
    %v2787 = vsub.s32 %v2784, %v2786
    %v2788 = vrot.slane %v2781, %v2787
    %v2793 = vpack.c.bf16 %v2724, %v2675
    %v2794 = vpack.c.bf16 %v2788, %v2773
    %s2795 = scalar_lea.vmem %s5, 64
    %v2796 = vld [vmem:[%s2795] sm:$0xf]
    %v2797 = vld [vmem:[%s2795 + $0x4] sm:$0xf]
    %v2798 = vld [vmem:[%s2795 + $0x8] sm:$0xf]
    %v2799 = vld [vmem:[%s2795 + $0xc] sm:$0xf]
    %v2800 = vld [vmem:[%s2795 + $0x10] sm:$0xf]
    %v2801 = vld [vmem:[%s2795 + $0x14] sm:$0xf]
    %v2802 = vld [vmem:[%s2795 + $0x18] sm:$0xf]
    %v2803 = vld [vmem:[%s2795 + $0x1c] sm:$0xf]
    %v2804 = vld [vmem:[%s2795 + $0x20] sm:$0xf]
    %v2805 = vld [vmem:[%s2795 + $0x24] sm:$0xf]
    %v2806 = vld [vmem:[%s2795 + $0x28] sm:$0xf]
    %v2807 = vld [vmem:[%s2795 + $0x2c] sm:$0xf]
    %v2808 = vld [vmem:[%s2795 + $0x30] sm:$0xf]
    %v2809 = vld [vmem:[%s2795 + $0x34] sm:$0xf]
    %v2810 = vld [vmem:[%s2795 + $0x38] sm:$0xf]
    %v2811 = vld [vmem:[%s2795 + $0x3c] sm:$0xf]
    %v2828 = vunpack.c.l.b16 %v2796
    %v2829 = vunpack.c.l.b16 %v2797
    %v2830 = vunpack.c.l.b16 %v2798
    %v2831 = vunpack.c.l.b16 %v2799
    %v2832 = vunpack.c.l.b16 %v2800
    %v2833 = vunpack.c.l.b16 %v2801
    %v2834 = vunpack.c.l.b16 %v2802
    %v2835 = vunpack.c.l.b16 %v2803
    %v2836 = vunpack.c.l.b16 %v2804
    %v2837 = vunpack.c.l.b16 %v2805
    %v2838 = vunpack.c.l.b16 %v2806
    %v2839 = vunpack.c.l.b16 %v2807
    %v2840 = vunpack.c.l.b16 %v2808
    %v2841 = vunpack.c.l.b16 %v2809
    %v2842 = vunpack.c.l.b16 %v2810
    %v2843 = vunpack.c.l.b16 %v2811
    %v2844 = vpack.c.b16 %v2829, %v2828
    %v2845 = vpack.c.b16 %v2831, %v2830
    %v2846 = vpack.c.b16 %v2833, %v2832
    %v2847 = vpack.c.b16 %v2835, %v2834
    %v2848 = vpack.c.b16 %v2837, %v2836
    %v2849 = vpack.c.b16 %v2839, %v2838
    %v2850 = vpack.c.b16 %v2841, %v2840
    %v2851 = vpack.c.b16 %v2843, %v2842
    %2860 = vmatprep.subr.bf16.mxu0 0
    %2861 = vmatpush1.bf16.msra.mxu0 %v2844
    %2862 = vmatprep.subr.bf16.mxu0 0
    %2863 = vmatpush1.bf16.msra.mxu0 %v2845
    %2864 = vmatprep.subr.bf16.mxu0 0
    %2865 = vmatpush1.bf16.msra.mxu0 %v2846
    %2866 = vmatprep.subr.bf16.mxu0 0
    %2867 = vmatpush1.bf16.msra.mxu0 %v2847
    %2868 = vmatprep.subr.bf16.mxu0 0
    %2869 = vmatpush1.bf16.msra.mxu0 %v2848
    %2870 = vmatprep.subr.bf16.mxu0 0
    %2871 = vmatpush1.bf16.msra.mxu0 %v2849
    %2872 = vmatprep.subr.bf16.mxu0 0
    %2873 = vmatpush1.bf16.msra.mxu0 %v2850
    %2874 = vmatprep.subr.bf16.mxu0 0
    %2875 = vmatpush1.bf16.msra.mxu0 %v2851
    %2876 = vmatprep.subr.bf16.mxu0 0
    %2877 = vmatpush1.bf16.msra.mxu0 0
    %2878 = vmatprep.subr.bf16.mxu0 0
    %2879 = vmatpush1.bf16.msra.mxu0 0
    %2880 = vmatprep.subr.bf16.mxu0 0
    %2881 = vmatpush1.bf16.msra.mxu0 0
    %2882 = vmatprep.subr.bf16.mxu0 0
    %2883 = vmatpush1.bf16.msra.mxu0 0
    %2884 = vmatprep.subr.bf16.mxu0 0
    %2885 = vmatpush1.bf16.msra.mxu0 0
    %2886 = vmatprep.subr.bf16.mxu0 0
    %2887 = vmatpush1.bf16.msra.mxu0 0
    %2888 = vmatprep.subr.bf16.mxu0 0
    %2889 = vmatpush1.bf16.msra.mxu0 0
    %2890 = vmatprep.subr.bf16.mxu0 0
    %2891 = vmatpush1.bf16.msra.mxu0 0
    %2892 = vmatprep.mubr.bf16.mxu0 0
    %2893 = vmatmul.mubr.bf16.gmra.mrb[0].mxu0 %v2793
    %v2894 = vpop.f32.mrb[0].mxu0
    %v2895 = vadd.f32 0.0, %v2894
    %v2896 = vpop.f32.mrb[0].mxu0
    %v2897 = vpop.f32.mrb[0].mxu0
    %v2898 = vadd.f32 0.0, %v2897
    %v2899 = vpop.f32.mrb[0].mxu0
    %2900 = vmatprep.mubr.bf16.mxu0 0
    %2901 = vmatmul.mubr.bf16.gmra.mrb[0].mxu0 %v2794
    %v2902 = vpop.f32.mrb[0].mxu0
    %v2903 = vadd.f32 0.0, %v2902
    %v2904 = vpop.f32.mrb[0].mxu0
    %v2905 = vpop.f32.mrb[0].mxu0
    %v2906 = vadd.f32 0.0, %v2905
    %v2907 = vpop.f32.mrb[0].mxu0
    %2908 = vdwg.mxu0
    %v2913 = vcombine.high %v2895, %v2895
    %v2915 = vunpack.c.l.s4 1966171168
    %v2916 = vunpack.c.0.s8 %v2915
    %v2917 = vlaneseq
    %v2918 = vshrl.u32 %v2917, 7
    %v2919 = vsub.s32 %v2916, %v2918
    %v2920 = vrot.slane %v2895, %v2919
    %v2922 = vunpack.c.l.s4 1966171168
    %v2923 = vunpack.c.0.s8 %v2922
    %v2924 = vlaneseq
    %v2925 = vshrl.u32 %v2924, 7
    %v2926 = vsub.s32 %v2923, %v2925
    %v2927 = vrot.slane %v2913, %v2926
    %v2928 = vcombine.high %v2920, %v2920
    %v2929 = vcombine.high %v2927, %v2927
    %v2931 = vunpack.c.l.s4 1966171168
    %v2932 = vunpack.c.0.s8 %v2931
    %v2933 = vlaneseq
    %v2934 = vshrl.u32 %v2933, 7
    %v2935 = vsub.s32 %v2932, %v2934
    %v2936 = vrot.slane %v2920, %v2935
    %v2938 = vunpack.c.l.s4 1966171168
    %v2939 = vunpack.c.0.s8 %v2938
    %v2940 = vlaneseq
    %v2941 = vshrl.u32 %v2940, 7
    %v2942 = vsub.s32 %v2939, %v2941
    %v2943 = vrot.slane %v2927, %v2942
    %v2945 = vunpack.c.l.s4 1966171168
    %v2946 = vunpack.c.0.s8 %v2945
    %v2947 = vlaneseq
    %v2948 = vshrl.u32 %v2947, 7
    %v2949 = vsub.s32 %v2946, %v2948
    %v2950 = vrot.slane %v2928, %v2949
    %v2952 = vunpack.c.l.s4 1966171168
    %v2953 = vunpack.c.0.s8 %v2952
    %v2954 = vlaneseq
    %v2955 = vshrl.u32 %v2954, 7
    %v2956 = vsub.s32 %v2953, %v2955
    %v2957 = vrot.slane %v2929, %v2956
    %v2958 = vcombine.high %v2936, %v2936
    %v2959 = vcombine.high %v2943, %v2943
    %v2960 = vcombine.high %v2950, %v2950
    %v2961 = vcombine.high %v2957, %v2957
    %v2962 = vcombine.high %v2898, %v2898
    %v2964 = vunpack.c.l.s4 1966171168
    %v2965 = vunpack.c.0.s8 %v2964
    %v2966 = vlaneseq
    %v2967 = vshrl.u32 %v2966, 7
    %v2968 = vsub.s32 %v2965, %v2967
    %v2969 = vrot.slane %v2898, %v2968
    %v2971 = vunpack.c.l.s4 1966171168
    %v2972 = vunpack.c.0.s8 %v2971
    %v2973 = vlaneseq
    %v2974 = vshrl.u32 %v2973, 7
    %v2975 = vsub.s32 %v2972, %v2974
    %v2976 = vrot.slane %v2962, %v2975
    %v2977 = vcombine.high %v2969, %v2969
    %v2978 = vcombine.high %v2976, %v2976
    %v2980 = vunpack.c.l.s4 1966171168
    %v2981 = vunpack.c.0.s8 %v2980
    %v2982 = vlaneseq
    %v2983 = vshrl.u32 %v2982, 7
    %v2984 = vsub.s32 %v2981, %v2983
    %v2985 = vrot.slane %v2969, %v2984
    %v2987 = vunpack.c.l.s4 1966171168
    %v2988 = vunpack.c.0.s8 %v2987
    %v2989 = vlaneseq
    %v2990 = vshrl.u32 %v2989, 7
    %v2991 = vsub.s32 %v2988, %v2990
    %v2992 = vrot.slane %v2976, %v2991
    %v2994 = vunpack.c.l.s4 1966171168
    %v2995 = vunpack.c.0.s8 %v2994
    %v2996 = vlaneseq
    %v2997 = vshrl.u32 %v2996, 7
    %v2998 = vsub.s32 %v2995, %v2997
    %v2999 = vrot.slane %v2977, %v2998
    %v3001 = vunpack.c.l.s4 1966171168
    %v3002 = vunpack.c.0.s8 %v3001
    %v3003 = vlaneseq
    %v3004 = vshrl.u32 %v3003, 7
    %v3005 = vsub.s32 %v3002, %v3004
    %v3006 = vrot.slane %v2978, %v3005
    %v3007 = vcombine.high %v2985, %v2985
    %v3008 = vcombine.high %v2992, %v2992
    %v3009 = vcombine.high %v2999, %v2999
    %v3010 = vcombine.high %v3006, %v3006
    %v3011 = vcombine.high %v2903, %v2903
    %v3013 = vunpack.c.l.s4 1966171168
    %v3014 = vunpack.c.0.s8 %v3013
    %v3015 = vlaneseq
    %v3016 = vshrl.u32 %v3015, 7
    %v3017 = vsub.s32 %v3014, %v3016
    %v3018 = vrot.slane %v2903, %v3017
    %v3020 = vunpack.c.l.s4 1966171168
    %v3021 = vunpack.c.0.s8 %v3020
    %v3022 = vlaneseq
    %v3023 = vshrl.u32 %v3022, 7
    %v3024 = vsub.s32 %v3021, %v3023
    %v3025 = vrot.slane %v3011, %v3024
    %v3026 = vcombine.high %v3018, %v3018
    %v3027 = vcombine.high %v3025, %v3025
    %v3029 = vunpack.c.l.s4 1966171168
    %v3030 = vunpack.c.0.s8 %v3029
    %v3031 = vlaneseq
    %v3032 = vshrl.u32 %v3031, 7
    %v3033 = vsub.s32 %v3030, %v3032
    %v3034 = vrot.slane %v3018, %v3033
    %v3036 = vunpack.c.l.s4 1966171168
    %v3037 = vunpack.c.0.s8 %v3036
    %v3038 = vlaneseq
    %v3039 = vshrl.u32 %v3038, 7
    %v3040 = vsub.s32 %v3037, %v3039
    %v3041 = vrot.slane %v3025, %v3040
    %v3043 = vunpack.c.l.s4 1966171168
    %v3044 = vunpack.c.0.s8 %v3043
    %v3045 = vlaneseq
    %v3046 = vshrl.u32 %v3045, 7
    %v3047 = vsub.s32 %v3044, %v3046
    %v3048 = vrot.slane %v3026, %v3047
    %v3050 = vunpack.c.l.s4 1966171168
    %v3051 = vunpack.c.0.s8 %v3050
    %v3052 = vlaneseq
    %v3053 = vshrl.u32 %v3052, 7
    %v3054 = vsub.s32 %v3051, %v3053
    %v3055 = vrot.slane %v3027, %v3054
    %v3056 = vcombine.high %v3034, %v3034
    %v3057 = vcombine.high %v3041, %v3041
    %v3058 = vcombine.high %v3048, %v3048
    %v3059 = vcombine.high %v3055, %v3055
    %v3061 = vunpack.c.l.s4 1966171168
    %v3062 = vunpack.c.0.s8 %v3061
    %v3063 = vlaneseq
    %v3064 = vshrl.u32 %v3063, 7
    %v3065 = vsub.s32 %v3062, %v3064
    %v3066 = vrot.slane %v2906, %v3065
    %v3067 = vcombine.high %v3066, %v3066
    %v3069 = vunpack.c.l.s4 1966171168
    %v3070 = vunpack.c.0.s8 %v3069
    %v3071 = vlaneseq
    %v3072 = vshrl.u32 %v3071, 7
    %v3073 = vsub.s32 %v3070, %v3072
    %v3074 = vrot.slane %v3066, %v3073
    %v3076 = vunpack.c.l.s4 1966171168
    %v3077 = vunpack.c.0.s8 %v3076
    %v3078 = vlaneseq
    %v3079 = vshrl.u32 %v3078, 7
    %v3080 = vsub.s32 %v3077, %v3079
    %v3081 = vrot.slane %v3067, %v3080
    %s3108 = scalar_lea.vmem %s6, 1
    %v3109 = vld [vmem:[%s3108] sm:$0x1]
    %v3111 = vlaneseq
    %v3112 = vshrl.u32 %v3111, 7
    %v3113 = vsub.s32 0, %v3112
    %v3114 = vrot.slane %v3109, %v3113
    %v3115 = vcombine.high %v3114, %v3114
    %v3117 = vunpack.c.l.s4 1966171168
    %v3118 = vunpack.c.0.s8 %v3117
    %v3119 = vlaneseq
    %v3120 = vshrl.u32 %v3119, 7
    %v3121 = vsub.s32 %v3118, %v3120
    %v3122 = vrot.slane %v3114, %v3121
    %v3124 = vunpack.c.l.s4 1966171168
    %v3125 = vunpack.c.0.s8 %v3124
    %v3126 = vlaneseq
    %v3127 = vshrl.u32 %v3126, 7
    %v3128 = vsub.s32 %v3125, %v3127
    %v3129 = vrot.slane %v3115, %v3128
    %v3130 = vcombine.high %v3122, %v3122
    %v3131 = vcombine.high %v3129, %v3129
    %v3133 = vunpack.c.l.s4 1966171168
    %v3134 = vunpack.c.0.s8 %v3133
    %v3135 = vlaneseq
    %v3136 = vshrl.u32 %v3135, 7
    %v3137 = vsub.s32 %v3134, %v3136
    %v3138 = vrot.slane %v3122, %v3137
    %v3140 = vunpack.c.l.s4 1966171168
    %v3141 = vunpack.c.0.s8 %v3140
    %v3142 = vlaneseq
    %v3143 = vshrl.u32 %v3142, 7
    %v3144 = vsub.s32 %v3141, %v3143
    %v3145 = vrot.slane %v3129, %v3144
    %v3147 = vunpack.c.l.s4 1966171168
    %v3148 = vunpack.c.0.s8 %v3147
    %v3149 = vlaneseq
    %v3150 = vshrl.u32 %v3149, 7
    %v3151 = vsub.s32 %v3148, %v3150
    %v3152 = vrot.slane %v3130, %v3151
    %v3154 = vunpack.c.l.s4 1966171168
    %v3155 = vunpack.c.0.s8 %v3154
    %v3156 = vlaneseq
    %v3157 = vshrl.u32 %v3156, 7
    %v3158 = vsub.s32 %v3155, %v3157
    %v3159 = vrot.slane %v3131, %v3158
    %v3160 = vcombine.high %v3138, %v3138
    %v3161 = vcombine.high %v3145, %v3145
    %v3162 = vcombine.high %v3152, %v3152
    %v3163 = vcombine.high %v3159, %v3159
    %v3172 = vadd.f32 %v2936, %v3138
    %v3173 = vadd.f32 %v2950, %v3152
    %v3174 = vadd.f32 %v2958, %v3160
    %v3175 = vadd.f32 %v2960, %v3162
    %v3176 = vadd.f32 %v2943, %v3145
    %v3177 = vadd.f32 %v2957, %v3159
    %v3178 = vadd.f32 %v2959, %v3161
    %v3179 = vadd.f32 %v2961, %v3163
    %v3180 = vadd.f32 %v2985, %v3138
    %v3181 = vadd.f32 %v2999, %v3152
    %v3182 = vadd.f32 %v3007, %v3160
    %v3183 = vadd.f32 %v3009, %v3162
    %v3184 = vadd.f32 %v2992, %v3145
    %v3185 = vadd.f32 %v3006, %v3138
    %v3186 = vadd.f32 %v3008, %v3152
    %v3187 = vadd.f32 %v3010, %v3160
    %v3188 = vadd.f32 %v3034, %v3162
    %v3189 = vadd.f32 %v3048, %v3145
    %v3190 = vadd.f32 %v3056, %v3159
    %v3191 = vadd.f32 %v3058, %v3161
    %v3192 = vadd.f32 %v3041, %v3163
    %v3193 = vadd.f32 %v3055, %v3138
    %v3194 = vadd.f32 %v3057, %v3152
    %v3195 = vadd.f32 %v3059, %v3160
    %v3196 = vadd.f32 %v3074, %v3162
    %v3197 = vadd.f32 %v3081, %v3145
    %v3198 = vmax.f32 %v3172, 0.0
    %v3199 = vmax.f32 %v3173, 0.0
    %v3200 = vmax.f32 %v3174, 0.0
    %v3201 = vmax.f32 %v3175, 0.0
    %v3202 = vmax.f32 %v3176, 0.0
    %v3203 = vmax.f32 %v3177, 0.0
    %v3204 = vmax.f32 %v3178, 0.0
    %v3205 = vmax.f32 %v3179, 0.0
    %v3206 = vmax.f32 %v3180, 0.0
    %v3207 = vmax.f32 %v3181, 0.0
    %v3208 = vmax.f32 %v3182, 0.0
    %v3209 = vmax.f32 %v3183, 0.0
    %v3210 = vmax.f32 %v3184, 0.0
    %v3211 = vmax.f32 %v3185, 0.0
    %v3212 = vmax.f32 %v3186, 0.0
    %v3213 = vmax.f32 %v3187, 0.0
    %v3214 = vmax.f32 %v3188, 0.0
    %v3215 = vmax.f32 %v3189, 0.0
    %v3216 = vmax.f32 %v3190, 0.0
    %v3217 = vmax.f32 %v3191, 0.0
    %v3218 = vmax.f32 %v3192, 0.0
    %v3219 = vmax.f32 %v3193, 0.0
    %v3220 = vmax.f32 %v3194, 0.0
    %v3221 = vmax.f32 %v3195, 0.0
    %v3222 = vmax.f32 %v3196, 0.0
    %v3223 = vmax.f32 %v3197, 0.0
    %v3250 = vcombine.low %v3198, %v3199
    %v3251 = vcombine.low %v3200, %v3201
    %v3252 = vcombine.low %v3202, %v3203
    %v3253 = vcombine.low %v3204, %v3205
    %v3255 = vunpack.c.l.s4 1966171168
    %v3256 = vunpack.c.0.s8 %v3255
    %v3257 = vlaneseq
    %v3258 = vshrl.u32 %v3257, 7
    %v3259 = vsub.s32 %v3256, %v3258
    %v3260 = vrot.slane %v3250, %v3259
    %v3262 = vunpack.c.l.s4 1966171168
    %v3263 = vunpack.c.0.s8 %v3262
    %v3264 = vlaneseq
    %v3265 = vshrl.u32 %v3264, 7
    %v3266 = vsub.s32 %v3263, %v3265
    %v3267 = vrot.slane %v3251, %v3266
    %v3269 = vunpack.c.l.s4 1966171168
    %v3270 = vunpack.c.0.s8 %v3269
    %v3271 = vlaneseq
    %v3272 = vshrl.u32 %v3271, 7
    %v3273 = vsub.s32 %v3270, %v3272
    %v3274 = vrot.slane %v3252, %v3273
    %v3276 = vunpack.c.l.s4 1966171168
    %v3277 = vunpack.c.0.s8 %v3276
    %v3278 = vlaneseq
    %v3279 = vshrl.u32 %v3278, 7
    %v3280 = vsub.s32 %v3277, %v3279
    %v3281 = vrot.slane %v3253, %v3280
    %v3282 = vcombine.low %v3260, %v3267
    %v3283 = vcombine.low %v3274, %v3281
    %v3285 = vunpack.c.l.s4 1966171168
    %v3286 = vunpack.c.0.s8 %v3285
    %v3287 = vlaneseq
    %v3288 = vshrl.u32 %v3287, 7
    %v3289 = vsub.s32 %v3286, %v3288
    %v3290 = vrot.slane %v3282, %v3289
    %v3292 = vunpack.c.l.s4 1966171168
    %v3293 = vunpack.c.0.s8 %v3292
    %v3294 = vlaneseq
    %v3295 = vshrl.u32 %v3294, 7
    %v3296 = vsub.s32 %v3293, %v3295
    %v3297 = vrot.slane %v3283, %v3296
    %v3298 = vcombine.low %v3290, %v3297
    %v3299 = vcombine.low %v3206, %v3207
    %v3300 = vcombine.low %v3208, %v3209
    %v3302 = vunpack.c.l.s4 1966171168
    %v3303 = vunpack.c.0.s8 %v3302
    %v3304 = vlaneseq
    %v3305 = vshrl.u32 %v3304, 7
    %v3306 = vsub.s32 %v3303, %v3305
    %v3307 = vrot.slane %v3299, %v3306
    %v3309 = vunpack.c.l.s4 1966171168
    %v3310 = vunpack.c.0.s8 %v3309
    %v3311 = vlaneseq
    %v3312 = vshrl.u32 %v3311, 7
    %v3313 = vsub.s32 %v3310, %v3312
    %v3314 = vrot.slane %v3300, %v3313
    %v3316 = vunpack.c.l.s4 1966171168
    %v3317 = vunpack.c.0.s8 %v3316
    %v3318 = vlaneseq
    %v3319 = vshrl.u32 %v3318, 7
    %v3320 = vsub.s32 %v3317, %v3319
    %v3321 = vrot.slane %v3210, %v3320
    %v3322 = vcombine.low %v3307, %v3314
    %v3324 = vunpack.c.l.s4 1966171168
    %v3325 = vunpack.c.0.s8 %v3324
    %v3326 = vlaneseq
    %v3327 = vshrl.u32 %v3326, 7
    %v3328 = vsub.s32 %v3325, %v3327
    %v3329 = vrot.slane %v3322, %v3328
    %v3331 = vunpack.c.l.s4 1966171168
    %v3332 = vunpack.c.0.s8 %v3331
    %v3333 = vlaneseq
    %v3334 = vshrl.u32 %v3333, 7
    %v3335 = vsub.s32 %v3332, %v3334
    %v3336 = vrot.slane %v3321, %v3335
    %v3337 = vcombine.low %v3329, %v3336
    %v3338 = vcombine.low %v3211, %v3212
    %v3339 = vcombine.low %v3213, %v3214
    %v3340 = vcombine.low %v3215, %v3216
    %v3341 = vcombine.low %v3217, %v3218
    %v3343 = vunpack.c.l.s4 1966171168
    %v3344 = vunpack.c.0.s8 %v3343
    %v3345 = vlaneseq
    %v3346 = vshrl.u32 %v3345, 7
    %v3347 = vsub.s32 %v3344, %v3346
    %v3348 = vrot.slane %v3338, %v3347
    %v3350 = vunpack.c.l.s4 1966171168
    %v3351 = vunpack.c.0.s8 %v3350
    %v3352 = vlaneseq
    %v3353 = vshrl.u32 %v3352, 7
    %v3354 = vsub.s32 %v3351, %v3353
    %v3355 = vrot.slane %v3339, %v3354
    %v3357 = vunpack.c.l.s4 1966171168
    %v3358 = vunpack.c.0.s8 %v3357
    %v3359 = vlaneseq
    %v3360 = vshrl.u32 %v3359, 7
    %v3361 = vsub.s32 %v3358, %v3360
    %v3362 = vrot.slane %v3340, %v3361
    %v3364 = vunpack.c.l.s4 1966171168
    %v3365 = vunpack.c.0.s8 %v3364
    %v3366 = vlaneseq
    %v3367 = vshrl.u32 %v3366, 7
    %v3368 = vsub.s32 %v3365, %v3367
    %v3369 = vrot.slane %v3341, %v3368
    %v3370 = vcombine.low %v3348, %v3355
    %v3371 = vcombine.low %v3362, %v3369
    %v3373 = vunpack.c.l.s4 1966171168
    %v3374 = vunpack.c.0.s8 %v3373
    %v3375 = vlaneseq
    %v3376 = vshrl.u32 %v3375, 7
    %v3377 = vsub.s32 %v3374, %v3376
    %v3378 = vrot.slane %v3370, %v3377
    %v3380 = vunpack.c.l.s4 1966171168
    %v3381 = vunpack.c.0.s8 %v3380
    %v3382 = vlaneseq
    %v3383 = vshrl.u32 %v3382, 7
    %v3384 = vsub.s32 %v3381, %v3383
    %v3385 = vrot.slane %v3371, %v3384
    %v3386 = vcombine.low %v3378, %v3385
    %v3387 = vcombine.low %v3219, %v3220
    %v3388 = vcombine.low %v3221, %v3222
    %v3390 = vunpack.c.l.s4 1966171168
    %v3391 = vunpack.c.0.s8 %v3390
    %v3392 = vlaneseq
    %v3393 = vshrl.u32 %v3392, 7
    %v3394 = vsub.s32 %v3391, %v3393
    %v3395 = vrot.slane %v3387, %v3394
    %v3397 = vunpack.c.l.s4 1966171168
    %v3398 = vunpack.c.0.s8 %v3397
    %v3399 = vlaneseq
    %v3400 = vshrl.u32 %v3399, 7
    %v3401 = vsub.s32 %v3398, %v3400
    %v3402 = vrot.slane %v3388, %v3401
    %v3404 = vunpack.c.l.s4 1966171168
    %v3405 = vunpack.c.0.s8 %v3404
    %v3406 = vlaneseq
    %v3407 = vshrl.u32 %v3406, 7
    %v3408 = vsub.s32 %v3405, %v3407
    %v3409 = vrot.slane %v3223, %v3408
    %v3410 = vcombine.low %v3395, %v3402
    %v3412 = vunpack.c.l.s4 1966171168
    %v3413 = vunpack.c.0.s8 %v3412
    %v3414 = vlaneseq
    %v3415 = vshrl.u32 %v3414, 7
    %v3416 = vsub.s32 %v3413, %v3415
    %v3417 = vrot.slane %v3410, %v3416
    %v3419 = vunpack.c.l.s4 1966171168
    %v3420 = vunpack.c.0.s8 %v3419
    %v3421 = vlaneseq
    %v3422 = vshrl.u32 %v3421, 7
    %v3423 = vsub.s32 %v3420, %v3422
    %v3424 = vrot.slane %v3409, %v3423
    %v3425 = vcombine.low %v3417, %v3424
    %v3430 = vsel %vm582, %v3298, -inf
    %v3431 = vsel %vm1607, %v3337, -inf
    %v3432 = vmax.f32 %v3430, %v3431
    %v3433 = vrot.slane %v3432, 4
    %v3434 = vmax.f32 %v3432, %v3433
    %v3435 = vrot.slane %v3434, 2
    %v3436 = vmax.f32 %v3434, %v3435
    %v3437 = vrot.slane %v3436, 1
    %v3438 = vmax.f32 %v3436, %v3437
    %v3439 = vsel %vm582, %v3386, -inf
    %v3440 = vsel %vm1607, %v3425, -inf
    %v3441 = vmax.f32 %v3439, %v3440
    %v3442 = vrot.slane %v3441, 4
    %v3443 = vmax.f32 %v3441, %v3442
    %v3444 = vrot.slane %v3443, 2
    %v3445 = vmax.f32 %v3443, %v3444
    %v3446 = vrot.slane %v3445, 1
    %v3447 = vmax.f32 %v3445, %v3446
    %v3448 = vrot.slane %v1896, 4
    %v3449 = vrot.slane %v1898, 4
    %v3450 = vsel %vm1625, %v3448, %v3449
    %v3451 = vrot.slane %v1900, 4
    %v3452 = vrot.slane %v1902, 4
    %v3453 = vsel %vm1625, %v3451, %v3452
    %v3454 = vcombine.low %v2443, %v3450
    %v3455 = vcombine.high %v2443, %v3450
    %v3456 = vcombine.low %v2444, %v3449
    %v3457 = vcombine.low %v2445, %v3453
    %v3458 = vcombine.high %v2445, %v3453
    %v3459 = vcombine.low %v2446, %v3452
    %v3460 = vcombine.low %v3454, %v3455
    %v3461 = vcombine.high %v3454, %v3455
    %v3462 = vcombine.low %v3456, %v3457
    %v3463 = vcombine.high %v3456, %v3457
    %v3464 = vcombine.low %v3458, %v3459
    %v3465 = vcombine.high %v3458, %v3459
    %v3472 = vpack.c.bf16 %v3462, %v3460
    %v3473 = vpack.c.bf16 %v3463, %v3461
    %v3474 = vpack.c.bf16 %v3464, %v3464
    %v3475 = vpack.c.bf16 %v3465, %v3465
    %s3476 = scalar_lea.vmem %s7, 80
    %v3477 = vld [vmem:[%s3476] sm:$0xf]
    %v3478 = vld [vmem:[%s3476 + $0x4] sm:$0xf]
    %v3479 = vld [vmem:[%s3476 + $0x8] sm:$0xf]
    %v3480 = vld [vmem:[%s3476 + $0xc] sm:$0xf]
    %v3481 = vld [vmem:[%s3476 + $0x10] sm:$0xf]
    %v3482 = vld [vmem:[%s3476 + $0x14] sm:$0xf]
    %v3483 = vld [vmem:[%s3476 + $0x18] sm:$0xf]
    %v3484 = vld [vmem:[%s3476 + $0x1c] sm:$0xf]
    %v3485 = vld [vmem:[%s3476 + $0x20] sm:$0xf]
    %v3486 = vld [vmem:[%s3476 + $0x24] sm:$0xf]
    %v3487 = vld [vmem:[%s3476 + $0x28] sm:$0xf]
    %v3488 = vld [vmem:[%s3476 + $0x2c] sm:$0xf]
    %v3489 = vld [vmem:[%s3476 + $0x30] sm:$0xf]
    %v3490 = vld [vmem:[%s3476 + $0x34] sm:$0xf]
    %v3491 = vld [vmem:[%s3476 + $0x38] sm:$0xf]
    %v3492 = vld [vmem:[%s3476 + $0x3c] sm:$0xf]
    %v3493 = vld [vmem:[%s3476 + $0x40] sm:$0xf]
    %v3494 = vld [vmem:[%s3476 + $0x44] sm:$0xf]
    %v3495 = vld [vmem:[%s3476 + $0x48] sm:$0xf]
    %v3496 = vld [vmem:[%s3476 + $0x4c] sm:$0xf]
    %v3517 = vunpack.c.l.b16 %v3477
    %v3518 = vunpack.c.l.b16 %v3478
    %v3519 = vunpack.c.l.b16 %v3479
    %v3520 = vunpack.c.l.b16 %v3480
    %v3521 = vunpack.c.l.b16 %v3481
    %v3522 = vunpack.c.l.b16 %v3482
    %v3523 = vunpack.c.l.b16 %v3483
    %v3524 = vunpack.c.l.b16 %v3484
    %v3525 = vunpack.c.l.b16 %v3485
    %v3526 = vunpack.c.l.b16 %v3486
    %v3527 = vunpack.c.l.b16 %v3487
    %v3528 = vunpack.c.l.b16 %v3488
    %v3529 = vunpack.c.l.b16 %v3489
    %v3530 = vunpack.c.l.b16 %v3490
    %v3531 = vunpack.c.l.b16 %v3491
    %v3532 = vunpack.c.l.b16 %v3492
    %v3533 = vunpack.c.l.b16 %v3493
    %v3534 = vunpack.c.l.b16 %v3494
    %v3535 = vunpack.c.l.b16 %v3495
    %v3536 = vunpack.c.l.b16 %v3496
    %v3537 = vpack.c.b16 %v3518, %v3517
    %v3538 = vpack.c.b16 %v3520, %v3519
    %v3539 = vpack.c.b16 %v3522, %v3521
    %v3540 = vpack.c.b16 %v3524, %v3523
    %v3541 = vpack.c.b16 %v3526, %v3525
    %v3542 = vpack.c.b16 %v3528, %v3527
    %v3543 = vpack.c.b16 %v3530, %v3529
    %v3544 = vpack.c.b16 %v3532, %v3531
    %v3545 = vpack.c.b16 %v3534, %v3533
    %v3546 = vpack.c.b16 %v3536, %v3535
    %v3558 = vsel %vm117, %v3473, 0
    %v3561 = vsel %vm117, %v3475, 0
    %3563 = vmatprep.subr.bf16.mxu0 0
    %3564 = vmatpush1.bf16.msra.mxu0 %v3537
    %3565 = vmatprep.subr.bf16.mxu0 0
    %3566 = vmatpush1.bf16.msra.mxu0 %v3538
    %3567 = vmatprep.subr.bf16.mxu0 0
    %3568 = vmatpush1.bf16.msra.mxu0 %v3539
    %3569 = vmatprep.subr.bf16.mxu0 0
    %3570 = vmatpush1.bf16.msra.mxu0 %v3540
    %3571 = vmatprep.subr.bf16.mxu0 0
    %3572 = vmatpush1.bf16.msra.mxu0 %v3541
    %3573 = vmatprep.subr.bf16.mxu0 0
    %3574 = vmatpush1.bf16.msra.mxu0 %v3542
    %3575 = vmatprep.subr.bf16.mxu0 0
    %3576 = vmatpush1.bf16.msra.mxu0 %v3543
    %3577 = vmatprep.subr.bf16.mxu0 0
    %3578 = vmatpush1.bf16.msra.mxu0 %v3544
    %3579 = vmatprep.subr.bf16.mxu0 0
    %3580 = vmatpush1.bf16.msra.mxu0 %v3545
    %3581 = vmatprep.subr.bf16.mxu0 0
    %3582 = vmatpush1.bf16.msra.mxu0 %v3546
    %3583 = vmatprep.subr.bf16.mxu0 0
    %3584 = vmatpush1.bf16.msra.mxu0 0
    %3585 = vmatprep.subr.bf16.mxu0 0
    %3586 = vmatpush1.bf16.msra.mxu0 0
    %3587 = vmatprep.subr.bf16.mxu0 0
    %3588 = vmatpush1.bf16.msra.mxu0 0
    %3589 = vmatprep.subr.bf16.mxu0 0
    %3590 = vmatpush1.bf16.msra.mxu0 0
    %3591 = vmatprep.subr.bf16.mxu0 0
    %3592 = vmatpush1.bf16.msra.mxu0 0
    %3593 = vmatprep.subr.bf16.mxu0 0
    %3594 = vmatpush1.bf16.msra.mxu0 0
    %3595 = vmatprep.mubr.bf16.mxu0 %v3558
    %3596 = vmatmul.mubr.bf16.gmra.mrb[0].mxu0 %v3472
    %v3597 = vpop.f32.mrb[0].mxu0
    %v3598 = vadd.f32 0.0, %v3597
    %v3599 = vpop.f32.mrb[0].mxu0
    %v3600 = vpop.f32.mrb[0].mxu0
    %v3601 = vadd.f32 0.0, %v3600
    %v3602 = vpop.f32.mrb[0].mxu0
    %3603 = vmatprep.mubr.bf16.mxu0 %v3561
    %3604 = vmatmul.mubr.bf16.gmra.mrb[0].mxu0 %v3474
    %v3605 = vpop.f32.mrb[0].mxu0
    %v3606 = vadd.f32 0.0, %v3605
    %v3607 = vpop.f32.mrb[0].mxu0
    %v3608 = vpop.f32.mrb[0].mxu0
    %v3609 = vpop.f32.mrb[0].mxu0
    %3610 = vdwg.mxu0
    %v3614 = vcombine.high %v3598, %v3598
    %v3615 = vcombine.high %v3601, %v3601
    %v3616 = vcombine.high %v3606, %v3606
    %s3620 = scalar_lea.vmem %s8, 1
    %v3621 = vld [vmem:[%s3620] sm:$0x1]
    %v3623 = vlaneseq
    %v3624 = vshrl.u32 %v3623, 7
    %v3625 = vsub.s32 0, %v3624
    %v3626 = vrot.slane %v3621, %v3625
    %v3628 = vcombine.high %v3626, %v3626
    %v3630 = vadd.f32 %v3598, %v3626
    %v3631 = vadd.f32 %v3614, %v3628
    %v3632 = vadd.f32 %v3601, %v3626
    %v3633 = vadd.f32 %v3615, %v3626
    %v3634 = vadd.f32 %v3606, %v3628
    %v3635 = vadd.f32 %v3616, %v3626
    %v3636 = vmax.f32 %v3630, 0.0
    %v3637 = vmax.f32 %v3631, 0.0
    %v3638 = vmax.f32 %v3632, 0.0
    %v3639 = vmax.f32 %v3633, 0.0
    %v3640 = vmax.f32 %v3634, 0.0
    %v3641 = vmax.f32 %v3635, 0.0
    %v3646 = vcombine.low %v3636, %v3637
    %v3647 = vcombine.low %v3639, %v3640
    %v3650 = vsel %vm582, %v3646, -inf
    %v3651 = vsel %vm1827, %v3638, -inf
    %v3652 = vmax.f32 %v3650, %v3651
    %v3653 = vrot.slane %v3652, 4
    %v3654 = vmax.f32 %v3652, %v3653
    %v3655 = vrot.slane %v3654, 2
    %v3656 = vmax.f32 %v3654, %v3655
    %v3657 = vrot.slane %v3656, 1
    %v3658 = vmax.f32 %v3656, %v3657
    %v3659 = vsel %vm582, %v3647, -inf
    %v3660 = vsel %vm1827, %v3641, -inf
    %v3661 = vmax.f32 %v3659, %v3660
    %v3662 = vrot.slane %v3661, 4
    %v3663 = vmax.f32 %v3661, %v3662
    %v3664 = vrot.slane %v3663, 2
    %v3665 = vmax.f32 %v3663, %v3664
    %v3666 = vrot.slane %v3665, 1
    %v3667 = vmax.f32 %v3665, %v3666
    %v3670 = vsel %vm1847, %v2424, %v2415
    %v3674 = vsel %vm1847, %v3447, %v3438
    %3675 = vrot.lane.b32.xlu0 %v3674, 8
    %v3676 = vpop.permute.xlu0 %3675
    %v3680 = vsel %vm1847, %v3667, %v3658
    %3681 = vrot.lane.b32.xlu0 %v3680, 16
    %v3682 = vpop.permute.xlu0 %3681
    %v3684 = vsel %vm582, %v3670, %v3676
    %v3685 = vsel %vm1863, %v3684, %v3682
    %s3686 = scalar_lea.vmem %s9, 1
    %v3687 = vld [vmem:[%s3686] sm:$0x1]
    %v3689 = vlaneseq
    %v3690 = vshrl.u32 %v3689, 7
    %v3691 = vsub.s32 0, %v3690
    %v3692 = vrot.slane %v3687, %v3691
    %v3694 = vmul.f32 %v3685, %v3692
    %v3695 = vadd.f32 %v1872, %v3694
    %v3696 = vadd.f32 %v1864, %v3685
    %v3697 = vadd.f32 %v3696, 1e-06
    %v3698 = vrcp.pop %v3697
    %v3699 = vmul.f32 %v3695, %v3698
    %v3700 = vld [vmem:[%s10] sm:$0xff]
    %v3701 = vld [vmem:[%s10 + $0x8] sm:$0xff]
    %v3702 = vld [vmem:[%s10 + $0x10] sm:$0xff]
    %v3703 = vld [vmem:[%s11] sm:$0x1]
    %v3705 = vlaneseq
    %v3706 = vshrl.u32 %v3705, 7
    %v3707 = vsub.s32 0, %v3706
    %v3708 = vrot.slane %v3703, %v3707
    %vm3710 = vcmask 195584
    %v3712 = vsel %vm3710, %v3699, 0
    %3714 = vmatprep.subr.mxu0 0.0
    %3715 = vmatpush1.msra.mxu0 %v3700
    %3716 = vmatprep.subr.mxu0 0.0
    %3717 = vmatpush1.msra.mxu0 %v3701
    %3718 = vmatprep.subr.mxu0 0.0
    %3719 = vmatpush1.msra.mxu0 %v3702
    %3720 = vmatprep.subr.mxu0 0.0
    %3721 = vmatpush1.msra.mxu0 0.0
    %3722 = vmatprep.subr.mxu0 0.0
    %3723 = vmatpush1.msra.mxu0 0.0
    %3724 = vmatprep.subr.mxu0 0.0
    %3725 = vmatpush1.msra.mxu0 0.0
    %3726 = vmatprep.subr.mxu0 0.0
    %3727 = vmatpush1.msra.mxu0 0.0
    %3728 = vmatprep.subr.mxu0 0.0
    %3729 = vmatpush1.msra.mxu0 0.0
    %3730 = vmatprep.subr.mxu0 0.0
    %3731 = vmatpush1.msra.mxu0 0.0
    %3732 = vmatprep.subr.mxu0 0.0
    %3733 = vmatpush1.msra.mxu0 0.0
    %3734 = vmatprep.subr.mxu0 0.0
    %3735 = vmatpush1.msra.mxu0 0.0
    %3736 = vmatprep.subr.mxu0 0.0
    %3737 = vmatpush1.msra.mxu0 0.0
    %3738 = vmatprep.subr.mxu0 0.0
    %3739 = vmatpush1.msra.mxu0 0.0
    %3740 = vmatprep.subr.mxu0 0.0
    %3741 = vmatpush1.msra.mxu0 0.0
    %3742 = vmatprep.subr.mxu0 0.0
    %3743 = vmatpush1.msra.mxu0 0.0
    %3744 = vmatprep.subr.mxu0 0.0
    %3745 = vmatpush1.msra.mxu0 0.0
    %3746 = vmatprep.subr.mxu0 0.0
    %3747 = vmatpush1.msra.mxu0 0.0
    %3748 = vmatprep.subr.mxu0 0.0
    %3749 = vmatpush1.msra.mxu0 0.0
    %3750 = vmatprep.subr.mxu0 0.0
    %3751 = vmatpush1.msra.mxu0 0.0
    %3752 = vmatprep.subr.mxu0 0.0
    %3753 = vmatpush1.msra.mxu0 0.0
    %3754 = vmatprep.subr.mxu0 0.0
    %3755 = vmatpush1.msra.mxu0 0.0
    %3756 = vmatprep.subr.mxu0 0.0
    %3757 = vmatpush1.msra.mxu0 0.0
    %3758 = vmatprep.subr.mxu0 0.0
    %3759 = vmatpush1.msra.mxu0 0.0
    %3760 = vmatprep.subr.mxu0 0.0
    %3761 = vmatpush1.msra.mxu0 0.0
    %3762 = vmatprep.subr.mxu0 0.0
    %3763 = vmatpush1.msra.mxu0 0.0
    %3764 = vmatprep.subr.mxu0 0.0
    %3765 = vmatpush1.msra.mxu0 0.0
    %3766 = vmatprep.subr.mxu0 0.0
    %3767 = vmatpush1.msra.mxu0 0.0
    %3768 = vmatprep.subr.mxu0 0.0
    %3769 = vmatpush1.msra.mxu0 0.0
    %3770 = vmatprep.subr.mxu0 0.0
    %3771 = vmatpush1.msra.mxu0 0.0
    %3772 = vmatprep.subr.mxu0 0.0
    %3773 = vmatpush1.msra.mxu0 0.0
    %3774 = vmatprep.subr.mxu0 0.0
    %3775 = vmatpush1.msra.mxu0 0.0
    %3776 = vmatprep.subr.mxu0 0.0
    %3777 = vmatpush1.msra.mxu0 0.0
    %3778 = vmatprep.mubr.f32.mxu0 0.0
    %3779 = vmatmul.mubr.f32.gmra.mrb[0].mxu0 %v3712
    %v3780 = vpop.f32.mrb[0].mxu0
    %v3781 = vadd.f32 %v3708, %v3780
    %v3782 = vpop.f32.mrb[0].mxu0
    %3783 = vdwg.mxu0
    %vm3784 = vcmask 25600
    %3785 = vst.msk [vmem:[#allocation2] sm:$0x3] %vm3784, %v3781
    // Predicated region
    $region50: #{tpu_custom_call.1} parent=1 // pred_check
      _
    $region51: #{tpu_custom_call.1} parent=1 // pred_check_branch
      %3787 = sbr.rel (0) target = $region53
    $region52: #{tpu_custom_call.1} parent=1 // pred_region
      %s3789 = ssub.s32 32, 32
      %3790 = vsyncadd [#allocation3], %s3789
      %s3792 = sshll.u32 [#allocation2], 4
      %s3793 = int_to_ptr.vmem [resolvable:$true] %s3792
      %3795 = dma.vmem_to_hbm [thread:$0]  %s3793, 32, %s12, [#allocation3]
    $region53: #{tpu_custom_call.1} parent=1 // pred_fallthru
      _
    // Predicated region
    $region54: #{tpu_custom_call.1} parent=1 // pred_check
      _
    $region55: #{tpu_custom_call.1} parent=1 // pred_check_branch
      %3797 = sbr.rel (0) target = $region57
    $region56: #{tpu_custom_call.1} parent=1 // pred_region
      %3798 = dma.done [#allocation3], 32
    $region57: #{tpu_custom_call.1} parent=1 // pred_fallthru
      _
    %3799 = vsyncpa [#allocation3], 1

</llo_original>
